<compile_context>
chip_gen: v7x
topology: tpu7x:2x2x1
jax: 0.10.0
libtpu: 0.0.40
codegen_flags: <defaults>
</compile_context>

<pallas_src>
import functools
import math

import numpy as np
import jax
import jax.numpy as jnp
from jax.experimental import pallas as pl
from jax.experimental.pallas import tpu as pltpu


# ----------------------------- small helpers --------------------------------
def _round_up(v, m):
    return -(-v // m) * m


def _tile_bytes(shape, itemsize=4):
    """Bytes a buffer occupies in VMEM, including (8,128) physical tiling."""
    s = list(shape)
    if len(s) >= 2:
        s[-1] = _round_up(s[-1], 128)
        s[-2] = _round_up(s[-2], 8)
    elif len(s) == 1:
        s[0] = _round_up(s[0], 128)
    total = itemsize
    for d in s:
        total *= d
    return total


def _divisors_desc(n):
    return [d for d in range(n, 0, -1) if n % d == 0]


def _vmem_capacity_bytes():
    try:
        info = pltpu.get_tpu_info()
        cap = getattr(info, "vmem_capacity_bytes", None)
        if cap:
            return int(cap)
    except Exception:
        pass
    return 64 * 1024 * 1024        # conservative default (v7x per-core size)


# ------------------------------- kernel -------------------------------------
def _modconv_kernel(mod_ref, w_ref, x_ref, o_ref, xpad_ref, *,
                    ksize, pad, h, w, th, cin, bb, use_im2col):
    j = pl.program_id(1)
    wp = w + 2 * pad
    kk = ksize * ksize

    # ---- once per batch block: fused zero-pad + per-sample modulation ------
    @pl.when(j == 0)
    def _fill_padded_input():
        mod = mod_ref[...].astype(jnp.float32)               # (bb, 1, cin)
        xm = x_ref[...].astype(jnp.float32) * mod[:, :, None, :]
        if pad > 0:
            # zero only the halo bands; the interior is fully overwritten
            zrow = jnp.zeros((bb, pad, wp, cin), jnp.float32)
            zcol = jnp.zeros((bb, h, pad, cin), jnp.float32)
            xpad_ref[:, :pad, :, :] = zrow                   # top halo
            xpad_ref[:, pad + h:, :, :] = zrow               # bottom halo
            xpad_ref[:, pad:pad + h, :pad, :] = zcol         # left halo
            xpad_ref[:, pad:pad + h, pad + w:, :] = zcol     # right halo
        xpad_ref[:, pad:pad + h, pad:pad + w, :] = xm        # interior

    # ---- rows of the padded input feeding this output-row block ------------
    r0 = pl.multiple_of(j * th, th)
    taps = [xpad_ref[:, pl.ds(r0 + ki, th), kj:kj + w, :]    # (bb, th, w, cin)
            for ki in range(ksize) for kj in range(ksize)]

    if use_im2col:
        # one MXU matmul, contraction depth cin*K*K (better MXU fill, no
        # accumulator live across taps)
        cols = taps[0] if kk == 1 else jnp.concatenate(taps, axis=-1)
        out = jnp.dot(cols.reshape(bb * th * w, cin * kk), w_ref[...],
                      preferred_element_type=jnp.float32)
    else:
        # fallback: one matmul per tap, contraction depth cin
        out = jnp.zeros((bb * th * w, o_ref.shape[-1]), jnp.float32)
        for t, patch in enumerate(taps):
            out = out + jnp.dot(patch.reshape(bb * th * w, cin),
                                w_ref[t * cin:(t + 1) * cin, :],
                                preferred_element_type=jnp.float32)

    o_ref[...] = out.reshape(bb, th, w, -1).astype(o_ref.dtype)


# ------------------------------- wrapper -------------------------------------
def modulated_conv2d(x, style, weight, w_mod, b_mod, demod, *, scale,
                     batch_block=None, tile_h=None):
    """x: (N, Cin, H, W) NCHW, style: (N, style_dim) -> (N, Cout, H, W) NCHW."""
    n, cin, h, w = x.shape
    cout, cin_w, ksize, _ = weight.shape
    assert cin_w == cin
    pad = ksize // 2
    hp, wp = h + 2 * pad, w + 2 * pad
    kk = ksize * ksize
    itemsize = jnp.dtype(x.dtype).itemsize

    # lane-dense output: pad Cout to a multiple of 128 only when the padded
    # HBM writeback stays within 2x of the true output size.
    cout_p = _round_up(cout, 128)
    if cout_p > 2 * cout:
        cout_p = cout

    # ---- parameter folding (cheap, outside the hot kernel) -----------------
    hi = jax.lax.Precision.HIGHEST
    mod = scale * (jnp.dot(style.astype(jnp.float32), w_mod, precision=hi)
                   + b_mod[None, :])                         # (N, Cin)
    mod3 = mod.reshape(n, 1, cin)
    w_eff = weight * demod[:, None, None, None]              # fold demod per Cout
    w2 = jnp.transpose(w_eff, (2, 3, 1, 0)).reshape(kk * cin, cout)
    if cout_p != cout:
        w2 = jnp.pad(w2, ((0, 0), (0, cout_p - cout)))
    # TODO(synk): keep activations NHWC across layers to drop these transposes.
    x_nhwc = jnp.transpose(x, (0, 2, 3, 1))                  # (N, H, W, Cin)

    # ---- block sizing against physical VMEM (with (8,128) tile padding) ----
    vmem_cap = _vmem_capacity_bytes()
    budget = int(vmem_cap * 0.4)
    vmem_limit = int(vmem_cap * 0.75)

    def vmem_estimate(bb_, th_):
        return (2 * _tile_bytes((bb_, h, w, cin), itemsize)          # x (2 bufs)
                + _tile_bytes((bb_, hp, wp, cin))                    # pad scratch
                + _tile_bytes((bb_ * th_ * w, cin * kk))             # im2col slab
                + _tile_bytes((bb_ * th_ * w, cout_p))               # matmul out
                + 2 * _tile_bytes((bb_, th_, w, cout_p), itemsize)   # out (2 bufs)
                + 2 * _tile_bytes((kk * cin, cout_p))                # weights
                + 2 * _tile_bytes((bb_, 1, cin)))                    # modulation

    if tile_h is None:
        th = 1
        th_target = max(8, h // 4)
        for d in _divisors_desc(h):
            if d <= th_target and vmem_estimate(1, d) <= budget:
                th = d
                break
    else:
        th = tile_h
    assert h % th == 0
    nh = h // th

    if batch_block is None:
        bb = 1
        min_steps = min(4, n * nh)    # keep the pipeline / both v7x cores busy
        for d in _divisors_desc(n):
            if (n // d) * nh >= min_steps and vmem_estimate(d, th) <= budget:
                bb = d
                break
    else:
        bb = batch_block
    assert n % bb == 0
    grid = (n // bb, nh)

    flops = 2 * n * h * w * cout * cin * kk
    bytes_accessed = int(x.size * itemsize + n * h * w * cout_p * itemsize
                         + w2.size * 4 + mod3.size * 4)

    def run(use_im2col):
        kern = functools.partial(
            _modconv_kernel, ksize=ksize, pad=pad, h=h, w=w, th=th, cin=cin,
            bb=bb, use_im2col=use_im2col)
        return pl.pallas_call(
            kern,
            out_shape=jax.ShapeDtypeStruct((n, h, w, cout_p), x.dtype),
            grid_spec=pltpu.PrefetchScalarGridSpec(
                num_scalar_prefetch=0,
                grid=grid,
                in_specs=[
                    pl.BlockSpec((bb, 1, cin), lambda i, j: (i, 0, 0)),
                    pl.BlockSpec((kk * cin, cout_p), lambda i, j: (0, 0)),
                    pl.BlockSpec((bb, h, w, cin), lambda i, j: (i, 0, 0, 0)),
                ],
                out_specs=pl.BlockSpec((bb, th, w, cout_p),
                                       lambda i, j: (i, j, 0, 0)),
                scratch_shapes=[pltpu.VMEM((bb, hp, wp, cin), jnp.float32)],
            ),
            compiler_params=pltpu.CompilerParams(
                dimension_semantics=("parallel", "arbitrary"),
                vmem_limit_bytes=vmem_limit),
            cost_estimate=pl.CostEstimate(
                flops=flops, transcendentals=0, bytes_accessed=bytes_accessed),
        )(mod3, w2, x_nhwc)

    try:
        out_nhwc = jax.block_until_ready(run(use_im2col=True))
    except Exception:
        # Some Mosaic versions reject the lane-axis concatenate of narrow
        # channel taps; fall back to per-tap MXU accumulation.
        out_nhwc = run(use_im2col=False)

    if cout_p != cout:
        out_nhwc = out_nhwc[..., :cout]
    return jnp.transpose(out_nhwc, (0, 3, 1, 2))             # back to NCHW


# ------------------------------ module port ----------------------------------
class ModulatedConv2d:
    """JAX/Pallas port of the MobileStyleGAN ModulatedConv2d forward pass."""

    def __init__(self, channels_in, channels_out, style_dim, kernel_size,
                 demodulate=True, *, key):
        k_w, k_lin, k_inv = jax.random.split(key, 3)
        self.weight = jax.random.normal(
            k_w, (channels_out, channels_in, kernel_size, kernel_size),
            jnp.float32)
        lim = 1.0 / math.sqrt(style_dim)
        # modulation Linear stored transposed: (style_dim, Cin); bias init 1.0
        self.w_mod = jax.random.uniform(
            k_lin, (style_dim, channels_in), jnp.float32, -lim, lim)
        self.b_mod = jnp.ones((channels_in,), jnp.float32)
        self.demodulate = demodulate
        self.style_inv = jax.random.normal(
            k_inv, (1, 1, channels_in, 1, 1), jnp.float32)
        self.scale = 1.0 / math.sqrt(channels_in * kernel_size ** 2)
        self.padding = kernel_size // 2

    def _demodulation(self):
        if not self.demodulate:
            return jnp.ones((self.weight.shape[0],), jnp.float32)
        w = self.weight[None]                                 # (1,Cout,Cin,K,K)
        norm = jax.lax.rsqrt(
            jnp.sum((self.scale * self.style_inv * w) ** 2, axis=(2, 3, 4))
            + 1e-8)                                           # (1, Cout)
        return norm.reshape(-1)

    def __call__(self, x, style):
        return modulated_conv2d(
            x, style, self.weight, self.w_mod, self.b_mod,
            self._demodulation(), scale=self.scale)


# ------------------------------ reference ------------------------------------
def _reference_modconv(x, style, m):
    hi = jax.lax.Precision.HIGHEST
    mod = m.scale * (jnp.dot(style, m.w_mod, precision=hi) + m.b_mod[None, :])
    xm = x * mod[:, :, None, None]
    out = jax.lax.conv_general_dilated(
        xm, m.weight, window_strides=(1, 1),
        padding=[(m.padding, m.padding), (m.padding, m.padding)],
        dimension_numbers=("NCHW", "OIHW", "NCHW"), precision=hi)
    if m.demodulate:
        norm = jax.lax.rsqrt(
            jnp.sum((m.scale * m.style_inv * m.weight[None]) ** 2,
                    axis=(2, 3, 4)) + 1e-8)                   # (1, Cout)
        out = out * norm[:, :, None, None]
    return out


if __name__ == "__main__":
    key = jax.random.PRNGKey(0)
    k_x, k_s, k_m = jax.random.split(key, 3)

    batch, cin, cout, style_dim, ksize, hw = 2, 4, 8, 32, 3, 16
    x = jax.random.normal(k_x, (batch, cin, hw, hw), jnp.float32)
    style = jax.random.normal(k_s, (batch, style_dim), jnp.float32)

    mod_conv = ModulatedConv2d(cin, cout, style_dim, ksize,
                               demodulate=True, key=k_m)

    out = mod_conv(x, style)
    out = jax.block_until_ready(out)

    ref = _reference_modconv(x, style, mod_conv)
    np.testing.assert_allclose(np.asarray(out), np.asarray(ref),
                               rtol=2e-3, atol=2e-3)
    assert out.shape == (batch, cout, hw, hw)
    print("KERNEL_OK")
</pallas_src>

<mosaic_0001>
module attributes {stable_mosaic.version = 11 : i64} {
  func.func @_modconv_kernel(%arg0: i32, %arg1: i32, %arg2: memref<1x1x4xf32, #tpu.memory_space<vmem>>, %arg3: memref<36x8xf32, #tpu.memory_space<vmem>>, %arg4: memref<1x16x16x4xf32, #tpu.memory_space<vmem>>, %arg5: memref<1x8x16x8xf32, #tpu.memory_space<vmem>>, %arg6: memref<1x18x18x4xf32, #tpu.memory_space<vmem>>) attributes {dimension_semantics = [#tpu.dimension_semantics<parallel>, #tpu.dimension_semantics<arbitrary>], iteration_bounds = array<i64: 2, 2>, scalar_prefetch = 0 : i64, scratch_operands = 1 : i64, tpu.core_type = #tpu.core_type<tc>, window_params = [{transform_indices = @transform_0, window_bounds = array<i64: 1, 1, 4>}, {pipeline_mode = #tpu.pipeline_mode<synchronous>, transform_indices = @transform_1, window_bounds = array<i64: 36, 8>}, {transform_indices = @transform_2, window_bounds = array<i64: 1, 16, 16, 4>}, {transform_indices = @transform_3, window_bounds = array<i64: 1, 8, 16, 8>}]} {
    %c0_i32 = arith.constant 0 : i32
    %0 = arith.cmpi eq, %arg1, %c0_i32 : i32
    %1 = arith.extui %0 : i1 to i32
    %c0_i32_0 = arith.constant 0 : i32
    %2 = arith.cmpi ne, %1, %c0_i32_0 : i32
    scf.if %2 {
      %c0_38 = arith.constant 0 : index
      %c0_39 = arith.constant 0 : index
      %c0_40 = arith.constant 0 : index
      %38 = vector.load %arg2[%c0_38, %c0_39, %c0_40] : memref<1x1x4xf32, #tpu.memory_space<vmem>>, vector<1x1x4xf32>
      %c0_41 = arith.constant 0 : index
      %c0_42 = arith.constant 0 : index
      %c0_43 = arith.constant 0 : index
      %c0_44 = arith.constant 0 : index
      %39 = vector.load %arg4[%c0_41, %c0_42, %c0_43, %c0_44] : memref<1x16x16x4xf32, #tpu.memory_space<vmem>>, vector<1x16x16x4xf32>
      %40 = vector.shape_cast %38 : vector<1x1x4xf32> to vector<1x1x1x4xf32>
      %41 = vector.broadcast %40 : vector<1x1x1x4xf32> to vector<1x16x16x4xf32>
      %42 = arith.mulf %39, %41 : vector<1x16x16x4xf32>
      %cst_45 = arith.constant 0.000000e+00 : f32
      %43 = vector.broadcast %cst_45 : f32 to vector<1x1x18x4xf32>
      %cst_46 = arith.constant 0.000000e+00 : f32
      %44 = vector.broadcast %cst_46 : f32 to vector<1x16x1x4xf32>
      %c0_47 = arith.constant 0 : index
      %c0_48 = arith.constant 0 : index
      %c0_49 = arith.constant 0 : index
      %c0_50 = arith.constant 0 : index
      %45 = vector.load %arg6[%c0_47, %c0_48, %c0_49, %c0_50] : memref<1x18x18x4xf32, #tpu.memory_space<vmem>>, vector<1x1x18x4xf32>
      tpu.vector_store %arg6[%c0_47, %c0_48, %c0_49, %c0_50], %43 {strides = array<i32>} : memref<1x18x18x4xf32, #tpu.memory_space<vmem>>, vector<1x1x18x4xf32>,
      %c0_51 = arith.constant 0 : index
      %c17 = arith.constant 17 : index
      %c0_52 = arith.constant 0 : index
      %c0_53 = arith.constant 0 : index
      %46 = vector.load %arg6[%c0_51, %c17, %c0_52, %c0_53] : memref<1x18x18x4xf32, #tpu.memory_space<vmem>>, vector<1x1x18x4xf32>
      tpu.vector_store %arg6[%c0_51, %c17, %c0_52, %c0_53], %43 {strides = array<i32>} : memref<1x18x18x4xf32, #tpu.memory_space<vmem>>, vector<1x1x18x4xf32>,
      %c0_54 = arith.constant 0 : index
      %c1_55 = arith.constant 1 : index
      %c0_56 = arith.constant 0 : index
      %c0_57 = arith.constant 0 : index
      %47 = vector.load %arg6[%c0_54, %c1_55, %c0_56, %c0_57] : memref<1x18x18x4xf32, #tpu.memory_space<vmem>>, vector<1x16x1x4xf32>
      tpu.vector_store %arg6[%c0_54, %c1_55, %c0_56, %c0_57], %44 {strides = array<i32>} : memref<1x18x18x4xf32, #tpu.memory_space<vmem>>, vector<1x16x1x4xf32>,
      %c0_58 = arith.constant 0 : index
      %c1_59 = arith.constant 1 : index
      %c17_60 = arith.constant 17 : index
      %c0_61 = arith.constant 0 : index
      %48 = vector.load %arg6[%c0_58, %c1_59, %c17_60, %c0_61] : memref<1x18x18x4xf32, #tpu.memory_space<vmem>>, vector<1x16x1x4xf32>
      tpu.vector_store %arg6[%c0_58, %c1_59, %c17_60, %c0_61], %44 {strides = array<i32>} : memref<1x18x18x4xf32, #tpu.memory_space<vmem>>, vector<1x16x1x4xf32>,
      %c0_62 = arith.constant 0 : index
      %c1_63 = arith.constant 1 : index
      %c1_64 = arith.constant 1 : index
      %c0_65 = arith.constant 0 : index
      %49 = vector.load %arg6[%c0_62, %c1_63, %c1_64, %c0_65] : memref<1x18x18x4xf32, #tpu.memory_space<vmem>>, vector<1x16x16x4xf32>
      tpu.vector_store %arg6[%c0_62, %c1_63, %c1_64, %c0_65], %42 {strides = array<i32>} : memref<1x18x18x4xf32, #tpu.memory_space<vmem>>, vector<1x16x16x4xf32>,
    } else {
    }
    %c8_i32 = arith.constant 8 : i32
    %3 = arith.muli %arg1, %c8_i32 : i32
    %4 = tpu.assume_multiple %3, 8 : i32
    %c0_i32_1 = arith.constant 0 : i32
    %5 = arith.addi %4, %c0_i32_1 : i32
    %c0 = arith.constant 0 : index
    %6 = arith.index_cast %5 : i32 to index
    %c0_2 = arith.constant 0 : index
    %c0_3 = arith.constant 0 : index
    %7 = vector.load %arg6[%c0, %6, %c0_2, %c0_3] : memref<1x18x18x4xf32, #tpu.memory_space<vmem>>, vector<1x8x16x4xf32>
    %c0_i32_4 = arith.constant 0 : i32
    %8 = arith.addi %4, %c0_i32_4 : i32
    %c0_5 = arith.constant 0 : index
    %9 = arith.index_cast %8 : i32 to index
    %c1 = arith.constant 1 : index
    %c0_6 = arith.constant 0 : index
    %10 = vector.load %arg6[%c0_5, %9, %c1, %c0_6] : memref<1x18x18x4xf32, #tpu.memory_space<vmem>>, vector<1x8x16x4xf32>
    %c0_i32_7 = arith.constant 0 : i32
    %11 = arith.addi %4, %c0_i32_7 : i32
    %c0_8 = arith.constant 0 : index
    %12 = arith.index_cast %11 : i32 to index
    %c2 = arith.constant 2 : index
    %c0_9 = arith.constant 0 : index
    %13 = vector.load %arg6[%c0_8, %12, %c2, %c0_9] : memref<1x18x18x4xf32, #tpu.memory_space<vmem>>, vector<1x8x16x4xf32>
    %c1_i32 = arith.constant 1 : i32
    %14 = arith.addi %4, %c1_i32 : i32
    %c0_10 = arith.constant 0 : index
    %15 = arith.index_cast %14 : i32 to index
    %c0_11 = arith.constant 0 : index
    %c0_12 = arith.constant 0 : index
    %16 = vector.load %arg6[%c0_10, %15, %c0_11, %c0_12] : memref<1x18x18x4xf32, #tpu.memory_space<vmem>>, vector<1x8x16x4xf32>
    %c1_i32_13 = arith.constant 1 : i32
    %17 = arith.addi %4, %c1_i32_13 : i32
    %c0_14 = arith.constant 0 : index
    %18 = arith.index_cast %17 : i32 to index
    %c1_15 = arith.constant 1 : index
    %c0_16 = arith.constant 0 : index
    %19 = vector.load %arg6[%c0_14, %18, %c1_15, %c0_16] : memref<1x18x18x4xf32, #tpu.memory_space<vmem>>, vector<1x8x16x4xf32>
    %c1_i32_17 = arith.constant 1 : i32
    %20 = arith.addi %4, %c1_i32_17 : i32
    %c0_18 = arith.constant 0 : index
    %21 = arith.index_cast %20 : i32 to index
    %c2_19 = arith.constant 2 : index
    %c0_20 = arith.constant 0 : index
    %22 = vector.load %arg6[%c0_18, %21, %c2_19, %c0_20] : memref<1x18x18x4xf32, #tpu.memory_space<vmem>>, vector<1x8x16x4xf32>
    %c2_i32 = arith.constant 2 : i32
    %23 = arith.addi %4, %c2_i32 : i32
    %c0_21 = arith.constant 0 : index
    %24 = arith.index_cast %23 : i32 to index
    %c0_22 = arith.constant 0 : index
    %c0_23 = arith.constant 0 : index
    %25 = vector.load %arg6[%c0_21, %24, %c0_22, %c0_23] : memref<1x18x18x4xf32, #tpu.memory_space<vmem>>, vector<1x8x16x4xf32>
    %c2_i32_24 = arith.constant 2 : i32
    %26 = arith.addi %4, %c2_i32_24 : i32
    %c0_25 = arith.constant 0 : index
    %27 = arith.index_cast %26 : i32 to index
    %c1_26 = arith.constant 1 : index
    %c0_27 = arith.constant 0 : index
    %28 = vector.load %arg6[%c0_25, %27, %c1_26, %c0_27] : memref<1x18x18x4xf32, #tpu.memory_space<vmem>>, vector<1x8x16x4xf32>
    %c2_i32_28 = arith.constant 2 : i32
    %29 = arith.addi %4, %c2_i32_28 : i32
    %c0_29 = arith.constant 0 : index
    %30 = arith.index_cast %29 : i32 to index
    %c2_30 = arith.constant 2 : index
    %c0_31 = arith.constant 0 : index
    %31 = vector.load %arg6[%c0_29, %30, %c2_30, %c0_31] : memref<1x18x18x4xf32, #tpu.memory_space<vmem>>, vector<1x8x16x4xf32>
    %32 = tpu.concatenate %7, %10, %13, %16, %19, %22, %25, %28, %31 in 3 : vector<1x8x16x4xf32>, vector<1x8x16x4xf32>, vector<1x8x16x4xf32>, vector<1x8x16x4xf32>, vector<1x8x16x4xf32>, vector<1x8x16x4xf32>, vector<1x8x16x4xf32>, vector<1x8x16x4xf32>, vector<1x8x16x4xf32> -> vector<1x8x16x36xf32>
    %33 = vector.shape_cast %32 : vector<1x8x16x36xf32> to vector<128x36xf32>
    %c0_32 = arith.constant 0 : index
    %c0_33 = arith.constant 0 : index
    %34 = vector.load %arg3[%c0_32, %c0_33] : memref<36x8xf32, #tpu.memory_space<vmem>>, vector<36x8xf32>
    %cst = arith.constant dense<0.000000e+00> : vector<128x8xf32>
    %35 = tpu.matmul %33, %34, %cst {dimension_numbers = #tpu.dot_dimension_numbers<[1], [0], [0], [1], [0, 0, 1, 1], [], []>} : vector<128x36xf32>, vector<36x8xf32>, vector<128x8xf32> -> vector<128x8xf32>
    %36 = vector.shape_cast %35 : vector<128x8xf32> to vector<1x8x16x8xf32>
    %c0_34 = arith.constant 0 : index
    %c0_35 = arith.constant 0 : index
    %c0_36 = arith.constant 0 : index
    %c0_37 = arith.constant 0 : index
    %37 = vector.load %arg5[%c0_34, %c0_35, %c0_36, %c0_37] : memref<1x8x16x8xf32, #tpu.memory_space<vmem>>, vector<1x8x16x8xf32>
    tpu.vector_store %arg5[%c0_34, %c0_35, %c0_36, %c0_37], %36 {strides = array<i32>} : memref<1x8x16x8xf32, #tpu.memory_space<vmem>>, vector<1x8x16x8xf32>,
    return
  }
  func.func @transform_0(%arg0: i32, %arg1: i32) -> (i32, i32, i32) {
    %c0_i32 = arith.constant 0 : i32
    %c0_i32_0 = arith.constant 0 : i32
    %c0_i32_1 = arith.constant 0 : i32
    return %arg0, %c0_i32, %c0_i32_0 : i32, i32, i32
  }
  func.func @transform_1(%arg0: i32, %arg1: i32) -> (i32, i32) {
    %c0_i32 = arith.constant 0 : i32
    %c0_i32_0 = arith.constant 0 : i32
    %c0_i32_1 = arith.constant 0 : i32
    return %c0_i32, %c0_i32_0 : i32, i32
  }
  func.func @transform_2(%arg0: i32, %arg1: i32) -> (i32, i32, i32, i32) {
    %c0_i32 = arith.constant 0 : i32
    %c0_i32_0 = arith.constant 0 : i32
    %c0_i32_1 = arith.constant 0 : i32
    %c0_i32_2 = arith.constant 0 : i32
    return %arg0, %c0_i32, %c0_i32_0, %c0_i32_1 : i32, i32, i32, i32
  }
  func.func @transform_3(%arg0: i32, %arg1: i32) -> (i32, i32, i32, i32) {
    %c0_i32 = arith.constant 0 : i32
    %c0_i32_0 = arith.constant 0 : i32
    %c0_i32_1 = arith.constant 0 : i32
    return %arg0, %arg1, %c0_i32, %c0_i32_0 : i32, i32, i32, i32
  }
}

module attributes {stable_mosaic.version = 11 : i64} {
  func.func @_modconv_kernel(%arg0: i32, %arg1: i32, %arg2: memref<1x1x4xf32, #tpu.memory_space<vmem>>, %arg3: memref<36x8xf32, #tpu.memory_space<vmem>>, %arg4: memref<1x16x16x4xf32, #tpu.memory_space<vmem>>, %arg5: memref<1x8x16x8xf32, #tpu.memory_space<vmem>>, %arg6: memref<1x18x18x4xf32, #tpu.memory_space<vmem>>) attributes {dimension_semantics = [#tpu.dimension_semantics<parallel>, #tpu.dimension_semantics<arbitrary>], iteration_bounds = array<i64: 2, 2>, scalar_prefetch = 0 : i64, scratch_operands = 1 : i64, tpu.core_type = #tpu.core_type<tc>, window_params = [{transform_indices = @transform_0, window_bounds = array<i64: 1, 1, 4>}, {pipeline_mode = #tpu.pipeline_mode<synchronous>, transform_indices = @transform_1, window_bounds = array<i64: 36, 8>}, {transform_indices = @transform_2, window_bounds = array<i64: 1, 16, 16, 4>}, {transform_indices = @transform_3, window_bounds = array<i64: 1, 8, 16, 8>}]} {
    %c0_i32 = arith.constant 0 : i32
    %0 = arith.cmpi eq, %arg1, %c0_i32 : i32
    %1 = arith.extui %0 : i1 to i32
    %c0_i32_0 = arith.constant 0 : i32
    %2 = arith.cmpi ne, %1, %c0_i32_0 : i32
    scf.if %2 {
      %c0_55 = arith.constant 0 : index
      %c0_56 = arith.constant 0 : index
      %c0_57 = arith.constant 0 : index
      %71 = vector.load %arg2[%c0_55, %c0_56, %c0_57] : memref<1x1x4xf32, #tpu.memory_space<vmem>>, vector<1x1x4xf32>
      %c0_58 = arith.constant 0 : index
      %c0_59 = arith.constant 0 : index
      %c0_60 = arith.constant 0 : index
      %c0_61 = arith.constant 0 : index
      %72 = vector.load %arg4[%c0_58, %c0_59, %c0_60, %c0_61] : memref<1x16x16x4xf32, #tpu.memory_space<vmem>>, vector<1x16x16x4xf32>
      %73 = vector.shape_cast %71 : vector<1x1x4xf32> to vector<1x1x1x4xf32>
      %74 = vector.broadcast %73 : vector<1x1x1x4xf32> to vector<1x16x16x4xf32>
      %75 = arith.mulf %72, %74 : vector<1x16x16x4xf32>
      %cst_62 = arith.constant 0.000000e+00 : f32
      %76 = vector.broadcast %cst_62 : f32 to vector<1x1x18x4xf32>
      %cst_63 = arith.constant 0.000000e+00 : f32
      %77 = vector.broadcast %cst_63 : f32 to vector<1x16x1x4xf32>
      %c0_64 = arith.constant 0 : index
      %c0_65 = arith.constant 0 : index
      %c0_66 = arith.constant 0 : index
      %c0_67 = arith.constant 0 : index
      %78 = vector.load %arg6[%c0_64, %c0_65, %c0_66, %c0_67] : memref<1x18x18x4xf32, #tpu.memory_space<vmem>>, vector<1x1x18x4xf32>
      tpu.vector_store %arg6[%c0_64, %c0_65, %c0_66, %c0_67], %76 {strides = array<i32>} : memref<1x18x18x4xf32, #tpu.memory_space<vmem>>, vector<1x1x18x4xf32>,
      %c0_68 = arith.constant 0 : index
      %c17 = arith.constant 17 : index
      %c0_69 = arith.constant 0 : index
      %c0_70 = arith.constant 0 : index
      %79 = vector.load %arg6[%c0_68, %c17, %c0_69, %c0_70] : memref<1x18x18x4xf32, #tpu.memory_space<vmem>>, vector<1x1x18x4xf32>
      tpu.vector_store %arg6[%c0_68, %c17, %c0_69, %c0_70], %76 {strides = array<i32>} : memref<1x18x18x4xf32, #tpu.memory_space<vmem>>, vector<1x1x18x4xf32>,
      %c0_71 = arith.constant 0 : index
      %c1_72 = arith.constant 1 : index
      %c0_73 = arith.constant 0 : index
      %c0_74 = arith.constant 0 : index
      %80 = vector.load %arg6[%c0_71, %c1_72, %c0_73, %c0_74] : memref<1x18x18x4xf32, #tpu.memory_space<vmem>>, vector<1x16x1x4xf32>
      tpu.vector_store %arg6[%c0_71, %c1_72, %c0_73, %c0_74], %77 {strides = array<i32>} : memref<1x18x18x4xf32, #tpu.memory_space<vmem>>, vector<1x16x1x4xf32>,
      %c0_75 = arith.constant 0 : index
      %c1_76 = arith.constant 1 : index
      %c17_77 = arith.constant 17 : index
      %c0_78 = arith.constant 0 : index
      %81 = vector.load %arg6[%c0_75, %c1_76, %c17_77, %c0_78] : memref<1x18x18x4xf32, #tpu.memory_space<vmem>>, vector<1x16x1x4xf32>
      tpu.vector_store %arg6[%c0_75, %c1_76, %c17_77, %c0_78], %77 {strides = array<i32>} : memref<1x18x18x4xf32, #tpu.memory_space<vmem>>, vector<1x16x1x4xf32>,
      %c0_79 = arith.constant 0 : index
      %c1_80 = arith.constant 1 : index
      %c1_81 = arith.constant 1 : index
      %c0_82 = arith.constant 0 : index
      %82 = vector.load %arg6[%c0_79, %c1_80, %c1_81, %c0_82] : memref<1x18x18x4xf32, #tpu.memory_space<vmem>>, vector<1x16x16x4xf32>
      tpu.vector_store %arg6[%c0_79, %c1_80, %c1_81, %c0_82], %75 {strides = array<i32>} : memref<1x18x18x4xf32, #tpu.memory_space<vmem>>, vector<1x16x16x4xf32>,
    } else {
    }
    %c8_i32 = arith.constant 8 : i32
    %3 = arith.muli %arg1, %c8_i32 : i32
    %4 = tpu.assume_multiple %3, 8 : i32
    %c0_i32_1 = arith.constant 0 : i32
    %5 = arith.addi %4, %c0_i32_1 : i32
    %c0 = arith.constant 0 : index
    %6 = arith.index_cast %5 : i32 to index
    %c0_2 = arith.constant 0 : index
    %c0_3 = arith.constant 0 : index
    %7 = vector.load %arg6[%c0, %6, %c0_2, %c0_3] : memref<1x18x18x4xf32, #tpu.memory_space<vmem>>, vector<1x8x16x4xf32>
    %c0_i32_4 = arith.constant 0 : i32
    %8 = arith.addi %4, %c0_i32_4 : i32
    %c0_5 = arith.constant 0 : index
    %9 = arith.index_cast %8 : i32 to index
    %c1 = arith.constant 1 : index
    %c0_6 = arith.constant 0 : index
    %10 = vector.load %arg6[%c0_5, %9, %c1, %c0_6] : memref<1x18x18x4xf32, #tpu.memory_space<vmem>>, vector<1x8x16x4xf32>
    %c0_i32_7 = arith.constant 0 : i32
    %11 = arith.addi %4, %c0_i32_7 : i32
    %c0_8 = arith.constant 0 : index
    %12 = arith.index_cast %11 : i32 to index
    %c2 = arith.constant 2 : index
    %c0_9 = arith.constant 0 : index
    %13 = vector.load %arg6[%c0_8, %12, %c2, %c0_9] : memref<1x18x18x4xf32, #tpu.memory_space<vmem>>, vector<1x8x16x4xf32>
    %c1_i32 = arith.constant 1 : i32
    %14 = arith.addi %4, %c1_i32 : i32
    %c0_10 = arith.constant 0 : index
    %15 = arith.index_cast %14 : i32 to index
    %c0_11 = arith.constant 0 : index
    %c0_12 = arith.constant 0 : index
    %16 = vector.load %arg6[%c0_10, %15, %c0_11, %c0_12] : memref<1x18x18x4xf32, #tpu.memory_space<vmem>>, vector<1x8x16x4xf32>
    %c1_i32_13 = arith.constant 1 : i32
    %17 = arith.addi %4, %c1_i32_13 : i32
    %c0_14 = arith.constant 0 : index
    %18 = arith.index_cast %17 : i32 to index
    %c1_15 = arith.constant 1 : index
    %c0_16 = arith.constant 0 : index
    %19 = vector.load %arg6[%c0_14, %18, %c1_15, %c0_16] : memref<1x18x18x4xf32, #tpu.memory_space<vmem>>, vector<1x8x16x4xf32>
    %c1_i32_17 = arith.constant 1 : i32
    %20 = arith.addi %4, %c1_i32_17 : i32
    %c0_18 = arith.constant 0 : index
    %21 = arith.index_cast %20 : i32 to index
    %c2_19 = arith.constant 2 : index
    %c0_20 = arith.constant 0 : index
    %22 = vector.load %arg6[%c0_18, %21, %c2_19, %c0_20] : memref<1x18x18x4xf32, #tpu.memory_space<vmem>>, vector<1x8x16x4xf32>
    %c2_i32 = arith.constant 2 : i32
    %23 = arith.addi %4, %c2_i32 : i32
    %c0_21 = arith.constant 0 : index
    %24 = arith.index_cast %23 : i32 to index
    %c0_22 = arith.constant 0 : index
    %c0_23 = arith.constant 0 : index
    %25 = vector.load %arg6[%c0_21, %24, %c0_22, %c0_23] : memref<1x18x18x4xf32, #tpu.memory_space<vmem>>, vector<1x8x16x4xf32>
    %c2_i32_24 = arith.constant 2 : i32
    %26 = arith.addi %4, %c2_i32_24 : i32
    %c0_25 = arith.constant 0 : index
    %27 = arith.index_cast %26 : i32 to index
    %c1_26 = arith.constant 1 : index
    %c0_27 = arith.constant 0 : index
    %28 = vector.load %arg6[%c0_25, %27, %c1_26, %c0_27] : memref<1x18x18x4xf32, #tpu.memory_space<vmem>>, vector<1x8x16x4xf32>
    %c2_i32_28 = arith.constant 2 : i32
    %29 = arith.addi %4, %c2_i32_28 : i32
    %c0_29 = arith.constant 0 : index
    %30 = arith.index_cast %29 : i32 to index
    %c2_30 = arith.constant 2 : index
    %c0_31 = arith.constant 0 : index
    %31 = vector.load %arg6[%c0_29, %30, %c2_30, %c0_31] : memref<1x18x18x4xf32, #tpu.memory_space<vmem>>, vector<1x8x16x4xf32>
    %cst = arith.constant 0.000000e+00 : f32
    %32 = vector.broadcast %cst : f32 to vector<128x8xf32>
    %33 = vector.shape_cast %7 : vector<1x8x16x4xf32> to vector<128x4xf32>
    %c0_32 = arith.constant 0 : index
    %c0_33 = arith.constant 0 : index
    %34 = vector.load %arg3[%c0_32, %c0_33] : memref<36x8xf32, #tpu.memory_space<vmem>>, vector<4x8xf32>
    %cst_34 = arith.constant dense<0.000000e+00> : vector<128x8xf32>
    %35 = tpu.matmul %33, %34, %cst_34 {dimension_numbers = #tpu.dot_dimension_numbers<[1], [0], [0], [1], [0, 0, 1, 1], [], []>} : vector<128x4xf32>, vector<4x8xf32>, vector<128x8xf32> -> vector<128x8xf32>
    %36 = arith.addf %32, %35 : vector<128x8xf32>
    %37 = vector.shape_cast %10 : vector<1x8x16x4xf32> to vector<128x4xf32>
    %c4 = arith.constant 4 : index
    %c0_35 = arith.constant 0 : index
    %38 = vector.load %arg3[%c4, %c0_35] : memref<36x8xf32, #tpu.memory_space<vmem>>, vector<4x8xf32>
    %cst_36 = arith.constant dense<0.000000e+00> : vector<128x8xf32>
    %39 = tpu.matmul %37, %38, %cst_36 {dimension_numbers = #tpu.dot_dimension_numbers<[1], [0], [0], [1], [0, 0, 1, 1], [], []>} : vector<128x4xf32>, vector<4x8xf32>, vector<128x8xf32> -> vector<128x8xf32>
    %40 = arith.addf %36, %39 : vector<128x8xf32>
    %41 = vector.shape_cast %13 : vector<1x8x16x4xf32> to vector<128x4xf32>
    %c8 = arith.constant 8 : index
    %c0_37 = arith.constant 0 : index
    %42 = vector.load %arg3[%c8, %c0_37] : memref<36x8xf32, #tpu.memory_space<vmem>>, vector<4x8xf32>
    %cst_38 = arith.constant dense<0.000000e+00> : vector<128x8xf32>
    %43 = tpu.matmul %41, %42, %cst_38 {dimension_numbers = #tpu.dot_dimension_numbers<[1], [0], [0], [1], [0, 0, 1, 1], [], []>} : vector<128x4xf32>, vector<4x8xf32>, vector<128x8xf32> -> vector<128x8xf32>
    %44 = arith.addf %40, %43 : vector<128x8xf32>
    %45 = vector.shape_cast %16 : vector<1x8x16x4xf32> to vector<128x4xf32>
    %c12 = arith.constant 12 : index
    %c0_39 = arith.constant 0 : index
    %46 = vector.load %arg3[%c12, %c0_39] : memref<36x8xf32, #tpu.memory_space<vmem>>, vector<4x8xf32>
    %cst_40 = arith.constant dense<0.000000e+00> : vector<128x8xf32>
    %47 = tpu.matmul %45, %46, %cst_40 {dimension_numbers = #tpu.dot_dimension_numbers<[1], [0], [0], [1], [0, 0, 1, 1], [], []>} : vector<128x4xf32>, vector<4x8xf32>, vector<128x8xf32> -> vector<128x8xf32>
    %48 = arith.addf %44, %47 : vector<128x8xf32>
    %49 = vector.shape_cast %19 : vector<1x8x16x4xf32> to vector<128x4xf32>
    %c16 = arith.constant 16 : index
    %c0_41 = arith.constant 0 : index
    %50 = vector.load %arg3[%c16, %c0_41] : memref<36x8xf32, #tpu.memory_space<vmem>>, vector<4x8xf32>
    %cst_42 = arith.constant dense<0.000000e+00> : vector<128x8xf32>
    %51 = tpu.matmul %49, %50, %cst_42 {dimension_numbers = #tpu.dot_dimension_numbers<[1], [0], [0], [1], [0, 0, 1, 1], [], []>} : vector<128x4xf32>, vector<4x8xf32>, vector<128x8xf32> -> vector<128x8xf32>
    %52 = arith.addf %48, %51 : vector<128x8xf32>
    %53 = vector.shape_cast %22 : vector<1x8x16x4xf32> to vector<128x4xf32>
    %c20 = arith.constant 20 : index
    %c0_43 = arith.constant 0 : index
    %54 = vector.load %arg3[%c20, %c0_43] : memref<36x8xf32, #tpu.memory_space<vmem>>, vector<4x8xf32>
    %cst_44 = arith.constant dense<0.000000e+00> : vector<128x8xf32>
    %55 = tpu.matmul %53, %54, %cst_44 {dimension_numbers = #tpu.dot_dimension_numbers<[1], [0], [0], [1], [0, 0, 1, 1], [], []>} : vector<128x4xf32>, vector<4x8xf32>, vector<128x8xf32> -> vector<128x8xf32>
    %56 = arith.addf %52, %55 : vector<128x8xf32>
    %57 = vector.shape_cast %25 : vector<1x8x16x4xf32> to vector<128x4xf32>
    %c24 = arith.constant 24 : index
    %c0_45 = arith.constant 0 : index
    %58 = vector.load %arg3[%c24, %c0_45] : memref<36x8xf32, #tpu.memory_space<vmem>>, vector<4x8xf32>
    %cst_46 = arith.constant dense<0.000000e+00> : vector<128x8xf32>
    %59 = tpu.matmul %57, %58, %cst_46 {dimension_numbers = #tpu.dot_dimension_numbers<[1], [0], [0], [1], [0, 0, 1, 1], [], []>} : vector<128x4xf32>, vector<4x8xf32>, vector<128x8xf32> -> vector<128x8xf32>
    %60 = arith.addf %56, %59 : vector<128x8xf32>
    %61 = vector.shape_cast %28 : vector<1x8x16x4xf32> to vector<128x4xf32>
    %c28 = arith.constant 28 : index
    %c0_47 = arith.constant 0 : index
    %62 = vector.load %arg3[%c28, %c0_47] : memref<36x8xf32, #tpu.memory_space<vmem>>, vector<4x8xf32>
    %cst_48 = arith.constant dense<0.000000e+00> : vector<128x8xf32>
    %63 = tpu.matmul %61, %62, %cst_48 {dimension_numbers = #tpu.dot_dimension_numbers<[1], [0], [0], [1], [0, 0, 1, 1], [], []>} : vector<128x4xf32>, vector<4x8xf32>, vector<128x8xf32> -> vector<128x8xf32>
    %64 = arith.addf %60, %63 : vector<128x8xf32>
    %65 = vector.shape_cast %31 : vector<1x8x16x4xf32> to vector<128x4xf32>
    %c32 = arith.constant 32 : index
    %c0_49 = arith.constant 0 : index
    %66 = vector.load %arg3[%c32, %c0_49] : memref<36x8xf32, #tpu.memory_space<vmem>>, vector<4x8xf32>
    %cst_50 = arith.constant dense<0.000000e+00> : vector<128x8xf32>
    %67 = tpu.matmul %65, %66, %cst_50 {dimension_numbers = #tpu.dot_dimension_numbers<[1], [0], [0], [1], [0, 0, 1, 1], [], []>} : vector<128x4xf32>, vector<4x8xf32>, vector<128x8xf32> -> vector<128x8xf32>
    %68 = arith.addf %64, %67 : vector<128x8xf32>
    %69 = vector.shape_cast %68 : vector<128x8xf32> to vector<1x8x16x8xf32>
    %c0_51 = arith.constant 0 : index
    %c0_52 = arith.constant 0 : index
    %c0_53 = arith.constant 0 : index
    %c0_54 = arith.constant 0 : index
    %70 = vector.load %arg5[%c0_51, %c0_52, %c0_53, %c0_54] : memref<1x8x16x8xf32, #tpu.memory_space<vmem>>, vector<1x8x16x8xf32>
    tpu.vector_store %arg5[%c0_51, %c0_52, %c0_53, %c0_54], %69 {strides = array<i32>} : memref<1x8x16x8xf32, #tpu.memory_space<vmem>>, vector<1x8x16x8xf32>,
    return
  }
  func.func @transform_0(%arg0: i32, %arg1: i32) -> (i32, i32, i32) {
    %c0_i32 = arith.constant 0 : i32
    %c0_i32_0 = arith.constant 0 : i32
    %c0_i32_1 = arith.constant 0 : i32
    return %arg0, %c0_i32, %c0_i32_0 : i32, i32, i32
  }
  func.func @transform_1(%arg0: i32, %arg1: i32) -> (i32, i32) {
    %c0_i32 = arith.constant 0 : i32
    %c0_i32_0 = arith.constant 0 : i32
    %c0_i32_1 = arith.constant 0 : i32
    return %c0_i32, %c0_i32_0 : i32, i32
  }
  func.func @transform_2(%arg0: i32, %arg1: i32) -> (i32, i32, i32, i32) {
    %c0_i32 = arith.constant 0 : i32
    %c0_i32_0 = arith.constant 0 : i32
    %c0_i32_1 = arith.constant 0 : i32
    %c0_i32_2 = arith.constant 0 : i32
    return %arg0, %c0_i32, %c0_i32_0, %c0_i32_1 : i32, i32, i32, i32
  }
  func.func @transform_3(%arg0: i32, %arg1: i32) -> (i32, i32, i32, i32) {
    %c0_i32 = arith.constant 0 : i32
    %c0_i32_0 = arith.constant 0 : i32
    %c0_i32_1 = arith.constant 0 : i32
    return %arg0, %arg1, %c0_i32, %c0_i32_0 : i32, i32, i32, i32
  }
}

</mosaic_0001>

<llo_original>
// kernel: tpu_custom_call.1
$region0: #{tpu_custom_call.1}
  #allocation0 [shape = 'u32[]', space=smem, size = 0x4, offset = 0x4, fixed_abs, tag = 'smem constant byte address 0x4 - core index']
  #allocation1 [shape = 'u32[144,128]{1,0:T(1,128)}', space=vmem, size = 0x12000, scoped, tag = 'internal scratch']
  #allocation2 [shape = 'f32[1,18,18,4]{3,2,1,0:T(8,128)}', space=vmem, size = 0x36000, scoped, tag = 'scratch operand']
  %s0 = inlined_call_operand.vmem [shape: f32[2,1,4], index: 0, kind: input, shape index: {}]
  %s1 = inlined_call_operand.vmem [shape: f32[36,8], index: 1, kind: input, shape index: {}]
  %s2 = inlined_call_operand.vmem [shape: f32[2,16,16,4], index: 2, kind: input, shape index: {}]
  %s3 = inlined_call_operand.vmem [shape: f32[2,16,16,8], index: 3, kind: output, shape index: {}]
  %s4 = sld [smem:[#allocation0]]
  $region49: #{tpu_custom_call.1} parent=0
    _
  %s6 = ssub.s32 1, %s4
  %s7 = scalar_select 0, %s6, %s4
  loop: start=0, step=1, limit=6
  $region2: #{tpu_custom_call.1} parent=0 // loop_pre_header
    _
  $region3: #{tpu_custom_call.1} parent=0 // loop_header
    %s9 = sphi 0, %s13
    %p10 = scmp.ge.s32.totalorder %s9, 6
    %s16 = sphi 0, %s28
    %s17 = sphi 0, %s24
    %s18 = sphi 0, %s16
    %s19 = sphi 0, %s17
    %s20 = sphi 0, %s18
    %s21 = sphi 0, %s19
    %s31 = sphi 0, %s33
    %s34 = sphi 0, %s31
    %s35 = sphi 0, %s34
    %s51 = sphi 0, %s35
    %s55 = sphi 0, %s55
    %s57 = sphi 0, %s55
    %s58 = sphi 0, %s57
    %s72 = sphi 0, %s58
    %s78 = sphi 0, %s80
    %s81 = sphi 0, %s78
    %s82 = sphi 0, %s81
    %s98 = sphi 0, %s82
    %s106 = sphi 0, %s108
    %s109 = sphi 0, %s106
    %s110 = sphi 0, %s109
    %s126 = sphi 0, %s110
  $region4: #{tpu_custom_call.1} parent=0 // loop_header_branch
    %12 = sbr.rel (%p10) target = $region8
  $region5: #{tpu_custom_call.1} parent=0 // loop_body
    %s14 = ssub.s32 %s9, 1
    %s15 = ssub.s32 %s9, 2
    %s22 = sadd.s32 1, %s17
    %p23 = scmp.ge.s32.totalorder %s22, 2
    %s24 = scalar_select %p23, 0, %s22
    %s25 = sadd.s32 1, %s16
    %s26 = scalar_select %p23, %s25, %s16
    %p27 = scmp.ge.s32.totalorder %s26, 2
    %s28 = scalar_select %p27, 0, %s26
    %s29 = ssub.s32 %s16, %s28
    %p30 = scmp.eq.s32.totalorder %s29, 0
    %s32 = sadd.s32 %s31, 1
    %s33 = scalar_select %p30, %s31, %s32
    %p36 = pneg %p30
    %p37 = scmp.eq.s32.totalorder %s9, 3
    %p38 = por %p36, %p37
    %p39 = scmp.ne.s32.totalorder %s31, %s34
    %p40 = scmp.eq.s32.totalorder %s9, 0
    %p41 = por %p39, %p40
    %p42 = scmp.ne.s32.totalorder %s31, %s34
    %p43 = scmp.eq.s32.totalorder %s14, 3
    %p44 = por %p42, %p43
    %p45 = scmp.ne.s32.totalorder %s34, %s35
    %p46 = scmp.eq.s32.totalorder %s14, 0
    %p47 = por %p45, %p46
    %p48 = scmp.ne.s32.totalorder %s34, %s35
    %p49 = scmp.eq.s32.totalorder %s15, 3
    %p50 = por %p48, %p49
    %p52 = scmp.ne.s32.totalorder %s35, %s51
    %p53 = scmp.eq.s32.totalorder %s15, 0
    %p54 = por %p52, %p53
    %s56 = sadd.s32 %s55, 1
    %p59 = scmp.eq.s32.totalorder %s9, 3
    %p60 = scmp.ne.s32.totalorder %s55, %s57
    %p61 = scmp.eq.s32.totalorder %s9, 0
    %p62 = por %p60, %p61
    %p63 = scmp.ne.s32.totalorder %s55, %s57
    %p64 = scmp.eq.s32.totalorder %s14, 3
    %p65 = por %p63, %p64
    %p66 = scmp.ne.s32.totalorder %s57, %s58
    %p67 = scmp.eq.s32.totalorder %s14, 0
    %p68 = por %p66, %p67
    %p69 = scmp.ne.s32.totalorder %s57, %s58
    %p70 = scmp.eq.s32.totalorder %s15, 3
    %p71 = por %p69, %p70
    %p73 = scmp.ne.s32.totalorder %s58, %s72
    %p74 = scmp.eq.s32.totalorder %s15, 0
    %p75 = por %p73, %p74
    %s76 = ssub.s32 %s16, %s28
    %p77 = scmp.eq.s32.totalorder %s76, 0
    %s79 = sadd.s32 %s78, 1
    %s80 = scalar_select %p77, %s78, %s79
    %p83 = pneg %p77
    %p84 = scmp.eq.s32.totalorder %s9, 3
    %p85 = por %p83, %p84
    %p86 = scmp.ne.s32.totalorder %s78, %s81
    %p87 = scmp.eq.s32.totalorder %s9, 0
    %p88 = por %p86, %p87
    %p89 = scmp.ne.s32.totalorder %s78, %s81
    %p90 = scmp.eq.s32.totalorder %s14, 3
    %p91 = por %p89, %p90
    %p92 = scmp.ne.s32.totalorder %s81, %s82
    %p93 = scmp.eq.s32.totalorder %s14, 0
    %p94 = por %p92, %p93
    %p95 = scmp.ne.s32.totalorder %s81, %s82
    %p96 = scmp.eq.s32.totalorder %s15, 3
    %p97 = por %p95, %p96
    %p99 = scmp.ne.s32.totalorder %s82, %s98
    %p100 = scmp.eq.s32.totalorder %s15, 0
    %p101 = por %p99, %p100
    %s102 = ssub.s32 %s16, %s28
    %s103 = ssub.s32 %s17, %s24
    %s104 = sor.u32 %s102, %s103
    %p105 = scmp.eq.s32.totalorder %s104, 0
    %s107 = sadd.s32 %s106, 1
    %s108 = scalar_select %p105, %s106, %s107
    %p111 = pneg %p105
    %p112 = scmp.eq.s32.totalorder %s9, 3
    %p113 = por %p111, %p112
    %p114 = scmp.ne.s32.totalorder %s106, %s109
    %p115 = scmp.eq.s32.totalorder %s9, 0
    %p116 = por %p114, %p115
    %p117 = scmp.ne.s32.totalorder %s106, %s109
    %p118 = scmp.eq.s32.totalorder %s14, 3
    %p119 = por %p117, %p118
    %p120 = scmp.ne.s32.totalorder %s109, %s110
    %p121 = scmp.eq.s32.totalorder %s14, 0
    %p122 = por %p120, %p121
    %p123 = scmp.ne.s32.totalorder %s109, %s110
    %p124 = scmp.eq.s32.totalorder %s15, 3
    %p125 = por %p123, %p124
    %p127 = scmp.ne.s32.totalorder %s110, %s126
    %p128 = scmp.eq.s32.totalorder %s15, 0
    %p129 = por %p127, %p128
    %p130 = scmp.le.s32.totalorder 1, %s9
    %p131 = scmp.lt.s32.totalorder %s9, 5
    %p132 = pnand %p130, %p131
    %p133 = pneg %p132
    // Predicated region
    $region9: #{tpu_custom_call.1} parent=5 // pred_check
      _
    $region10: #{tpu_custom_call.1} parent=5 // pred_check_branch
      %135 = sbr.rel (%p132) target = $region12
    $region11: #{tpu_custom_call.1} parent=5 // pred_region
      %s136 = ssub.s32 %s9, 1
      // Predicated region
      $region13: #{tpu_custom_call.1} parent=11 // pred_check
        %p137 = pneg %p68
      $region14: #{tpu_custom_call.1} parent=11 // pred_check_branch
        %139 = sbr.rel (%p137) target = $region16
      $region15: #{tpu_custom_call.1} parent=11 // pred_region
        _
      $region16: #{tpu_custom_call.1} parent=11 // pred_fallthru
        _
    $region12: #{tpu_custom_call.1} parent=5 // pred_fallthru
      _
    %p140 = scmp.lt.s32.totalorder %s9, 4
    // Predicated region
    $region17: #{tpu_custom_call.1} parent=5 // pred_check
      %p141 = pneg %p140
    $region18: #{tpu_custom_call.1} parent=5 // pred_check_branch
      %143 = sbr.rel (%p141) target = $region20
    $region19: #{tpu_custom_call.1} parent=5 // pred_region
      // Predicated region
      $region21: #{tpu_custom_call.1} parent=19 // pred_check
        %p144 = pneg %p41
      $region22: #{tpu_custom_call.1} parent=19 // pred_check_branch
        %146 = sbr.rel (%p144) target = $region24
      $region23: #{tpu_custom_call.1} parent=19 // pred_region
        %p147 = scmp.lt.s32.totalorder %s16, 1
        %s148 = scalar_select %p147, %s16, 1
        %s149 = scalar_lea.vmem %s0, %s148
      $region24: #{tpu_custom_call.1} parent=19 // pred_fallthru
        _
      // Predicated region
      $region25: #{tpu_custom_call.1} parent=19 // pred_check
        %p150 = pneg %p88
      $region26: #{tpu_custom_call.1} parent=19 // pred_check_branch
        %152 = sbr.rel (%p150) target = $region28
      $region27: #{tpu_custom_call.1} parent=19 // pred_region
        %p153 = scmp.lt.s32.totalorder %s16, 1
        %s154 = scalar_select %p153, %s16, 1
        %s155 = smul.addr %s154, 32
        %s156 = smul.addr %s155, 8
        %s157 = scalar_lea.vmem %s2, %s156
      $region28: #{tpu_custom_call.1} parent=19 // pred_fallthru
        _
    $region20: #{tpu_custom_call.1} parent=5 // pred_fallthru
      _
    %p158 = scmp.le.s32.totalorder 1, %s9
    %p159 = scmp.lt.s32.totalorder %s9, 5
    %p160 = pnand %p158, %p159
    %p161 = pneg %p160
    // Predicated region
    $region29: #{tpu_custom_call.1} parent=5 // pred_check
      _
    $region30: #{tpu_custom_call.1} parent=5 // pred_check_branch
      %163 = sbr.rel (%p160) target = $region32
    $region31: #{tpu_custom_call.1} parent=5 // pred_region
      %s164 = ssub.s32 %s9, 1
      %p165 = scmp.lt.s32.totalorder %s18, 1
      %s166 = scalar_select %p165, %s18, 1
      %s167 = scalar_lea.vmem %s0, %s166
      %p168 = pneg %p47
      %p169 = pneg %p44
      %p170 = pneg %p68
      %p171 = pneg %p65
      %p172 = scmp.lt.s32.totalorder %s18, 1
      %s173 = scalar_select %p172, %s18, 1
      %s174 = smul.addr %s173, 32
      %s175 = smul.addr %s174, 8
      %s176 = scalar_lea.vmem %s2, %s175
      %p177 = pneg %p94
      %p178 = pneg %p91
      %p179 = pneg %p122
      %p180 = pneg %p119
      %s181 = smul.u32 8, %s19
      %p182 = scmp.lt.s32.totalorder %s18, 1
      %s183 = scalar_select %p182, %s18, 1
      %p184 = scmp.lt.s32.totalorder %s181, 15
      %s185 = scalar_select %p184, %s181, 15
      %s186 = smul.addr %s185, 2
      %s187 = smul.addr %s183, 32
      %s188 = sadd.s32 %s186, %s187
      %s189 = smul.addr %s188, 8
      %s190 = scalar_lea.vmem %s3, %s189
      %p191 = scmp.lt.s32.totalorder %s18, 1
      %s192 = scalar_select %p191, %s18, 1
      %s193 = scalar_lea.vmem %s0, %s192
      %p194 = scmp.lt.s32.totalorder %s18, 1
      %s195 = scalar_select %p194, %s18, 1
      %s196 = smul.addr %s195, 32
      %s197 = smul.addr %s196, 8
      %s198 = scalar_lea.vmem %s2, %s197
      %s199 = smul.u32 8, %s19
      %p200 = scmp.lt.s32.totalorder %s18, 1
      %s201 = scalar_select %p200, %s18, 1
      %p202 = scmp.lt.s32.totalorder %s199, 15
      %s203 = scalar_select %p202, %s199, 15
      %s204 = smul.addr %s203, 2
      %s205 = smul.addr %s201, 32
      %s206 = sadd.s32 %s204, %s205
      %s207 = smul.addr %s206, 8
      %s208 = scalar_lea.vmem %s3, %s207
      %s209 = smul.u32 8, %s19
      %p210 = scmp.eq.s32.totalorder %s19, 0
      // Predicated region
      $region33: #{tpu_custom_call.1} parent=31 // pred_check
        %p211 = pneg %p210
      $region34: #{tpu_custom_call.1} parent=31 // pred_check_branch
        %213 = sbr.rel (%p211) target = $region36
      $region35: #{tpu_custom_call.1} parent=31 // pred_region
        %v214 = vld [vmem:[%s193] sm:$0x1]
        %v215 = vld [vmem:[%s198] sm:$0xff]
        %v216 = vld [vmem:[%s198 + $0x8] sm:$0xff]
        %v217 = vld [vmem:[%s198 + $0x10] sm:$0xff]
        %v218 = vld [vmem:[%s198 + $0x18] sm:$0xff]
        %v219 = vld [vmem:[%s198 + $0x20] sm:$0xff]
        %v220 = vld [vmem:[%s198 + $0x28] sm:$0xff]
        %v221 = vld [vmem:[%s198 + $0x30] sm:$0xff]
        %v222 = vld [vmem:[%s198 + $0x38] sm:$0xff]
        %v223 = vld [vmem:[%s198 + $0x40] sm:$0xff]
        %v224 = vld [vmem:[%s198 + $0x48] sm:$0xff]
        %v225 = vld [vmem:[%s198 + $0x50] sm:$0xff]
        %v226 = vld [vmem:[%s198 + $0x58] sm:$0xff]
        %v227 = vld [vmem:[%s198 + $0x60] sm:$0xff]
        %v228 = vld [vmem:[%s198 + $0x68] sm:$0xff]
        %v229 = vld [vmem:[%s198 + $0x70] sm:$0xff]
        %v230 = vld [vmem:[%s198 + $0x78] sm:$0xff]
        %v231 = vld [vmem:[%s198 + $0x80] sm:$0xff]
        %v232 = vld [vmem:[%s198 + $0x88] sm:$0xff]
        %v233 = vld [vmem:[%s198 + $0x90] sm:$0xff]
        %v234 = vld [vmem:[%s198 + $0x98] sm:$0xff]
        %v235 = vld [vmem:[%s198 + $0xa0] sm:$0xff]
        %v236 = vld [vmem:[%s198 + $0xa8] sm:$0xff]
        %v237 = vld [vmem:[%s198 + $0xb0] sm:$0xff]
        %v238 = vld [vmem:[%s198 + $0xb8] sm:$0xff]
        %v239 = vld [vmem:[%s198 + $0xc0] sm:$0xff]
        %v240 = vld [vmem:[%s198 + $0xc8] sm:$0xff]
        %v241 = vld [vmem:[%s198 + $0xd0] sm:$0xff]
        %v242 = vld [vmem:[%s198 + $0xd8] sm:$0xff]
        %v243 = vld [vmem:[%s198 + $0xe0] sm:$0xff]
        %v244 = vld [vmem:[%s198 + $0xe8] sm:$0xff]
        %v245 = vld [vmem:[%s198 + $0xf0] sm:$0xff]
        %v246 = vld [vmem:[%s198 + $0xf8] sm:$0xff]
        %v248 = vlaneseq
        %v249 = vshrl.u32 %v248, 7
        %v250 = vsub.s32 0, %v249
        %v251 = vrot.slane %v214, %v250
        %v253 = vmul.f32 %v215, %v251
        %v254 = vmul.f32 %v216, %v251
        %v255 = vmul.f32 %v217, %v251
        %v256 = vmul.f32 %v218, %v251
        %v257 = vmul.f32 %v219, %v251
        %v258 = vmul.f32 %v220, %v251
        %v259 = vmul.f32 %v221, %v251
        %v260 = vmul.f32 %v222, %v251
        %v261 = vmul.f32 %v223, %v251
        %v262 = vmul.f32 %v224, %v251
        %v263 = vmul.f32 %v225, %v251
        %v264 = vmul.f32 %v226, %v251
        %v265 = vmul.f32 %v227, %v251
        %v266 = vmul.f32 %v228, %v251
        %v267 = vmul.f32 %v229, %v251
        %v268 = vmul.f32 %v230, %v251
        %v269 = vmul.f32 %v231, %v251
        %v270 = vmul.f32 %v232, %v251
        %v271 = vmul.f32 %v233, %v251
        %v272 = vmul.f32 %v234, %v251
        %v273 = vmul.f32 %v235, %v251
        %v274 = vmul.f32 %v236, %v251
        %v275 = vmul.f32 %v237, %v251
        %v276 = vmul.f32 %v238, %v251
        %v277 = vmul.f32 %v239, %v251
        %v278 = vmul.f32 %v240, %v251
        %v279 = vmul.f32 %v241, %v251
        %v280 = vmul.f32 %v242, %v251
        %v281 = vmul.f32 %v243, %v251
        %v282 = vmul.f32 %v244, %v251
        %v283 = vmul.f32 %v245, %v251
        %v284 = vmul.f32 %v246, %v251
        %vm285 = vcmask 31744
        %286 = vst.msk [vmem:[#allocation2] sm:$0xff] %vm285, 0.0
        %287 = vst.msk [vmem:[#allocation2 + $0x8] sm:$0xff] %vm285, 0.0
        %vm288 = vcmask 25600
        %289 = vst.msk [vmem:[#allocation2 + $0x10] sm:$0x3] %vm288, 0.0
        %s290 = scalar_lea.vmem [#allocation2], 408
        %291 = vst.msk [vmem:[%s290] sm:$0xff] %vm285, 0.0
        %292 = vst.msk [vmem:[%s290 + $0x8] sm:$0xff] %vm285, 0.0
        %293 = vst.msk [vmem:[%s290 + $0x10] sm:$0x3] %vm288, 0.0
        %s294 = scalar_lea.vmem [#allocation2], 24
        %vm295 = vcmask 24576
        %296 = vst.msk [vmem:[%s294] sm:$0x1] %vm295, 0.0
        %297 = vst.msk [vmem:[%s294 + $0x18] sm:$0x1] %vm295, 0.0
        %298 = vst.msk [vmem:[%s294 + $0x30] sm:$0x1] %vm295, 0.0
        %299 = vst.msk [vmem:[%s294 + $0x48] sm:$0x1] %vm295, 0.0
        %300 = vst.msk [vmem:[%s294 + $0x60] sm:$0x1] %vm295, 0.0
        %301 = vst.msk [vmem:[%s294 + $0x78] sm:$0x1] %vm295, 0.0
        %302 = vst.msk [vmem:[%s294 + $0x90] sm:$0x1] %vm295, 0.0
        %303 = vst.msk [vmem:[%s294 + $0xa8] sm:$0x1] %vm295, 0.0
        %304 = vst.msk [vmem:[%s294 + $0xc0] sm:$0x1] %vm295, 0.0
        %305 = vst.msk [vmem:[%s294 + $0xd8] sm:$0x1] %vm295, 0.0
        %306 = vst.msk [vmem:[%s294 + $0xf0] sm:$0x1] %vm295, 0.0
        %307 = vst.msk [vmem:[%s294 + $0x108] sm:$0x1] %vm295, 0.0
        %308 = vst.msk [vmem:[%s294 + $0x120] sm:$0x1] %vm295, 0.0
        %309 = vst.msk [vmem:[%s294 + $0x138] sm:$0x1] %vm295, 0.0
        %310 = vst.msk [vmem:[%s294 + $0x150] sm:$0x1] %vm295, 0.0
        %311 = vst.msk [vmem:[%s294 + $0x168] sm:$0x1] %vm295, 0.0
        %312 = vst.msk [vmem:[%s294 + $0x11] sm:$0x1] %vm295, 0.0
        %313 = vst.msk [vmem:[%s294 + $0x29] sm:$0x1] %vm295, 0.0
        %314 = vst.msk [vmem:[%s294 + $0x41] sm:$0x1] %vm295, 0.0
        %315 = vst.msk [vmem:[%s294 + $0x59] sm:$0x1] %vm295, 0.0
        %316 = vst.msk [vmem:[%s294 + $0x71] sm:$0x1] %vm295, 0.0
        %317 = vst.msk [vmem:[%s294 + $0x89] sm:$0x1] %vm295, 0.0
        %318 = vst.msk [vmem:[%s294 + $0xa1] sm:$0x1] %vm295, 0.0
        %319 = vst.msk [vmem:[%s294 + $0xb9] sm:$0x1] %vm295, 0.0
        %320 = vst.msk [vmem:[%s294 + $0xd1] sm:$0x1] %vm295, 0.0
        %321 = vst.msk [vmem:[%s294 + $0xe9] sm:$0x1] %vm295, 0.0
        %322 = vst.msk [vmem:[%s294 + $0x101] sm:$0x1] %vm295, 0.0
        %323 = vst.msk [vmem:[%s294 + $0x119] sm:$0x1] %vm295, 0.0
        %324 = vst.msk [vmem:[%s294 + $0x131] sm:$0x1] %vm295, 0.0
        %325 = vst.msk [vmem:[%s294 + $0x149] sm:$0x1] %vm295, 0.0
        %326 = vst.msk [vmem:[%s294 + $0x161] sm:$0x1] %vm295, 0.0
        %327 = vst.msk [vmem:[%s294 + $0x179] sm:$0x1] %vm295, 0.0
        %328 = vst.msk [vmem:[%s294 + $0x1] sm:$0xff] %vm285, %v253
        %329 = vst.msk [vmem:[%s294 + $0x9] sm:$0xff] %vm285, %v254
        %330 = vst.msk [vmem:[%s294 + $0x19] sm:$0xff] %vm285, %v255
        %331 = vst.msk [vmem:[%s294 + $0x21] sm:$0xff] %vm285, %v256
        %332 = vst.msk [vmem:[%s294 + $0x31] sm:$0xff] %vm285, %v257
        %333 = vst.msk [vmem:[%s294 + $0x39] sm:$0xff] %vm285, %v258
        %334 = vst.msk [vmem:[%s294 + $0x49] sm:$0xff] %vm285, %v259
        %335 = vst.msk [vmem:[%s294 + $0x51] sm:$0xff] %vm285, %v260
        %336 = vst.msk [vmem:[%s294 + $0x61] sm:$0xff] %vm285, %v261
        %337 = vst.msk [vmem:[%s294 + $0x69] sm:$0xff] %vm285, %v262
        %338 = vst.msk [vmem:[%s294 + $0x79] sm:$0xff] %vm285, %v263
        %339 = vst.msk [vmem:[%s294 + $0x81] sm:$0xff] %vm285, %v264
        %340 = vst.msk [vmem:[%s294 + $0x91] sm:$0xff] %vm285, %v265
        %341 = vst.msk [vmem:[%s294 + $0x99] sm:$0xff] %vm285, %v266
        %342 = vst.msk [vmem:[%s294 + $0xa9] sm:$0xff] %vm285, %v267
        %343 = vst.msk [vmem:[%s294 + $0xb1] sm:$0xff] %vm285, %v268
        %344 = vst.msk [vmem:[%s294 + $0xc1] sm:$0xff] %vm285, %v269
        %345 = vst.msk [vmem:[%s294 + $0xc9] sm:$0xff] %vm285, %v270
        %346 = vst.msk [vmem:[%s294 + $0xd9] sm:$0xff] %vm285, %v271
        %347 = vst.msk [vmem:[%s294 + $0xe1] sm:$0xff] %vm285, %v272
        %348 = vst.msk [vmem:[%s294 + $0xf1] sm:$0xff] %vm285, %v273
        %349 = vst.msk [vmem:[%s294 + $0xf9] sm:$0xff] %vm285, %v274
        %350 = vst.msk [vmem:[%s294 + $0x109] sm:$0xff] %vm285, %v275
        %351 = vst.msk [vmem:[%s294 + $0x111] sm:$0xff] %vm285, %v276
        %352 = vst.msk [vmem:[%s294 + $0x121] sm:$0xff] %vm285, %v277
        %353 = vst.msk [vmem:[%s294 + $0x129] sm:$0xff] %vm285, %v278
        %354 = vst.msk [vmem:[%s294 + $0x139] sm:$0xff] %vm285, %v279
        %355 = vst.msk [vmem:[%s294 + $0x141] sm:$0xff] %vm285, %v280
        %356 = vst.msk [vmem:[%s294 + $0x151] sm:$0xff] %vm285, %v281
        %357 = vst.msk [vmem:[%s294 + $0x159] sm:$0xff] %vm285, %v282
        %358 = vst.msk [vmem:[%s294 + $0x169] sm:$0xff] %vm285, %v283
        %359 = vst.msk [vmem:[%s294 + $0x171] sm:$0xff] %vm285, %v284
      $region36: #{tpu_custom_call.1} parent=31 // pred_fallthru
        _
      %s360 = smul.u32 %s19, 8
      %s361 = smul.u32 %s360, 24
      %s362 = scalar_lea.vmem [#allocation2], %s361
      %v363 = vld [vmem:[%s362] sm:$0xff]
      %v364 = vld [vmem:[%s362 + $0x8] sm:$0xff]
      %v365 = vld [vmem:[%s362 + $0x18] sm:$0xff]
      %v366 = vld [vmem:[%s362 + $0x20] sm:$0xff]
      %v367 = vld [vmem:[%s362 + $0x30] sm:$0xff]
      %v368 = vld [vmem:[%s362 + $0x38] sm:$0xff]
      %v369 = vld [vmem:[%s362 + $0x48] sm:$0xff]
      %v370 = vld [vmem:[%s362 + $0x50] sm:$0xff]
      %v371 = vld [vmem:[%s362 + $0x60] sm:$0xff]
      %v372 = vld [vmem:[%s362 + $0x68] sm:$0xff]
      %v373 = vld [vmem:[%s362 + $0x78] sm:$0xff]
      %v374 = vld [vmem:[%s362 + $0x80] sm:$0xff]
      %v375 = vld [vmem:[%s362 + $0x90] sm:$0xff]
      %v376 = vld [vmem:[%s362 + $0x98] sm:$0xff]
      %v377 = vld [vmem:[%s362 + $0xa8] sm:$0xff]
      %v378 = vld [vmem:[%s362 + $0xb0] sm:$0xff]
      %v379 = vld [vmem:[%s362 + $0x1] sm:$0xff]
      %v380 = vld [vmem:[%s362 + $0x9] sm:$0xff]
      %v381 = vld [vmem:[%s362 + $0x19] sm:$0xff]
      %v382 = vld [vmem:[%s362 + $0x21] sm:$0xff]
      %v383 = vld [vmem:[%s362 + $0x31] sm:$0xff]
      %v384 = vld [vmem:[%s362 + $0x39] sm:$0xff]
      %v385 = vld [vmem:[%s362 + $0x49] sm:$0xff]
      %v386 = vld [vmem:[%s362 + $0x51] sm:$0xff]
      %v387 = vld [vmem:[%s362 + $0x61] sm:$0xff]
      %v388 = vld [vmem:[%s362 + $0x69] sm:$0xff]
      %v389 = vld [vmem:[%s362 + $0x79] sm:$0xff]
      %v390 = vld [vmem:[%s362 + $0x81] sm:$0xff]
      %v391 = vld [vmem:[%s362 + $0x91] sm:$0xff]
      %v392 = vld [vmem:[%s362 + $0x99] sm:$0xff]
      %v393 = vld [vmem:[%s362 + $0xa9] sm:$0xff]
      %v394 = vld [vmem:[%s362 + $0xb1] sm:$0xff]
      %v395 = vld [vmem:[%s362 + $0x2] sm:$0xff]
      %v396 = vld [vmem:[%s362 + $0xa] sm:$0xff]
      %v397 = vld [vmem:[%s362 + $0x1a] sm:$0xff]
      %v398 = vld [vmem:[%s362 + $0x22] sm:$0xff]
      %v399 = vld [vmem:[%s362 + $0x32] sm:$0xff]
      %v400 = vld [vmem:[%s362 + $0x3a] sm:$0xff]
      %v401 = vld [vmem:[%s362 + $0x4a] sm:$0xff]
      %v402 = vld [vmem:[%s362 + $0x52] sm:$0xff]
      %v403 = vld [vmem:[%s362 + $0x62] sm:$0xff]
      %v404 = vld [vmem:[%s362 + $0x6a] sm:$0xff]
      %v405 = vld [vmem:[%s362 + $0x7a] sm:$0xff]
      %v406 = vld [vmem:[%s362 + $0x82] sm:$0xff]
      %v407 = vld [vmem:[%s362 + $0x92] sm:$0xff]
      %v408 = vld [vmem:[%s362 + $0x9a] sm:$0xff]
      %v409 = vld [vmem:[%s362 + $0xaa] sm:$0xff]
      %v410 = vld [vmem:[%s362 + $0xb2] sm:$0xff]
      %s411 = sadd.s32 %s360, 1
      %s412 = smul.u32 %s411, 24
      %s413 = scalar_lea.vmem [#allocation2], %s412
      %v414 = vld [vmem:[%s413] sm:$0xff]
      %v415 = vld [vmem:[%s413 + $0x8] sm:$0xff]
      %v416 = vld [vmem:[%s413 + $0x18] sm:$0xff]
      %v417 = vld [vmem:[%s413 + $0x20] sm:$0xff]
      %v418 = vld [vmem:[%s413 + $0x30] sm:$0xff]
      %v419 = vld [vmem:[%s413 + $0x38] sm:$0xff]
      %v420 = vld [vmem:[%s413 + $0x48] sm:$0xff]
      %v421 = vld [vmem:[%s413 + $0x50] sm:$0xff]
      %v422 = vld [vmem:[%s413 + $0x60] sm:$0xff]
      %v423 = vld [vmem:[%s413 + $0x68] sm:$0xff]
      %v424 = vld [vmem:[%s413 + $0x78] sm:$0xff]
      %v425 = vld [vmem:[%s413 + $0x80] sm:$0xff]
      %v426 = vld [vmem:[%s413 + $0x90] sm:$0xff]
      %v427 = vld [vmem:[%s413 + $0x98] sm:$0xff]
      %v428 = vld [vmem:[%s413 + $0xa8] sm:$0xff]
      %v429 = vld [vmem:[%s413 + $0xb0] sm:$0xff]
      %v430 = vld [vmem:[%s413 + $0x1] sm:$0xff]
      %v431 = vld [vmem:[%s413 + $0x9] sm:$0xff]
      %v432 = vld [vmem:[%s413 + $0x19] sm:$0xff]
      %v433 = vld [vmem:[%s413 + $0x21] sm:$0xff]
      %v434 = vld [vmem:[%s413 + $0x31] sm:$0xff]
      %v435 = vld [vmem:[%s413 + $0x39] sm:$0xff]
      %v436 = vld [vmem:[%s413 + $0x49] sm:$0xff]
      %v437 = vld [vmem:[%s413 + $0x51] sm:$0xff]
      %v438 = vld [vmem:[%s413 + $0x61] sm:$0xff]
      %v439 = vld [vmem:[%s413 + $0x69] sm:$0xff]
      %v440 = vld [vmem:[%s413 + $0x79] sm:$0xff]
      %v441 = vld [vmem:[%s413 + $0x81] sm:$0xff]
      %v442 = vld [vmem:[%s413 + $0x91] sm:$0xff]
      %v443 = vld [vmem:[%s413 + $0x99] sm:$0xff]
      %v444 = vld [vmem:[%s413 + $0xa9] sm:$0xff]
      %v445 = vld [vmem:[%s413 + $0xb1] sm:$0xff]
      %v446 = vld [vmem:[%s413 + $0x2] sm:$0xff]
      %v447 = vld [vmem:[%s413 + $0xa] sm:$0xff]
      %v448 = vld [vmem:[%s413 + $0x1a] sm:$0xff]
      %v449 = vld [vmem:[%s413 + $0x22] sm:$0xff]
      %v450 = vld [vmem:[%s413 + $0x32] sm:$0xff]
      %v451 = vld [vmem:[%s413 + $0x3a] sm:$0xff]
      %v452 = vld [vmem:[%s413 + $0x4a] sm:$0xff]
      %v453 = vld [vmem:[%s413 + $0x52] sm:$0xff]
      %v454 = vld [vmem:[%s413 + $0x62] sm:$0xff]
      %v455 = vld [vmem:[%s413 + $0x6a] sm:$0xff]
      %v456 = vld [vmem:[%s413 + $0x7a] sm:$0xff]
      %v457 = vld [vmem:[%s413 + $0x82] sm:$0xff]
      %v458 = vld [vmem:[%s413 + $0x92] sm:$0xff]
      %v459 = vld [vmem:[%s413 + $0x9a] sm:$0xff]
      %v460 = vld [vmem:[%s413 + $0xaa] sm:$0xff]
      %v461 = vld [vmem:[%s413 + $0xb2] sm:$0xff]
      %s462 = sadd.s32 %s360, 2
      %s463 = smul.u32 %s462, 24
      %s464 = scalar_lea.vmem [#allocation2], %s463
      %v465 = vld [vmem:[%s464] sm:$0xff]
      %v466 = vld [vmem:[%s464 + $0x8] sm:$0xff]
      %v467 = vld [vmem:[%s464 + $0x18] sm:$0xff]
      %v468 = vld [vmem:[%s464 + $0x20] sm:$0xff]
      %v469 = vld [vmem:[%s464 + $0x30] sm:$0xff]
      %v470 = vld [vmem:[%s464 + $0x38] sm:$0xff]
      %v471 = vld [vmem:[%s464 + $0x48] sm:$0xff]
      %v472 = vld [vmem:[%s464 + $0x50] sm:$0xff]
      %v473 = vld [vmem:[%s464 + $0x60] sm:$0xff]
      %v474 = vld [vmem:[%s464 + $0x68] sm:$0xff]
      %v475 = vld [vmem:[%s464 + $0x78] sm:$0xff]
      %v476 = vld [vmem:[%s464 + $0x80] sm:$0xff]
      %v477 = vld [vmem:[%s464 + $0x90] sm:$0xff]
      %v478 = vld [vmem:[%s464 + $0x98] sm:$0xff]
      %v479 = vld [vmem:[%s464 + $0xa8] sm:$0xff]
      %v480 = vld [vmem:[%s464 + $0xb0] sm:$0xff]
      %v481 = vld [vmem:[%s464 + $0x1] sm:$0xff]
      %v482 = vld [vmem:[%s464 + $0x9] sm:$0xff]
      %v483 = vld [vmem:[%s464 + $0x19] sm:$0xff]
      %v484 = vld [vmem:[%s464 + $0x21] sm:$0xff]
      %v485 = vld [vmem:[%s464 + $0x31] sm:$0xff]
      %v486 = vld [vmem:[%s464 + $0x39] sm:$0xff]
      %v487 = vld [vmem:[%s464 + $0x49] sm:$0xff]
      %v488 = vld [vmem:[%s464 + $0x51] sm:$0xff]
      %v489 = vld [vmem:[%s464 + $0x61] sm:$0xff]
      %v490 = vld [vmem:[%s464 + $0x69] sm:$0xff]
      %v491 = vld [vmem:[%s464 + $0x79] sm:$0xff]
      %v492 = vld [vmem:[%s464 + $0x81] sm:$0xff]
      %v493 = vld [vmem:[%s464 + $0x91] sm:$0xff]
      %v494 = vld [vmem:[%s464 + $0x99] sm:$0xff]
      %v495 = vld [vmem:[%s464 + $0xa9] sm:$0xff]
      %v496 = vld [vmem:[%s464 + $0xb1] sm:$0xff]
      %v497 = vld [vmem:[%s464 + $0x2] sm:$0xff]
      %v498 = vld [vmem:[%s464 + $0xa] sm:$0xff]
      %v499 = vld [vmem:[%s464 + $0x1a] sm:$0xff]
      %v500 = vld [vmem:[%s464 + $0x22] sm:$0xff]
      %v501 = vld [vmem:[%s464 + $0x32] sm:$0xff]
      %v502 = vld [vmem:[%s464 + $0x3a] sm:$0xff]
      %v503 = vld [vmem:[%s464 + $0x4a] sm:$0xff]
      %v504 = vld [vmem:[%s464 + $0x52] sm:$0xff]
      %v505 = vld [vmem:[%s464 + $0x62] sm:$0xff]
      %v506 = vld [vmem:[%s464 + $0x6a] sm:$0xff]
      %v507 = vld [vmem:[%s464 + $0x7a] sm:$0xff]
      %v508 = vld [vmem:[%s464 + $0x82] sm:$0xff]
      %v509 = vld [vmem:[%s464 + $0x92] sm:$0xff]
      %v510 = vld [vmem:[%s464 + $0x9a] sm:$0xff]
      %v511 = vld [vmem:[%s464 + $0xaa] sm:$0xff]
      %v512 = vld [vmem:[%s464 + $0xb2] sm:$0xff]
      %529 = vrot.lane.b32.xlu0 %v379, 4
      %v530 = vpop.permute.xlu0 %529
      %531 = vrot.lane.b32.xlu0 %v380, 4
      %v532 = vpop.permute.xlu0 %531
      %533 = vrot.lane.b32.xlu0 %v381, 4
      %v534 = vpop.permute.xlu0 %533
      %535 = vrot.lane.b32.xlu0 %v382, 4
      %v536 = vpop.permute.xlu0 %535
      %537 = vrot.lane.b32.xlu0 %v383, 4
      %v538 = vpop.permute.xlu0 %537
      %539 = vrot.lane.b32.xlu0 %v384, 4
      %v540 = vpop.permute.xlu0 %539
      %541 = vrot.lane.b32.xlu0 %v385, 4
      %v542 = vpop.permute.xlu0 %541
      %543 = vrot.lane.b32.xlu0 %v386, 4
      %v544 = vpop.permute.xlu0 %543
      %545 = vrot.lane.b32.xlu0 %v387, 4
      %v546 = vpop.permute.xlu0 %545
      %547 = vrot.lane.b32.xlu0 %v388, 4
      %v548 = vpop.permute.xlu0 %547
      %549 = vrot.lane.b32.xlu0 %v389, 4
      %v550 = vpop.permute.xlu0 %549
      %551 = vrot.lane.b32.xlu0 %v390, 4
      %v552 = vpop.permute.xlu0 %551
      %553 = vrot.lane.b32.xlu0 %v391, 4
      %v554 = vpop.permute.xlu0 %553
      %555 = vrot.lane.b32.xlu0 %v392, 4
      %v556 = vpop.permute.xlu0 %555
      %557 = vrot.lane.b32.xlu0 %v393, 4
      %v558 = vpop.permute.xlu0 %557
      %559 = vrot.lane.b32.xlu0 %v394, 4
      %v560 = vpop.permute.xlu0 %559
      %593 = vrot.lane.b32.xlu0 %v395, 8
      %v594 = vpop.permute.xlu0 %593
      %595 = vrot.lane.b32.xlu0 %v396, 8
      %v596 = vpop.permute.xlu0 %595
      %597 = vrot.lane.b32.xlu0 %v397, 8
      %v598 = vpop.permute.xlu0 %597
      %599 = vrot.lane.b32.xlu0 %v398, 8
      %v600 = vpop.permute.xlu0 %599
      %601 = vrot.lane.b32.xlu0 %v399, 8
      %v602 = vpop.permute.xlu0 %601
      %603 = vrot.lane.b32.xlu0 %v400, 8
      %v604 = vpop.permute.xlu0 %603
      %605 = vrot.lane.b32.xlu0 %v401, 8
      %v606 = vpop.permute.xlu0 %605
      %607 = vrot.lane.b32.xlu0 %v402, 8
      %v608 = vpop.permute.xlu0 %607
      %609 = vrot.lane.b32.xlu0 %v403, 8
      %v610 = vpop.permute.xlu0 %609
      %611 = vrot.lane.b32.xlu0 %v404, 8
      %v612 = vpop.permute.xlu0 %611
      %613 = vrot.lane.b32.xlu0 %v405, 8
      %v614 = vpop.permute.xlu0 %613
      %615 = vrot.lane.b32.xlu0 %v406, 8
      %v616 = vpop.permute.xlu0 %615
      %617 = vrot.lane.b32.xlu0 %v407, 8
      %v618 = vpop.permute.xlu0 %617
      %619 = vrot.lane.b32.xlu0 %v408, 8
      %v620 = vpop.permute.xlu0 %619
      %621 = vrot.lane.b32.xlu0 %v409, 8
      %v622 = vpop.permute.xlu0 %621
      %623 = vrot.lane.b32.xlu0 %v410, 8
      %v624 = vpop.permute.xlu0 %623
      %657 = vrot.lane.b32.xlu0 %v414, 12
      %v658 = vpop.permute.xlu0 %657
      %659 = vrot.lane.b32.xlu0 %v415, 12
      %v660 = vpop.permute.xlu0 %659
      %661 = vrot.lane.b32.xlu0 %v416, 12
      %v662 = vpop.permute.xlu0 %661
      %663 = vrot.lane.b32.xlu0 %v417, 12
      %v664 = vpop.permute.xlu0 %663
      %665 = vrot.lane.b32.xlu0 %v418, 12
      %v666 = vpop.permute.xlu0 %665
      %667 = vrot.lane.b32.xlu0 %v419, 12
      %v668 = vpop.permute.xlu0 %667
      %669 = vrot.lane.b32.xlu0 %v420, 12
      %v670 = vpop.permute.xlu0 %669
      %671 = vrot.lane.b32.xlu0 %v421, 12
      %v672 = vpop.permute.xlu0 %671
      %673 = vrot.lane.b32.xlu0 %v422, 12
      %v674 = vpop.permute.xlu0 %673
      %675 = vrot.lane.b32.xlu0 %v423, 12
      %v676 = vpop.permute.xlu0 %675
      %677 = vrot.lane.b32.xlu0 %v424, 12
      %v678 = vpop.permute.xlu0 %677
      %679 = vrot.lane.b32.xlu0 %v425, 12
      %v680 = vpop.permute.xlu0 %679
      %681 = vrot.lane.b32.xlu0 %v426, 12
      %v682 = vpop.permute.xlu0 %681
      %683 = vrot.lane.b32.xlu0 %v427, 12
      %v684 = vpop.permute.xlu0 %683
      %685 = vrot.lane.b32.xlu0 %v428, 12
      %v686 = vpop.permute.xlu0 %685
      %687 = vrot.lane.b32.xlu0 %v429, 12
      %v688 = vpop.permute.xlu0 %687
      %721 = vrot.lane.b32.xlu0 %v430, 16
      %v722 = vpop.permute.xlu0 %721
      %723 = vrot.lane.b32.xlu0 %v431, 16
      %v724 = vpop.permute.xlu0 %723
      %725 = vrot.lane.b32.xlu0 %v432, 16
      %v726 = vpop.permute.xlu0 %725
      %727 = vrot.lane.b32.xlu0 %v433, 16
      %v728 = vpop.permute.xlu0 %727
      %729 = vrot.lane.b32.xlu0 %v434, 16
      %v730 = vpop.permute.xlu0 %729
      %731 = vrot.lane.b32.xlu0 %v435, 16
      %v732 = vpop.permute.xlu0 %731
      %733 = vrot.lane.b32.xlu0 %v436, 16
      %v734 = vpop.permute.xlu0 %733
      %735 = vrot.lane.b32.xlu0 %v437, 16
      %v736 = vpop.permute.xlu0 %735
      %737 = vrot.lane.b32.xlu0 %v438, 16
      %v738 = vpop.permute.xlu0 %737
      %739 = vrot.lane.b32.xlu0 %v439, 16
      %v740 = vpop.permute.xlu0 %739
      %741 = vrot.lane.b32.xlu0 %v440, 16
      %v742 = vpop.permute.xlu0 %741
      %743 = vrot.lane.b32.xlu0 %v441, 16
      %v744 = vpop.permute.xlu0 %743
      %745 = vrot.lane.b32.xlu0 %v442, 16
      %v746 = vpop.permute.xlu0 %745
      %747 = vrot.lane.b32.xlu0 %v443, 16
      %v748 = vpop.permute.xlu0 %747
      %749 = vrot.lane.b32.xlu0 %v444, 16
      %v750 = vpop.permute.xlu0 %749
      %751 = vrot.lane.b32.xlu0 %v445, 16
      %v752 = vpop.permute.xlu0 %751
      %785 = vrot.lane.b32.xlu0 %v446, 20
      %v786 = vpop.permute.xlu0 %785
      %787 = vrot.lane.b32.xlu0 %v447, 20
      %v788 = vpop.permute.xlu0 %787
      %789 = vrot.lane.b32.xlu0 %v448, 20
      %v790 = vpop.permute.xlu0 %789
      %791 = vrot.lane.b32.xlu0 %v449, 20
      %v792 = vpop.permute.xlu0 %791
      %793 = vrot.lane.b32.xlu0 %v450, 20
      %v794 = vpop.permute.xlu0 %793
      %795 = vrot.lane.b32.xlu0 %v451, 20
      %v796 = vpop.permute.xlu0 %795
      %797 = vrot.lane.b32.xlu0 %v452, 20
      %v798 = vpop.permute.xlu0 %797
      %799 = vrot.lane.b32.xlu0 %v453, 20
      %v800 = vpop.permute.xlu0 %799
      %801 = vrot.lane.b32.xlu0 %v454, 20
      %v802 = vpop.permute.xlu0 %801
      %803 = vrot.lane.b32.xlu0 %v455, 20
      %v804 = vpop.permute.xlu0 %803
      %805 = vrot.lane.b32.xlu0 %v456, 20
      %v806 = vpop.permute.xlu0 %805
      %807 = vrot.lane.b32.xlu0 %v457, 20
      %v808 = vpop.permute.xlu0 %807
      %809 = vrot.lane.b32.xlu0 %v458, 20
      %v810 = vpop.permute.xlu0 %809
      %811 = vrot.lane.b32.xlu0 %v459, 20
      %v812 = vpop.permute.xlu0 %811
      %813 = vrot.lane.b32.xlu0 %v460, 20
      %v814 = vpop.permute.xlu0 %813
      %815 = vrot.lane.b32.xlu0 %v461, 20
      %v816 = vpop.permute.xlu0 %815
      %849 = vrot.lane.b32.xlu0 %v465, 24
      %v850 = vpop.permute.xlu0 %849
      %851 = vrot.lane.b32.xlu0 %v466, 24
      %v852 = vpop.permute.xlu0 %851
      %853 = vrot.lane.b32.xlu0 %v467, 24
      %v854 = vpop.permute.xlu0 %853
      %855 = vrot.lane.b32.xlu0 %v468, 24
      %v856 = vpop.permute.xlu0 %855
      %857 = vrot.lane.b32.xlu0 %v469, 24
      %v858 = vpop.permute.xlu0 %857
      %859 = vrot.lane.b32.xlu0 %v470, 24
      %v860 = vpop.permute.xlu0 %859
      %861 = vrot.lane.b32.xlu0 %v471, 24
      %v862 = vpop.permute.xlu0 %861
      %863 = vrot.lane.b32.xlu0 %v472, 24
      %v864 = vpop.permute.xlu0 %863
      %865 = vrot.lane.b32.xlu0 %v473, 24
      %v866 = vpop.permute.xlu0 %865
      %867 = vrot.lane.b32.xlu0 %v474, 24
      %v868 = vpop.permute.xlu0 %867
      %869 = vrot.lane.b32.xlu0 %v475, 24
      %v870 = vpop.permute.xlu0 %869
      %871 = vrot.lane.b32.xlu0 %v476, 24
      %v872 = vpop.permute.xlu0 %871
      %873 = vrot.lane.b32.xlu0 %v477, 24
      %v874 = vpop.permute.xlu0 %873
      %875 = vrot.lane.b32.xlu0 %v478, 24
      %v876 = vpop.permute.xlu0 %875
      %877 = vrot.lane.b32.xlu0 %v479, 24
      %v878 = vpop.permute.xlu0 %877
      %879 = vrot.lane.b32.xlu0 %v480, 24
      %v880 = vpop.permute.xlu0 %879
      %913 = vrot.lane.b32.xlu0 %v481, 28
      %v914 = vpop.permute.xlu0 %913
      %915 = vrot.lane.b32.xlu0 %v482, 28
      %v916 = vpop.permute.xlu0 %915
      %917 = vrot.lane.b32.xlu0 %v483, 28
      %v918 = vpop.permute.xlu0 %917
      %919 = vrot.lane.b32.xlu0 %v484, 28
      %v920 = vpop.permute.xlu0 %919
      %921 = vrot.lane.b32.xlu0 %v485, 28
      %v922 = vpop.permute.xlu0 %921
      %923 = vrot.lane.b32.xlu0 %v486, 28
      %v924 = vpop.permute.xlu0 %923
      %925 = vrot.lane.b32.xlu0 %v487, 28
      %v926 = vpop.permute.xlu0 %925
      %927 = vrot.lane.b32.xlu0 %v488, 28
      %v928 = vpop.permute.xlu0 %927
      %929 = vrot.lane.b32.xlu0 %v489, 28
      %v930 = vpop.permute.xlu0 %929
      %931 = vrot.lane.b32.xlu0 %v490, 28
      %v932 = vpop.permute.xlu0 %931
      %933 = vrot.lane.b32.xlu0 %v491, 28
      %v934 = vpop.permute.xlu0 %933
      %935 = vrot.lane.b32.xlu0 %v492, 28
      %v936 = vpop.permute.xlu0 %935
      %937 = vrot.lane.b32.xlu0 %v493, 28
      %v938 = vpop.permute.xlu0 %937
      %939 = vrot.lane.b32.xlu0 %v494, 28
      %v940 = vpop.permute.xlu0 %939
      %941 = vrot.lane.b32.xlu0 %v495, 28
      %v942 = vpop.permute.xlu0 %941
      %943 = vrot.lane.b32.xlu0 %v496, 28
      %v944 = vpop.permute.xlu0 %943
      %977 = vrot.lane.b32.xlu0 %v497, 32
      %v978 = vpop.permute.xlu0 %977
      %979 = vrot.lane.b32.xlu0 %v498, 32
      %v980 = vpop.permute.xlu0 %979
      %981 = vrot.lane.b32.xlu0 %v499, 32
      %v982 = vpop.permute.xlu0 %981
      %983 = vrot.lane.b32.xlu0 %v500, 32
      %v984 = vpop.permute.xlu0 %983
      %985 = vrot.lane.b32.xlu0 %v501, 32
      %v986 = vpop.permute.xlu0 %985
      %987 = vrot.lane.b32.xlu0 %v502, 32
      %v988 = vpop.permute.xlu0 %987
      %989 = vrot.lane.b32.xlu0 %v503, 32
      %v990 = vpop.permute.xlu0 %989
      %991 = vrot.lane.b32.xlu0 %v504, 32
      %v992 = vpop.permute.xlu0 %991
      %993 = vrot.lane.b32.xlu0 %v505, 32
      %v994 = vpop.permute.xlu0 %993
      %995 = vrot.lane.b32.xlu0 %v506, 32
      %v996 = vpop.permute.xlu0 %995
      %997 = vrot.lane.b32.xlu0 %v507, 32
      %v998 = vpop.permute.xlu0 %997
      %999 = vrot.lane.b32.xlu0 %v508, 32
      %v1000 = vpop.permute.xlu0 %999
      %1001 = vrot.lane.b32.xlu0 %v509, 32
      %v1002 = vpop.permute.xlu0 %1001
      %1003 = vrot.lane.b32.xlu0 %v510, 32
      %v1004 = vpop.permute.xlu0 %1003
      %1005 = vrot.lane.b32.xlu0 %v511, 32
      %v1006 = vpop.permute.xlu0 %1005
      %1007 = vrot.lane.b32.xlu0 %v512, 32
      %v1008 = vpop.permute.xlu0 %1007
      %vm1025 = vcmask 31744
      %v1026 = vsel %vm1025, %v363, %v530
      %v1027 = vsel %vm1025, %v364, %v532
      %v1028 = vsel %vm1025, %v365, %v534
      %v1029 = vsel %vm1025, %v366, %v536
      %v1030 = vsel %vm1025, %v367, %v538
      %v1031 = vsel %vm1025, %v368, %v540
      %v1032 = vsel %vm1025, %v369, %v542
      %v1033 = vsel %vm1025, %v370, %v544
      %v1034 = vsel %vm1025, %v371, %v546
      %v1035 = vsel %vm1025, %v372, %v548
      %v1036 = vsel %vm1025, %v373, %v550
      %v1037 = vsel %vm1025, %v374, %v552
      %v1038 = vsel %vm1025, %v375, %v554
      %v1039 = vsel %vm1025, %v376, %v556
      %v1040 = vsel %vm1025, %v377, %v558
      %v1041 = vsel %vm1025, %v378, %v560
      %vm1042 = vcmask 64512
      %v1043 = vsel %vm1042, %v1026, %v594
      %v1044 = vsel %vm1042, %v1027, %v596
      %v1045 = vsel %vm1042, %v1028, %v598
      %v1046 = vsel %vm1042, %v1029, %v600
      %v1047 = vsel %vm1042, %v1030, %v602
      %v1048 = vsel %vm1042, %v1031, %v604
      %v1049 = vsel %vm1042, %v1032, %v606
      %v1050 = vsel %vm1042, %v1033, %v608
      %v1051 = vsel %vm1042, %v1034, %v610
      %v1052 = vsel %vm1042, %v1035, %v612
      %v1053 = vsel %vm1042, %v1036, %v614
      %v1054 = vsel %vm1042, %v1037, %v616
      %v1055 = vsel %vm1042, %v1038, %v618
      %v1056 = vsel %vm1042, %v1039, %v620
      %v1057 = vsel %vm1042, %v1040, %v622
      %v1058 = vsel %vm1042, %v1041, %v624
      %vm1059 = vcmask 97280
      %v1060 = vsel %vm1059, %v1043, %v658
      %v1061 = vsel %vm1059, %v1044, %v660
      %v1062 = vsel %vm1059, %v1045, %v662
      %v1063 = vsel %vm1059, %v1046, %v664
      %v1064 = vsel %vm1059, %v1047, %v666
      %v1065 = vsel %vm1059, %v1048, %v668
      %v1066 = vsel %vm1059, %v1049, %v670
      %v1067 = vsel %vm1059, %v1050, %v672
      %v1068 = vsel %vm1059, %v1051, %v674
      %v1069 = vsel %vm1059, %v1052, %v676
      %v1070 = vsel %vm1059, %v1053, %v678
      %v1071 = vsel %vm1059, %v1054, %v680
      %v1072 = vsel %vm1059, %v1055, %v682
      %v1073 = vsel %vm1059, %v1056, %v684
      %v1074 = vsel %vm1059, %v1057, %v686
      %v1075 = vsel %vm1059, %v1058, %v688
      %vm1076 = vcmask 130048
      %v1077 = vsel %vm1076, %v1060, %v722
      %v1078 = vsel %vm1076, %v1061, %v724
      %v1079 = vsel %vm1076, %v1062, %v726
      %v1080 = vsel %vm1076, %v1063, %v728
      %v1081 = vsel %vm1076, %v1064, %v730
      %v1082 = vsel %vm1076, %v1065, %v732
      %v1083 = vsel %vm1076, %v1066, %v734
      %v1084 = vsel %vm1076, %v1067, %v736
      %v1085 = vsel %vm1076, %v1068, %v738
      %v1086 = vsel %vm1076, %v1069, %v740
      %v1087 = vsel %vm1076, %v1070, %v742
      %v1088 = vsel %vm1076, %v1071, %v744
      %v1089 = vsel %vm1076, %v1072, %v746
      %v1090 = vsel %vm1076, %v1073, %v748
      %v1091 = vsel %vm1076, %v1074, %v750
      %v1092 = vsel %vm1076, %v1075, %v752
      %vm1093 = vcmask 162816
      %v1094 = vsel %vm1093, %v1077, %v786
      %v1095 = vsel %vm1093, %v1078, %v788
      %v1096 = vsel %vm1093, %v1079, %v790
      %v1097 = vsel %vm1093, %v1080, %v792
      %v1098 = vsel %vm1093, %v1081, %v794
      %v1099 = vsel %vm1093, %v1082, %v796
      %v1100 = vsel %vm1093, %v1083, %v798
      %v1101 = vsel %vm1093, %v1084, %v800
      %v1102 = vsel %vm1093, %v1085, %v802
      %v1103 = vsel %vm1093, %v1086, %v804
      %v1104 = vsel %vm1093, %v1087, %v806
      %v1105 = vsel %vm1093, %v1088, %v808
      %v1106 = vsel %vm1093, %v1089, %v810
      %v1107 = vsel %vm1093, %v1090, %v812
      %v1108 = vsel %vm1093, %v1091, %v814
      %v1109 = vsel %vm1093, %v1092, %v816
      %vm1110 = vcmask 195584
      %v1111 = vsel %vm1110, %v1094, %v850
      %v1112 = vsel %vm1110, %v1095, %v852
      %v1113 = vsel %vm1110, %v1096, %v854
      %v1114 = vsel %vm1110, %v1097, %v856
      %v1115 = vsel %vm1110, %v1098, %v858
      %v1116 = vsel %vm1110, %v1099, %v860
      %v1117 = vsel %vm1110, %v1100, %v862
      %v1118 = vsel %vm1110, %v1101, %v864
      %v1119 = vsel %vm1110, %v1102, %v866
      %v1120 = vsel %vm1110, %v1103, %v868
      %v1121 = vsel %vm1110, %v1104, %v870
      %v1122 = vsel %vm1110, %v1105, %v872
      %v1123 = vsel %vm1110, %v1106, %v874
      %v1124 = vsel %vm1110, %v1107, %v876
      %v1125 = vsel %vm1110, %v1108, %v878
      %v1126 = vsel %vm1110, %v1109, %v880
      %vm1127 = vcmask 228352
      %v1128 = vsel %vm1127, %v1111, %v914
      %v1129 = vsel %vm1127, %v1112, %v916
      %v1130 = vsel %vm1127, %v1113, %v918
      %v1131 = vsel %vm1127, %v1114, %v920
      %v1132 = vsel %vm1127, %v1115, %v922
      %v1133 = vsel %vm1127, %v1116, %v924
      %v1134 = vsel %vm1127, %v1117, %v926
      %v1135 = vsel %vm1127, %v1118, %v928
      %v1136 = vsel %vm1127, %v1119, %v930
      %v1137 = vsel %vm1127, %v1120, %v932
      %v1138 = vsel %vm1127, %v1121, %v934
      %v1139 = vsel %vm1127, %v1122, %v936
      %v1140 = vsel %vm1127, %v1123, %v938
      %v1141 = vsel %vm1127, %v1124, %v940
      %v1142 = vsel %vm1127, %v1125, %v942
      %v1143 = vsel %vm1127, %v1126, %v944
      %vm1144 = vcmask 261120
      %v1145 = vsel %vm1144, %v1128, %v978
      %v1146 = vsel %vm1144, %v1129, %v980
      %v1147 = vsel %vm1144, %v1130, %v982
      %v1148 = vsel %vm1144, %v1131, %v984
      %v1149 = vsel %vm1144, %v1132, %v986
      %v1150 = vsel %vm1144, %v1133, %v988
      %v1151 = vsel %vm1144, %v1134, %v990
      %v1152 = vsel %vm1144, %v1135, %v992
      %v1153 = vsel %vm1144, %v1136, %v994
      %v1154 = vsel %vm1144, %v1137, %v996
      %v1155 = vsel %vm1144, %v1138, %v998
      %v1156 = vsel %vm1144, %v1139, %v1000
      %v1157 = vsel %vm1144, %v1140, %v1002
      %v1158 = vsel %vm1144, %v1141, %v1004
      %v1159 = vsel %vm1144, %v1142, %v1006
      %v1160 = vsel %vm1144, %v1143, %v1008
      %v1161 = vld [vmem:[%s1] sm:$0xff]
      %v1162 = vld [vmem:[%s1 + $0x8] sm:$0xff]
      %v1163 = vld [vmem:[%s1 + $0x10] sm:$0xff]
      %v1164 = vld [vmem:[%s1 + $0x18] sm:$0xff]
      %v1165 = vld [vmem:[%s1 + $0x20] sm:$0xf]
      %vm1166 = vcmask 293888
      %v1168 = vsel %vm1166, %v1145, 0
      %v1171 = vsel %vm1166, %v1146, 0
      %v1174 = vsel %vm1166, %v1147, 0
      %v1177 = vsel %vm1166, %v1148, 0
      %v1180 = vsel %vm1166, %v1149, 0
      %v1183 = vsel %vm1166, %v1150, 0
      %v1186 = vsel %vm1166, %v1151, 0
      %v1189 = vsel %vm1166, %v1152, 0
      %v1192 = vsel %vm1166, %v1153, 0
      %v1195 = vsel %vm1166, %v1154, 0
      %v1198 = vsel %vm1166, %v1155, 0
      %v1201 = vsel %vm1166, %v1156, 0
      %v1204 = vsel %vm1166, %v1157, 0
      %v1207 = vsel %vm1166, %v1158, 0
      %v1210 = vsel %vm1166, %v1159, 0
      %v1213 = vsel %vm1166, %v1160, 0
      %vm1215 = vcmask 1043456
      %v1217 = vsel %vm1215, %v1165, 0
      %1219 = vmatprep.subr.mxu0 0.0
      %1220 = vmatpush1.msra.mxu0 %v1161
      %1221 = vmatprep.subr.mxu0 0.0
      %1222 = vmatpush1.msra.mxu0 %v1162
      %1223 = vmatprep.subr.mxu0 0.0
      %1224 = vmatpush1.msra.mxu0 %v1163
      %1225 = vmatprep.subr.mxu0 0.0
      %1226 = vmatpush1.msra.mxu0 %v1164
      %1227 = vmatprep.subr.mxu0 0.0
      %1228 = vmatpush1.msra.mxu0 %v1217
      %1229 = vmatprep.subr.mxu0 0.0
      %1230 = vmatpush1.msra.mxu0 0.0
      %1231 = vmatprep.subr.mxu0 0.0
      %1232 = vmatpush1.msra.mxu0 0.0
      %1233 = vmatprep.subr.mxu0 0.0
      %1234 = vmatpush1.msra.mxu0 0.0
      %1235 = vmatprep.subr.mxu0 0.0
      %1236 = vmatpush1.msra.mxu0 0.0
      %1237 = vmatprep.subr.mxu0 0.0
      %1238 = vmatpush1.msra.mxu0 0.0
      %1239 = vmatprep.subr.mxu0 0.0
      %1240 = vmatpush1.msra.mxu0 0.0
      %1241 = vmatprep.subr.mxu0 0.0
      %1242 = vmatpush1.msra.mxu0 0.0
      %1243 = vmatprep.subr.mxu0 0.0
      %1244 = vmatpush1.msra.mxu0 0.0
      %1245 = vmatprep.subr.mxu0 0.0
      %1246 = vmatpush1.msra.mxu0 0.0
      %1247 = vmatprep.subr.mxu0 0.0
      %1248 = vmatpush1.msra.mxu0 0.0
      %1249 = vmatprep.subr.mxu0 0.0
      %1250 = vmatpush1.msra.mxu0 0.0
      %1251 = vmatprep.subr.mxu0 0.0
      %1252 = vmatpush1.msra.mxu0 0.0
      %1253 = vmatprep.subr.mxu0 0.0
      %1254 = vmatpush1.msra.mxu0 0.0
      %1255 = vmatprep.subr.mxu0 0.0
      %1256 = vmatpush1.msra.mxu0 0.0
      %1257 = vmatprep.subr.mxu0 0.0
      %1258 = vmatpush1.msra.mxu0 0.0
      %1259 = vmatprep.subr.mxu0 0.0
      %1260 = vmatpush1.msra.mxu0 0.0
      %1261 = vmatprep.subr.mxu0 0.0
      %1262 = vmatpush1.msra.mxu0 0.0
      %1263 = vmatprep.subr.mxu0 0.0
      %1264 = vmatpush1.msra.mxu0 0.0
      %1265 = vmatprep.subr.mxu0 0.0
      %1266 = vmatpush1.msra.mxu0 0.0
      %1267 = vmatprep.subr.mxu0 0.0
      %1268 = vmatpush1.msra.mxu0 0.0
      %1269 = vmatprep.subr.mxu0 0.0
      %1270 = vmatpush1.msra.mxu0 0.0
      %1271 = vmatprep.subr.mxu0 0.0
      %1272 = vmatpush1.msra.mxu0 0.0
      %1273 = vmatprep.subr.mxu0 0.0
      %1274 = vmatpush1.msra.mxu0 0.0
      %1275 = vmatprep.subr.mxu0 0.0
      %1276 = vmatpush1.msra.mxu0 0.0
      %1277 = vmatprep.subr.mxu0 0.0
      %1278 = vmatpush1.msra.mxu0 0.0
      %1279 = vmatprep.subr.mxu0 0.0
      %1280 = vmatpush1.msra.mxu0 0.0
      %1281 = vmatprep.subr.mxu0 0.0
      %1282 = vmatpush1.msra.mxu0 0.0
      %1283 = vmatprep.mubr.f32.mxu0 0.0
      %1284 = vmatmul.mubr.f32.gmra.mrb[0].mxu0 %v1168
      %v1285 = vpop.f32.mrb[0].mxu0
      %v1286 = vadd.f32 0.0, %v1285
      %v1287 = vpop.f32.mrb[0].mxu0
      %1288 = vmatprep.mubr.f32.mxu0 0.0
      %1289 = vmatmul.mubr.f32.gmra.mrb[0].mxu0 %v1171
      %v1290 = vpop.f32.mrb[0].mxu0
      %v1291 = vadd.f32 0.0, %v1290
      %v1292 = vpop.f32.mrb[0].mxu0
      %1293 = vmatprep.mubr.f32.mxu0 0.0
      %1294 = vmatmul.mubr.f32.gmra.mrb[0].mxu0 %v1174
      %v1295 = vpop.f32.mrb[0].mxu0
      %v1296 = vadd.f32 0.0, %v1295
      %v1297 = vpop.f32.mrb[0].mxu0
      %1298 = vmatprep.mubr.f32.mxu0 0.0
      %1299 = vmatmul.mubr.f32.gmra.mrb[0].mxu0 %v1177
      %v1300 = vpop.f32.mrb[0].mxu0
      %v1301 = vadd.f32 0.0, %v1300
      %v1302 = vpop.f32.mrb[0].mxu0
      %1303 = vmatprep.mubr.f32.mxu0 0.0
      %1304 = vmatmul.mubr.f32.gmra.mrb[0].mxu0 %v1180
      %v1305 = vpop.f32.mrb[0].mxu0
      %v1306 = vadd.f32 0.0, %v1305
      %v1307 = vpop.f32.mrb[0].mxu0
      %1308 = vmatprep.mubr.f32.mxu0 0.0
      %1309 = vmatmul.mubr.f32.gmra.mrb[0].mxu0 %v1183
      %v1310 = vpop.f32.mrb[0].mxu0
      %v1311 = vadd.f32 0.0, %v1310
      %v1312 = vpop.f32.mrb[0].mxu0
      %1313 = vmatprep.mubr.f32.mxu0 0.0
      %1314 = vmatmul.mubr.f32.gmra.mrb[0].mxu0 %v1186
      %v1315 = vpop.f32.mrb[0].mxu0
      %v1316 = vadd.f32 0.0, %v1315
      %v1317 = vpop.f32.mrb[0].mxu0
      %1318 = vmatprep.mubr.f32.mxu0 0.0
      %1319 = vmatmul.mubr.f32.gmra.mrb[0].mxu0 %v1189
      %v1320 = vpop.f32.mrb[0].mxu0
      %v1321 = vadd.f32 0.0, %v1320
      %v1322 = vpop.f32.mrb[0].mxu0
      %1323 = vmatprep.mubr.f32.mxu0 0.0
      %1324 = vmatmul.mubr.f32.gmra.mrb[0].mxu0 %v1192
      %v1325 = vpop.f32.mrb[0].mxu0
      %v1326 = vadd.f32 0.0, %v1325
      %v1327 = vpop.f32.mrb[0].mxu0
      %1328 = vmatprep.mubr.f32.mxu0 0.0
      %1329 = vmatmul.mubr.f32.gmra.mrb[0].mxu0 %v1195
      %v1330 = vpop.f32.mrb[0].mxu0
      %v1331 = vadd.f32 0.0, %v1330
      %v1332 = vpop.f32.mrb[0].mxu0
      %1333 = vmatprep.mubr.f32.mxu0 0.0
      %1334 = vmatmul.mubr.f32.gmra.mrb[0].mxu0 %v1198
      %v1335 = vpop.f32.mrb[0].mxu0
      %v1336 = vadd.f32 0.0, %v1335
      %v1337 = vpop.f32.mrb[0].mxu0
      %1338 = vmatprep.mubr.f32.mxu0 0.0
      %1339 = vmatmul.mubr.f32.gmra.mrb[0].mxu0 %v1201
      %v1340 = vpop.f32.mrb[0].mxu0
      %v1341 = vadd.f32 0.0, %v1340
      %v1342 = vpop.f32.mrb[0].mxu0
      %1343 = vmatprep.mubr.f32.mxu0 0.0
      %1344 = vmatmul.mubr.f32.gmra.mrb[0].mxu0 %v1204
      %v1345 = vpop.f32.mrb[0].mxu0
      %v1346 = vadd.f32 0.0, %v1345
      %v1347 = vpop.f32.mrb[0].mxu0
      %1348 = vmatprep.mubr.f32.mxu0 0.0
      %1349 = vmatmul.mubr.f32.gmra.mrb[0].mxu0 %v1207
      %v1350 = vpop.f32.mrb[0].mxu0
      %v1351 = vadd.f32 0.0, %v1350
      %v1352 = vpop.f32.mrb[0].mxu0
      %1353 = vmatprep.mubr.f32.mxu0 0.0
      %1354 = vmatmul.mubr.f32.gmra.mrb[0].mxu0 %v1210
      %v1355 = vpop.f32.mrb[0].mxu0
      %v1356 = vadd.f32 0.0, %v1355
      %v1357 = vpop.f32.mrb[0].mxu0
      %1358 = vmatprep.mubr.f32.mxu0 0.0
      %1359 = vmatmul.mubr.f32.gmra.mrb[0].mxu0 %v1213
      %v1360 = vpop.f32.mrb[0].mxu0
      %v1361 = vadd.f32 0.0, %v1360
      %v1362 = vpop.f32.mrb[0].mxu0
      %1363 = vdwg.mxu0
      %1364 = vst.msk [vmem:[%s208] sm:$0xff] %vm1042, %v1286
      %1365 = vst.msk [vmem:[%s208 + $0x8] sm:$0xff] %vm1042, %v1291
      %1366 = vst.msk [vmem:[%s208 + $0x10] sm:$0xff] %vm1042, %v1296
      %1367 = vst.msk [vmem:[%s208 + $0x18] sm:$0xff] %vm1042, %v1301
      %1368 = vst.msk [vmem:[%s208 + $0x20] sm:$0xff] %vm1042, %v1306
      %1369 = vst.msk [vmem:[%s208 + $0x28] sm:$0xff] %vm1042, %v1311
      %1370 = vst.msk [vmem:[%s208 + $0x30] sm:$0xff] %vm1042, %v1316
      %1371 = vst.msk [vmem:[%s208 + $0x38] sm:$0xff] %vm1042, %v1321
      %1372 = vst.msk [vmem:[%s208 + $0x40] sm:$0xff] %vm1042, %v1326
      %1373 = vst.msk [vmem:[%s208 + $0x48] sm:$0xff] %vm1042, %v1331
      %1374 = vst.msk [vmem:[%s208 + $0x50] sm:$0xff] %vm1042, %v1336
      %1375 = vst.msk [vmem:[%s208 + $0x58] sm:$0xff] %vm1042, %v1341
      %1376 = vst.msk [vmem:[%s208 + $0x60] sm:$0xff] %vm1042, %v1346
      %1377 = vst.msk [vmem:[%s208 + $0x68] sm:$0xff] %vm1042, %v1351
      %1378 = vst.msk [vmem:[%s208 + $0x70] sm:$0xff] %vm1042, %v1356
      %1379 = vst.msk [vmem:[%s208 + $0x78] sm:$0xff] %vm1042, %v1361
      %s1380 = smul.u32 8, %s19
      %p1381 = scmp.lt.s32.totalorder %s18, 1
      %s1382 = scalar_select %p1381, %s18, 1
      %p1383 = scmp.lt.s32.totalorder %s1380, 15
      %s1384 = scalar_select %p1383, %s1380, 15
      %s1385 = smul.addr %s1384, 2
      %s1386 = smul.addr %s1382, 32
      %s1387 = sadd.s32 %s1385, %s1386
      %s1388 = smul.addr %s1387, 8
      %s1389 = scalar_lea.vmem %s3, %s1388
      // Predicated region
      $region37: #{tpu_custom_call.1} parent=31 // pred_check
        %p1390 = pneg %p119
      $region38: #{tpu_custom_call.1} parent=31 // pred_check_branch
        %1392 = sbr.rel (%p1390) target = $region40
      $region39: #{tpu_custom_call.1} parent=31 // pred_region
        %s1393 = smul.u32 8, %s19
      $region40: #{tpu_custom_call.1} parent=31 // pred_fallthru
        _
    $region32: #{tpu_custom_call.1} parent=5 // pred_fallthru
      _
    %p1394 = scmp.le.s32.totalorder 2, %s9
    // Predicated region
    $region41: #{tpu_custom_call.1} parent=5 // pred_check
      %p1395 = pneg %p1394
    $region42: #{tpu_custom_call.1} parent=5 // pred_check_branch
      %1397 = sbr.rel (%p1395) target = $region44
    $region43: #{tpu_custom_call.1} parent=5 // pred_region
      %s1398 = ssub.s32 %s9, 2
      // Predicated region
      $region45: #{tpu_custom_call.1} parent=43 // pred_check
        %p1399 = pneg %p125
      $region46: #{tpu_custom_call.1} parent=43 // pred_check_branch
        %1401 = sbr.rel (%p1399) target = $region48
      $region47: #{tpu_custom_call.1} parent=43 // pred_region
        %s1402 = smul.u32 8, %s21
        %p1403 = scmp.lt.s32.totalorder %s20, 1
        %s1404 = scalar_select %p1403, %s20, 1
        %p1405 = scmp.lt.s32.totalorder %s1402, 15
        %s1406 = scalar_select %p1405, %s1402, 15
        %s1407 = smul.addr %s1406, 2
        %s1408 = smul.addr %s1404, 32
        %s1409 = sadd.s32 %s1407, %s1408
        %s1410 = smul.addr %s1409, 8
        %s1411 = scalar_lea.vmem %s3, %s1410
      $region48: #{tpu_custom_call.1} parent=43 // pred_fallthru
        _
    $region44: #{tpu_custom_call.1} parent=5 // pred_fallthru
      _
  $region6: #{tpu_custom_call.1} parent=0 // loop_footer
    %s13 = sadd.s32 1, %s9
  $region7: #{tpu_custom_call.1} parent=0 // loop_footer_branch
    %8 = sbr.rel target = $region3
  $region8: #{tpu_custom_call.1} parent=0 // loop_exit
    _

// kernel: tpu_custom_call.1
$region0: #{tpu_custom_call.1}
  #allocation0 [shape = 'u32[]', space=smem, size = 0x4, offset = 0x4, fixed_abs, tag = 'smem constant byte address 0x4 - core index']
  #allocation1 [shape = 'u32[144,128]{1,0:T(1,128)}', space=vmem, size = 0x12000, scoped, tag = 'internal scratch']
  #allocation2 [shape = 'f32[1,18,18,4]{3,2,1,0:T(8,128)}', space=vmem, size = 0x36000, scoped, tag = 'scratch operand']
  %s0 = inlined_call_operand.vmem [shape: f32[2,1,4], index: 0, kind: input, shape index: {}]
  %s1 = inlined_call_operand.vmem [shape: f32[36,8], index: 1, kind: input, shape index: {}]
  %s2 = inlined_call_operand.vmem [shape: f32[2,16,16,4], index: 2, kind: input, shape index: {}]
  %s3 = inlined_call_operand.vmem [shape: f32[2,16,16,8], index: 3, kind: output, shape index: {}]
  %s4 = sld [smem:[#allocation0]]
  $region49: #{tpu_custom_call.1} parent=0
    _
  %s6 = ssub.s32 1, %s4
  %s7 = scalar_select 0, %s6, %s4
  loop: start=0, step=1, limit=6
  $region2: #{tpu_custom_call.1} parent=0 // loop_pre_header
    _
  $region3: #{tpu_custom_call.1} parent=0 // loop_header
    %s9 = sphi 0, %s13
    %p10 = scmp.ge.s32.totalorder %s9, 6
    %s16 = sphi 0, %s28
    %s17 = sphi 0, %s24
    %s18 = sphi 0, %s16
    %s19 = sphi 0, %s17
    %s20 = sphi 0, %s18
    %s21 = sphi 0, %s19
    %s31 = sphi 0, %s33
    %s34 = sphi 0, %s31
    %s35 = sphi 0, %s34
    %s51 = sphi 0, %s35
    %s55 = sphi 0, %s55
    %s57 = sphi 0, %s55
    %s58 = sphi 0, %s57
    %s72 = sphi 0, %s58
    %s78 = sphi 0, %s80
    %s81 = sphi 0, %s78
    %s82 = sphi 0, %s81
    %s98 = sphi 0, %s82
    %s106 = sphi 0, %s108
    %s109 = sphi 0, %s106
    %s110 = sphi 0, %s109
    %s126 = sphi 0, %s110
  $region4: #{tpu_custom_call.1} parent=0 // loop_header_branch
    %12 = sbr.rel (%p10) target = $region8
  $region5: #{tpu_custom_call.1} parent=0 // loop_body
    %s14 = ssub.s32 %s9, 1
    %s15 = ssub.s32 %s9, 2
    %s22 = sadd.s32 1, %s17
    %p23 = scmp.ge.s32.totalorder %s22, 2
    %s24 = scalar_select %p23, 0, %s22
    %s25 = sadd.s32 1, %s16
    %s26 = scalar_select %p23, %s25, %s16
    %p27 = scmp.ge.s32.totalorder %s26, 2
    %s28 = scalar_select %p27, 0, %s26
    %s29 = ssub.s32 %s16, %s28
    %p30 = scmp.eq.s32.totalorder %s29, 0
    %s32 = sadd.s32 %s31, 1
    %s33 = scalar_select %p30, %s31, %s32
    %p36 = pneg %p30
    %p37 = scmp.eq.s32.totalorder %s9, 3
    %p38 = por %p36, %p37
    %p39 = scmp.ne.s32.totalorder %s31, %s34
    %p40 = scmp.eq.s32.totalorder %s9, 0
    %p41 = por %p39, %p40
    %p42 = scmp.ne.s32.totalorder %s31, %s34
    %p43 = scmp.eq.s32.totalorder %s14, 3
    %p44 = por %p42, %p43
    %p45 = scmp.ne.s32.totalorder %s34, %s35
    %p46 = scmp.eq.s32.totalorder %s14, 0
    %p47 = por %p45, %p46
    %p48 = scmp.ne.s32.totalorder %s34, %s35
    %p49 = scmp.eq.s32.totalorder %s15, 3
    %p50 = por %p48, %p49
    %p52 = scmp.ne.s32.totalorder %s35, %s51
    %p53 = scmp.eq.s32.totalorder %s15, 0
    %p54 = por %p52, %p53
    %s56 = sadd.s32 %s55, 1
    %p59 = scmp.eq.s32.totalorder %s9, 3
    %p60 = scmp.ne.s32.totalorder %s55, %s57
    %p61 = scmp.eq.s32.totalorder %s9, 0
    %p62 = por %p60, %p61
    %p63 = scmp.ne.s32.totalorder %s55, %s57
    %p64 = scmp.eq.s32.totalorder %s14, 3
    %p65 = por %p63, %p64
    %p66 = scmp.ne.s32.totalorder %s57, %s58
    %p67 = scmp.eq.s32.totalorder %s14, 0
    %p68 = por %p66, %p67
    %p69 = scmp.ne.s32.totalorder %s57, %s58
    %p70 = scmp.eq.s32.totalorder %s15, 3
    %p71 = por %p69, %p70
    %p73 = scmp.ne.s32.totalorder %s58, %s72
    %p74 = scmp.eq.s32.totalorder %s15, 0
    %p75 = por %p73, %p74
    %s76 = ssub.s32 %s16, %s28
    %p77 = scmp.eq.s32.totalorder %s76, 0
    %s79 = sadd.s32 %s78, 1
    %s80 = scalar_select %p77, %s78, %s79
    %p83 = pneg %p77
    %p84 = scmp.eq.s32.totalorder %s9, 3
    %p85 = por %p83, %p84
    %p86 = scmp.ne.s32.totalorder %s78, %s81
    %p87 = scmp.eq.s32.totalorder %s9, 0
    %p88 = por %p86, %p87
    %p89 = scmp.ne.s32.totalorder %s78, %s81
    %p90 = scmp.eq.s32.totalorder %s14, 3
    %p91 = por %p89, %p90
    %p92 = scmp.ne.s32.totalorder %s81, %s82
    %p93 = scmp.eq.s32.totalorder %s14, 0
    %p94 = por %p92, %p93
    %p95 = scmp.ne.s32.totalorder %s81, %s82
    %p96 = scmp.eq.s32.totalorder %s15, 3
    %p97 = por %p95, %p96
    %p99 = scmp.ne.s32.totalorder %s82, %s98
    %p100 = scmp.eq.s32.totalorder %s15, 0
    %p101 = por %p99, %p100
    %s102 = ssub.s32 %s16, %s28
    %s103 = ssub.s32 %s17, %s24
    %s104 = sor.u32 %s102, %s103
    %p105 = scmp.eq.s32.totalorder %s104, 0
    %s107 = sadd.s32 %s106, 1
    %s108 = scalar_select %p105, %s106, %s107
    %p111 = pneg %p105
    %p112 = scmp.eq.s32.totalorder %s9, 3
    %p113 = por %p111, %p112
    %p114 = scmp.ne.s32.totalorder %s106, %s109
    %p115 = scmp.eq.s32.totalorder %s9, 0
    %p116 = por %p114, %p115
    %p117 = scmp.ne.s32.totalorder %s106, %s109
    %p118 = scmp.eq.s32.totalorder %s14, 3
    %p119 = por %p117, %p118
    %p120 = scmp.ne.s32.totalorder %s109, %s110
    %p121 = scmp.eq.s32.totalorder %s14, 0
    %p122 = por %p120, %p121
    %p123 = scmp.ne.s32.totalorder %s109, %s110
    %p124 = scmp.eq.s32.totalorder %s15, 3
    %p125 = por %p123, %p124
    %p127 = scmp.ne.s32.totalorder %s110, %s126
    %p128 = scmp.eq.s32.totalorder %s15, 0
    %p129 = por %p127, %p128
    %p130 = scmp.le.s32.totalorder 1, %s9
    %p131 = scmp.lt.s32.totalorder %s9, 5
    %p132 = pnand %p130, %p131
    %p133 = pneg %p132
    // Predicated region
    $region9: #{tpu_custom_call.1} parent=5 // pred_check
      _
    $region10: #{tpu_custom_call.1} parent=5 // pred_check_branch
      %135 = sbr.rel (%p132) target = $region12
    $region11: #{tpu_custom_call.1} parent=5 // pred_region
      %s136 = ssub.s32 %s9, 1
      // Predicated region
      $region13: #{tpu_custom_call.1} parent=11 // pred_check
        %p137 = pneg %p68
      $region14: #{tpu_custom_call.1} parent=11 // pred_check_branch
        %139 = sbr.rel (%p137) target = $region16
      $region15: #{tpu_custom_call.1} parent=11 // pred_region
        _
      $region16: #{tpu_custom_call.1} parent=11 // pred_fallthru
        _
    $region12: #{tpu_custom_call.1} parent=5 // pred_fallthru
      _
    %p140 = scmp.lt.s32.totalorder %s9, 4
    // Predicated region
    $region17: #{tpu_custom_call.1} parent=5 // pred_check
      %p141 = pneg %p140
    $region18: #{tpu_custom_call.1} parent=5 // pred_check_branch
      %143 = sbr.rel (%p141) target = $region20
    $region19: #{tpu_custom_call.1} parent=5 // pred_region
      // Predicated region
      $region21: #{tpu_custom_call.1} parent=19 // pred_check
        %p144 = pneg %p41
      $region22: #{tpu_custom_call.1} parent=19 // pred_check_branch
        %146 = sbr.rel (%p144) target = $region24
      $region23: #{tpu_custom_call.1} parent=19 // pred_region
        %p147 = scmp.lt.s32.totalorder %s16, 1
        %s148 = scalar_select %p147, %s16, 1
        %s149 = scalar_lea.vmem %s0, %s148
      $region24: #{tpu_custom_call.1} parent=19 // pred_fallthru
        _
      // Predicated region
      $region25: #{tpu_custom_call.1} parent=19 // pred_check
        %p150 = pneg %p88
      $region26: #{tpu_custom_call.1} parent=19 // pred_check_branch
        %152 = sbr.rel (%p150) target = $region28
      $region27: #{tpu_custom_call.1} parent=19 // pred_region
        %p153 = scmp.lt.s32.totalorder %s16, 1
        %s154 = scalar_select %p153, %s16, 1
        %s155 = smul.addr %s154, 32
        %s156 = smul.addr %s155, 8
        %s157 = scalar_lea.vmem %s2, %s156
      $region28: #{tpu_custom_call.1} parent=19 // pred_fallthru
        _
    $region20: #{tpu_custom_call.1} parent=5 // pred_fallthru
      _
    %p158 = scmp.le.s32.totalorder 1, %s9
    %p159 = scmp.lt.s32.totalorder %s9, 5
    %p160 = pnand %p158, %p159
    %p161 = pneg %p160
    // Predicated region
    $region29: #{tpu_custom_call.1} parent=5 // pred_check
      _
    $region30: #{tpu_custom_call.1} parent=5 // pred_check_branch
      %163 = sbr.rel (%p160) target = $region32
    $region31: #{tpu_custom_call.1} parent=5 // pred_region
      %s164 = ssub.s32 %s9, 1
      %p165 = scmp.lt.s32.totalorder %s18, 1
      %s166 = scalar_select %p165, %s18, 1
      %s167 = scalar_lea.vmem %s0, %s166
      %p168 = pneg %p47
      %p169 = pneg %p44
      %p170 = pneg %p68
      %p171 = pneg %p65
      %p172 = scmp.lt.s32.totalorder %s18, 1
      %s173 = scalar_select %p172, %s18, 1
      %s174 = smul.addr %s173, 32
      %s175 = smul.addr %s174, 8
      %s176 = scalar_lea.vmem %s2, %s175
      %p177 = pneg %p94
      %p178 = pneg %p91
      %p179 = pneg %p122
      %p180 = pneg %p119
      %s181 = smul.u32 8, %s19
      %p182 = scmp.lt.s32.totalorder %s18, 1
      %s183 = scalar_select %p182, %s18, 1
      %p184 = scmp.lt.s32.totalorder %s181, 15
      %s185 = scalar_select %p184, %s181, 15
      %s186 = smul.addr %s185, 2
      %s187 = smul.addr %s183, 32
      %s188 = sadd.s32 %s186, %s187
      %s189 = smul.addr %s188, 8
      %s190 = scalar_lea.vmem %s3, %s189
      %p191 = scmp.lt.s32.totalorder %s18, 1
      %s192 = scalar_select %p191, %s18, 1
      %s193 = scalar_lea.vmem %s0, %s192
      %p194 = scmp.lt.s32.totalorder %s18, 1
      %s195 = scalar_select %p194, %s18, 1
      %s196 = smul.addr %s195, 32
      %s197 = smul.addr %s196, 8
      %s198 = scalar_lea.vmem %s2, %s197
      %s199 = smul.u32 8, %s19
      %p200 = scmp.lt.s32.totalorder %s18, 1
      %s201 = scalar_select %p200, %s18, 1
      %p202 = scmp.lt.s32.totalorder %s199, 15
      %s203 = scalar_select %p202, %s199, 15
      %s204 = smul.addr %s203, 2
      %s205 = smul.addr %s201, 32
      %s206 = sadd.s32 %s204, %s205
      %s207 = smul.addr %s206, 8
      %s208 = scalar_lea.vmem %s3, %s207
      %s209 = smul.u32 8, %s19
      %p210 = scmp.eq.s32.totalorder %s19, 0
      // Predicated region
      $region33: #{tpu_custom_call.1} parent=31 // pred_check
        %p211 = pneg %p210
      $region34: #{tpu_custom_call.1} parent=31 // pred_check_branch
        %213 = sbr.rel (%p211) target = $region36
      $region35: #{tpu_custom_call.1} parent=31 // pred_region
        %v214 = vld [vmem:[%s193] sm:$0x1]
        %v215 = vld [vmem:[%s198] sm:$0xff]
        %v216 = vld [vmem:[%s198 + $0x8] sm:$0xff]
        %v217 = vld [vmem:[%s198 + $0x10] sm:$0xff]
        %v218 = vld [vmem:[%s198 + $0x18] sm:$0xff]
        %v219 = vld [vmem:[%s198 + $0x20] sm:$0xff]
        %v220 = vld [vmem:[%s198 + $0x28] sm:$0xff]
        %v221 = vld [vmem:[%s198 + $0x30] sm:$0xff]
        %v222 = vld [vmem:[%s198 + $0x38] sm:$0xff]
        %v223 = vld [vmem:[%s198 + $0x40] sm:$0xff]
        %v224 = vld [vmem:[%s198 + $0x48] sm:$0xff]
        %v225 = vld [vmem:[%s198 + $0x50] sm:$0xff]
        %v226 = vld [vmem:[%s198 + $0x58] sm:$0xff]
        %v227 = vld [vmem:[%s198 + $0x60] sm:$0xff]
        %v228 = vld [vmem:[%s198 + $0x68] sm:$0xff]
        %v229 = vld [vmem:[%s198 + $0x70] sm:$0xff]
        %v230 = vld [vmem:[%s198 + $0x78] sm:$0xff]
        %v231 = vld [vmem:[%s198 + $0x80] sm:$0xff]
        %v232 = vld [vmem:[%s198 + $0x88] sm:$0xff]
        %v233 = vld [vmem:[%s198 + $0x90] sm:$0xff]
        %v234 = vld [vmem:[%s198 + $0x98] sm:$0xff]
        %v235 = vld [vmem:[%s198 + $0xa0] sm:$0xff]
        %v236 = vld [vmem:[%s198 + $0xa8] sm:$0xff]
        %v237 = vld [vmem:[%s198 + $0xb0] sm:$0xff]
        %v238 = vld [vmem:[%s198 + $0xb8] sm:$0xff]
        %v239 = vld [vmem:[%s198 + $0xc0] sm:$0xff]
        %v240 = vld [vmem:[%s198 + $0xc8] sm:$0xff]
        %v241 = vld [vmem:[%s198 + $0xd0] sm:$0xff]
        %v242 = vld [vmem:[%s198 + $0xd8] sm:$0xff]
        %v243 = vld [vmem:[%s198 + $0xe0] sm:$0xff]
        %v244 = vld [vmem:[%s198 + $0xe8] sm:$0xff]
        %v245 = vld [vmem:[%s198 + $0xf0] sm:$0xff]
        %v246 = vld [vmem:[%s198 + $0xf8] sm:$0xff]
        %v248 = vlaneseq
        %v249 = vshrl.u32 %v248, 7
        %v250 = vsub.s32 0, %v249
        %v251 = vrot.slane %v214, %v250
        %v253 = vmul.f32 %v215, %v251
        %v254 = vmul.f32 %v216, %v251
        %v255 = vmul.f32 %v217, %v251
        %v256 = vmul.f32 %v218, %v251
        %v257 = vmul.f32 %v219, %v251
        %v258 = vmul.f32 %v220, %v251
        %v259 = vmul.f32 %v221, %v251
        %v260 = vmul.f32 %v222, %v251
        %v261 = vmul.f32 %v223, %v251
        %v262 = vmul.f32 %v224, %v251
        %v263 = vmul.f32 %v225, %v251
        %v264 = vmul.f32 %v226, %v251
        %v265 = vmul.f32 %v227, %v251
        %v266 = vmul.f32 %v228, %v251
        %v267 = vmul.f32 %v229, %v251
        %v268 = vmul.f32 %v230, %v251
        %v269 = vmul.f32 %v231, %v251
        %v270 = vmul.f32 %v232, %v251
        %v271 = vmul.f32 %v233, %v251
        %v272 = vmul.f32 %v234, %v251
        %v273 = vmul.f32 %v235, %v251
        %v274 = vmul.f32 %v236, %v251
        %v275 = vmul.f32 %v237, %v251
        %v276 = vmul.f32 %v238, %v251
        %v277 = vmul.f32 %v239, %v251
        %v278 = vmul.f32 %v240, %v251
        %v279 = vmul.f32 %v241, %v251
        %v280 = vmul.f32 %v242, %v251
        %v281 = vmul.f32 %v243, %v251
        %v282 = vmul.f32 %v244, %v251
        %v283 = vmul.f32 %v245, %v251
        %v284 = vmul.f32 %v246, %v251
        %vm285 = vcmask 31744
        %286 = vst.msk [vmem:[#allocation2] sm:$0xff] %vm285, 0.0
        %287 = vst.msk [vmem:[#allocation2 + $0x8] sm:$0xff] %vm285, 0.0
        %vm288 = vcmask 25600
        %289 = vst.msk [vmem:[#allocation2 + $0x10] sm:$0x3] %vm288, 0.0
        %s290 = scalar_lea.vmem [#allocation2], 408
        %291 = vst.msk [vmem:[%s290] sm:$0xff] %vm285, 0.0
        %292 = vst.msk [vmem:[%s290 + $0x8] sm:$0xff] %vm285, 0.0
        %293 = vst.msk [vmem:[%s290 + $0x10] sm:$0x3] %vm288, 0.0
        %s294 = scalar_lea.vmem [#allocation2], 24
        %vm295 = vcmask 24576
        %296 = vst.msk [vmem:[%s294] sm:$0x1] %vm295, 0.0
        %297 = vst.msk [vmem:[%s294 + $0x18] sm:$0x1] %vm295, 0.0
        %298 = vst.msk [vmem:[%s294 + $0x30] sm:$0x1] %vm295, 0.0
        %299 = vst.msk [vmem:[%s294 + $0x48] sm:$0x1] %vm295, 0.0
        %300 = vst.msk [vmem:[%s294 + $0x60] sm:$0x1] %vm295, 0.0
        %301 = vst.msk [vmem:[%s294 + $0x78] sm:$0x1] %vm295, 0.0
        %302 = vst.msk [vmem:[%s294 + $0x90] sm:$0x1] %vm295, 0.0
        %303 = vst.msk [vmem:[%s294 + $0xa8] sm:$0x1] %vm295, 0.0
        %304 = vst.msk [vmem:[%s294 + $0xc0] sm:$0x1] %vm295, 0.0
        %305 = vst.msk [vmem:[%s294 + $0xd8] sm:$0x1] %vm295, 0.0
        %306 = vst.msk [vmem:[%s294 + $0xf0] sm:$0x1] %vm295, 0.0
        %307 = vst.msk [vmem:[%s294 + $0x108] sm:$0x1] %vm295, 0.0
        %308 = vst.msk [vmem:[%s294 + $0x120] sm:$0x1] %vm295, 0.0
        %309 = vst.msk [vmem:[%s294 + $0x138] sm:$0x1] %vm295, 0.0
        %310 = vst.msk [vmem:[%s294 + $0x150] sm:$0x1] %vm295, 0.0
        %311 = vst.msk [vmem:[%s294 + $0x168] sm:$0x1] %vm295, 0.0
        %312 = vst.msk [vmem:[%s294 + $0x11] sm:$0x1] %vm295, 0.0
        %313 = vst.msk [vmem:[%s294 + $0x29] sm:$0x1] %vm295, 0.0
        %314 = vst.msk [vmem:[%s294 + $0x41] sm:$0x1] %vm295, 0.0
        %315 = vst.msk [vmem:[%s294 + $0x59] sm:$0x1] %vm295, 0.0
        %316 = vst.msk [vmem:[%s294 + $0x71] sm:$0x1] %vm295, 0.0
        %317 = vst.msk [vmem:[%s294 + $0x89] sm:$0x1] %vm295, 0.0
        %318 = vst.msk [vmem:[%s294 + $0xa1] sm:$0x1] %vm295, 0.0
        %319 = vst.msk [vmem:[%s294 + $0xb9] sm:$0x1] %vm295, 0.0
        %320 = vst.msk [vmem:[%s294 + $0xd1] sm:$0x1] %vm295, 0.0
        %321 = vst.msk [vmem:[%s294 + $0xe9] sm:$0x1] %vm295, 0.0
        %322 = vst.msk [vmem:[%s294 + $0x101] sm:$0x1] %vm295, 0.0
        %323 = vst.msk [vmem:[%s294 + $0x119] sm:$0x1] %vm295, 0.0
        %324 = vst.msk [vmem:[%s294 + $0x131] sm:$0x1] %vm295, 0.0
        %325 = vst.msk [vmem:[%s294 + $0x149] sm:$0x1] %vm295, 0.0
        %326 = vst.msk [vmem:[%s294 + $0x161] sm:$0x1] %vm295, 0.0
        %327 = vst.msk [vmem:[%s294 + $0x179] sm:$0x1] %vm295, 0.0
        %328 = vst.msk [vmem:[%s294 + $0x1] sm:$0xff] %vm285, %v253
        %329 = vst.msk [vmem:[%s294 + $0x9] sm:$0xff] %vm285, %v254
        %330 = vst.msk [vmem:[%s294 + $0x19] sm:$0xff] %vm285, %v255
        %331 = vst.msk [vmem:[%s294 + $0x21] sm:$0xff] %vm285, %v256
        %332 = vst.msk [vmem:[%s294 + $0x31] sm:$0xff] %vm285, %v257
        %333 = vst.msk [vmem:[%s294 + $0x39] sm:$0xff] %vm285, %v258
        %334 = vst.msk [vmem:[%s294 + $0x49] sm:$0xff] %vm285, %v259
        %335 = vst.msk [vmem:[%s294 + $0x51] sm:$0xff] %vm285, %v260
        %336 = vst.msk [vmem:[%s294 + $0x61] sm:$0xff] %vm285, %v261
        %337 = vst.msk [vmem:[%s294 + $0x69] sm:$0xff] %vm285, %v262
        %338 = vst.msk [vmem:[%s294 + $0x79] sm:$0xff] %vm285, %v263
        %339 = vst.msk [vmem:[%s294 + $0x81] sm:$0xff] %vm285, %v264
        %340 = vst.msk [vmem:[%s294 + $0x91] sm:$0xff] %vm285, %v265
        %341 = vst.msk [vmem:[%s294 + $0x99] sm:$0xff] %vm285, %v266
        %342 = vst.msk [vmem:[%s294 + $0xa9] sm:$0xff] %vm285, %v267
        %343 = vst.msk [vmem:[%s294 + $0xb1] sm:$0xff] %vm285, %v268
        %344 = vst.msk [vmem:[%s294 + $0xc1] sm:$0xff] %vm285, %v269
        %345 = vst.msk [vmem:[%s294 + $0xc9] sm:$0xff] %vm285, %v270
        %346 = vst.msk [vmem:[%s294 + $0xd9] sm:$0xff] %vm285, %v271
        %347 = vst.msk [vmem:[%s294 + $0xe1] sm:$0xff] %vm285, %v272
        %348 = vst.msk [vmem:[%s294 + $0xf1] sm:$0xff] %vm285, %v273
        %349 = vst.msk [vmem:[%s294 + $0xf9] sm:$0xff] %vm285, %v274
        %350 = vst.msk [vmem:[%s294 + $0x109] sm:$0xff] %vm285, %v275
        %351 = vst.msk [vmem:[%s294 + $0x111] sm:$0xff] %vm285, %v276
        %352 = vst.msk [vmem:[%s294 + $0x121] sm:$0xff] %vm285, %v277
        %353 = vst.msk [vmem:[%s294 + $0x129] sm:$0xff] %vm285, %v278
        %354 = vst.msk [vmem:[%s294 + $0x139] sm:$0xff] %vm285, %v279
        %355 = vst.msk [vmem:[%s294 + $0x141] sm:$0xff] %vm285, %v280
        %356 = vst.msk [vmem:[%s294 + $0x151] sm:$0xff] %vm285, %v281
        %357 = vst.msk [vmem:[%s294 + $0x159] sm:$0xff] %vm285, %v282
        %358 = vst.msk [vmem:[%s294 + $0x169] sm:$0xff] %vm285, %v283
        %359 = vst.msk [vmem:[%s294 + $0x171] sm:$0xff] %vm285, %v284
      $region36: #{tpu_custom_call.1} parent=31 // pred_fallthru
        _
      %s360 = smul.u32 %s19, 8
      %s361 = smul.u32 %s360, 24
      %s362 = scalar_lea.vmem [#allocation2], %s361
      %v363 = vld [vmem:[%s362] sm:$0xff]
      %v364 = vld [vmem:[%s362 + $0x8] sm:$0xff]
      %v365 = vld [vmem:[%s362 + $0x18] sm:$0xff]
      %v366 = vld [vmem:[%s362 + $0x20] sm:$0xff]
      %v367 = vld [vmem:[%s362 + $0x30] sm:$0xff]
      %v368 = vld [vmem:[%s362 + $0x38] sm:$0xff]
      %v369 = vld [vmem:[%s362 + $0x48] sm:$0xff]
      %v370 = vld [vmem:[%s362 + $0x50] sm:$0xff]
      %v371 = vld [vmem:[%s362 + $0x60] sm:$0xff]
      %v372 = vld [vmem:[%s362 + $0x68] sm:$0xff]
      %v373 = vld [vmem:[%s362 + $0x78] sm:$0xff]
      %v374 = vld [vmem:[%s362 + $0x80] sm:$0xff]
      %v375 = vld [vmem:[%s362 + $0x90] sm:$0xff]
      %v376 = vld [vmem:[%s362 + $0x98] sm:$0xff]
      %v377 = vld [vmem:[%s362 + $0xa8] sm:$0xff]
      %v378 = vld [vmem:[%s362 + $0xb0] sm:$0xff]
      %v379 = vld [vmem:[%s362 + $0x1] sm:$0xff]
      %v380 = vld [vmem:[%s362 + $0x9] sm:$0xff]
      %v381 = vld [vmem:[%s362 + $0x19] sm:$0xff]
      %v382 = vld [vmem:[%s362 + $0x21] sm:$0xff]
      %v383 = vld [vmem:[%s362 + $0x31] sm:$0xff]
      %v384 = vld [vmem:[%s362 + $0x39] sm:$0xff]
      %v385 = vld [vmem:[%s362 + $0x49] sm:$0xff]
      %v386 = vld [vmem:[%s362 + $0x51] sm:$0xff]
      %v387 = vld [vmem:[%s362 + $0x61] sm:$0xff]
      %v388 = vld [vmem:[%s362 + $0x69] sm:$0xff]
      %v389 = vld [vmem:[%s362 + $0x79] sm:$0xff]
      %v390 = vld [vmem:[%s362 + $0x81] sm:$0xff]
      %v391 = vld [vmem:[%s362 + $0x91] sm:$0xff]
      %v392 = vld [vmem:[%s362 + $0x99] sm:$0xff]
      %v393 = vld [vmem:[%s362 + $0xa9] sm:$0xff]
      %v394 = vld [vmem:[%s362 + $0xb1] sm:$0xff]
      %v395 = vld [vmem:[%s362 + $0x2] sm:$0xff]
      %v396 = vld [vmem:[%s362 + $0xa] sm:$0xff]
      %v397 = vld [vmem:[%s362 + $0x1a] sm:$0xff]
      %v398 = vld [vmem:[%s362 + $0x22] sm:$0xff]
      %v399 = vld [vmem:[%s362 + $0x32] sm:$0xff]
      %v400 = vld [vmem:[%s362 + $0x3a] sm:$0xff]
      %v401 = vld [vmem:[%s362 + $0x4a] sm:$0xff]
      %v402 = vld [vmem:[%s362 + $0x52] sm:$0xff]
      %v403 = vld [vmem:[%s362 + $0x62] sm:$0xff]
      %v404 = vld [vmem:[%s362 + $0x6a] sm:$0xff]
      %v405 = vld [vmem:[%s362 + $0x7a] sm:$0xff]
      %v406 = vld [vmem:[%s362 + $0x82] sm:$0xff]
      %v407 = vld [vmem:[%s362 + $0x92] sm:$0xff]
      %v408 = vld [vmem:[%s362 + $0x9a] sm:$0xff]
      %v409 = vld [vmem:[%s362 + $0xaa] sm:$0xff]
      %v410 = vld [vmem:[%s362 + $0xb2] sm:$0xff]
      %s411 = sadd.s32 %s360, 1
      %s412 = smul.u32 %s411, 24
      %s413 = scalar_lea.vmem [#allocation2], %s412
      %v414 = vld [vmem:[%s413] sm:$0xff]
      %v415 = vld [vmem:[%s413 + $0x8] sm:$0xff]
      %v416 = vld [vmem:[%s413 + $0x18] sm:$0xff]
      %v417 = vld [vmem:[%s413 + $0x20] sm:$0xff]
      %v418 = vld [vmem:[%s413 + $0x30] sm:$0xff]
      %v419 = vld [vmem:[%s413 + $0x38] sm:$0xff]
      %v420 = vld [vmem:[%s413 + $0x48] sm:$0xff]
      %v421 = vld [vmem:[%s413 + $0x50] sm:$0xff]
      %v422 = vld [vmem:[%s413 + $0x60] sm:$0xff]
      %v423 = vld [vmem:[%s413 + $0x68] sm:$0xff]
      %v424 = vld [vmem:[%s413 + $0x78] sm:$0xff]
      %v425 = vld [vmem:[%s413 + $0x80] sm:$0xff]
      %v426 = vld [vmem:[%s413 + $0x90] sm:$0xff]
      %v427 = vld [vmem:[%s413 + $0x98] sm:$0xff]
      %v428 = vld [vmem:[%s413 + $0xa8] sm:$0xff]
      %v429 = vld [vmem:[%s413 + $0xb0] sm:$0xff]
      %v430 = vld [vmem:[%s413 + $0x1] sm:$0xff]
      %v431 = vld [vmem:[%s413 + $0x9] sm:$0xff]
      %v432 = vld [vmem:[%s413 + $0x19] sm:$0xff]
      %v433 = vld [vmem:[%s413 + $0x21] sm:$0xff]
      %v434 = vld [vmem:[%s413 + $0x31] sm:$0xff]
      %v435 = vld [vmem:[%s413 + $0x39] sm:$0xff]
      %v436 = vld [vmem:[%s413 + $0x49] sm:$0xff]
      %v437 = vld [vmem:[%s413 + $0x51] sm:$0xff]
      %v438 = vld [vmem:[%s413 + $0x61] sm:$0xff]
      %v439 = vld [vmem:[%s413 + $0x69] sm:$0xff]
      %v440 = vld [vmem:[%s413 + $0x79] sm:$0xff]
      %v441 = vld [vmem:[%s413 + $0x81] sm:$0xff]
      %v442 = vld [vmem:[%s413 + $0x91] sm:$0xff]
      %v443 = vld [vmem:[%s413 + $0x99] sm:$0xff]
      %v444 = vld [vmem:[%s413 + $0xa9] sm:$0xff]
      %v445 = vld [vmem:[%s413 + $0xb1] sm:$0xff]
      %v446 = vld [vmem:[%s413 + $0x2] sm:$0xff]
      %v447 = vld [vmem:[%s413 + $0xa] sm:$0xff]
      %v448 = vld [vmem:[%s413 + $0x1a] sm:$0xff]
      %v449 = vld [vmem:[%s413 + $0x22] sm:$0xff]
      %v450 = vld [vmem:[%s413 + $0x32] sm:$0xff]
      %v451 = vld [vmem:[%s413 + $0x3a] sm:$0xff]
      %v452 = vld [vmem:[%s413 + $0x4a] sm:$0xff]
      %v453 = vld [vmem:[%s413 + $0x52] sm:$0xff]
      %v454 = vld [vmem:[%s413 + $0x62] sm:$0xff]
      %v455 = vld [vmem:[%s413 + $0x6a] sm:$0xff]
      %v456 = vld [vmem:[%s413 + $0x7a] sm:$0xff]
      %v457 = vld [vmem:[%s413 + $0x82] sm:$0xff]
      %v458 = vld [vmem:[%s413 + $0x92] sm:$0xff]
      %v459 = vld [vmem:[%s413 + $0x9a] sm:$0xff]
      %v460 = vld [vmem:[%s413 + $0xaa] sm:$0xff]
      %v461 = vld [vmem:[%s413 + $0xb2] sm:$0xff]
      %s462 = sadd.s32 %s360, 2
      %s463 = smul.u32 %s462, 24
      %s464 = scalar_lea.vmem [#allocation2], %s463
      %v465 = vld [vmem:[%s464] sm:$0xff]
      %v466 = vld [vmem:[%s464 + $0x8] sm:$0xff]
      %v467 = vld [vmem:[%s464 + $0x18] sm:$0xff]
      %v468 = vld [vmem:[%s464 + $0x20] sm:$0xff]
      %v469 = vld [vmem:[%s464 + $0x30] sm:$0xff]
      %v470 = vld [vmem:[%s464 + $0x38] sm:$0xff]
      %v471 = vld [vmem:[%s464 + $0x48] sm:$0xff]
      %v472 = vld [vmem:[%s464 + $0x50] sm:$0xff]
      %v473 = vld [vmem:[%s464 + $0x60] sm:$0xff]
      %v474 = vld [vmem:[%s464 + $0x68] sm:$0xff]
      %v475 = vld [vmem:[%s464 + $0x78] sm:$0xff]
      %v476 = vld [vmem:[%s464 + $0x80] sm:$0xff]
      %v477 = vld [vmem:[%s464 + $0x90] sm:$0xff]
      %v478 = vld [vmem:[%s464 + $0x98] sm:$0xff]
      %v479 = vld [vmem:[%s464 + $0xa8] sm:$0xff]
      %v480 = vld [vmem:[%s464 + $0xb0] sm:$0xff]
      %v481 = vld [vmem:[%s464 + $0x1] sm:$0xff]
      %v482 = vld [vmem:[%s464 + $0x9] sm:$0xff]
      %v483 = vld [vmem:[%s464 + $0x19] sm:$0xff]
      %v484 = vld [vmem:[%s464 + $0x21] sm:$0xff]
      %v485 = vld [vmem:[%s464 + $0x31] sm:$0xff]
      %v486 = vld [vmem:[%s464 + $0x39] sm:$0xff]
      %v487 = vld [vmem:[%s464 + $0x49] sm:$0xff]
      %v488 = vld [vmem:[%s464 + $0x51] sm:$0xff]
      %v489 = vld [vmem:[%s464 + $0x61] sm:$0xff]
      %v490 = vld [vmem:[%s464 + $0x69] sm:$0xff]
      %v491 = vld [vmem:[%s464 + $0x79] sm:$0xff]
      %v492 = vld [vmem:[%s464 + $0x81] sm:$0xff]
      %v493 = vld [vmem:[%s464 + $0x91] sm:$0xff]
      %v494 = vld [vmem:[%s464 + $0x99] sm:$0xff]
      %v495 = vld [vmem:[%s464 + $0xa9] sm:$0xff]
      %v496 = vld [vmem:[%s464 + $0xb1] sm:$0xff]
      %v497 = vld [vmem:[%s464 + $0x2] sm:$0xff]
      %v498 = vld [vmem:[%s464 + $0xa] sm:$0xff]
      %v499 = vld [vmem:[%s464 + $0x1a] sm:$0xff]
      %v500 = vld [vmem:[%s464 + $0x22] sm:$0xff]
      %v501 = vld [vmem:[%s464 + $0x32] sm:$0xff]
      %v502 = vld [vmem:[%s464 + $0x3a] sm:$0xff]
      %v503 = vld [vmem:[%s464 + $0x4a] sm:$0xff]
      %v504 = vld [vmem:[%s464 + $0x52] sm:$0xff]
      %v505 = vld [vmem:[%s464 + $0x62] sm:$0xff]
      %v506 = vld [vmem:[%s464 + $0x6a] sm:$0xff]
      %v507 = vld [vmem:[%s464 + $0x7a] sm:$0xff]
      %v508 = vld [vmem:[%s464 + $0x82] sm:$0xff]
      %v509 = vld [vmem:[%s464 + $0x92] sm:$0xff]
      %v510 = vld [vmem:[%s464 + $0x9a] sm:$0xff]
      %v511 = vld [vmem:[%s464 + $0xaa] sm:$0xff]
      %v512 = vld [vmem:[%s464 + $0xb2] sm:$0xff]
      %v513 = vld [vmem:[%s1] sm:$0xf]
      %v514 = vld [vmem:[%s1 + $0x4] sm:$0xf]
      %vm515 = vcmask 31744
      %v517 = vsel %vm515, %v379, 0
      %v520 = vsel %vm515, %v380, 0
      %v523 = vsel %vm515, %v381, 0
      %v526 = vsel %vm515, %v382, 0
      %v529 = vsel %vm515, %v383, 0
      %v532 = vsel %vm515, %v384, 0
      %v535 = vsel %vm515, %v385, 0
      %v538 = vsel %vm515, %v386, 0
      %v541 = vsel %vm515, %v387, 0
      %v544 = vsel %vm515, %v388, 0
      %v547 = vsel %vm515, %v389, 0
      %v550 = vsel %vm515, %v390, 0
      %v553 = vsel %vm515, %v391, 0
      %v556 = vsel %vm515, %v392, 0
      %v559 = vsel %vm515, %v393, 0
      %v562 = vsel %vm515, %v394, 0
      %vm564 = vcmask 1043456
      %v566 = vsel %vm564, %v514, 0
      %568 = vmatprep.subr.mxu0 0.0
      %569 = vmatpush1.msra.mxu0 %v566
      %570 = vmatprep.subr.mxu0 0.0
      %571 = vmatpush1.msra.mxu0 0.0
      %572 = vmatprep.subr.mxu0 0.0
      %573 = vmatpush1.msra.mxu0 0.0
      %574 = vmatprep.subr.mxu0 0.0
      %575 = vmatpush1.msra.mxu0 0.0
      %576 = vmatprep.subr.mxu0 0.0
      %577 = vmatpush1.msra.mxu0 0.0
      %578 = vmatprep.subr.mxu0 0.0
      %579 = vmatpush1.msra.mxu0 0.0
      %580 = vmatprep.subr.mxu0 0.0
      %581 = vmatpush1.msra.mxu0 0.0
      %582 = vmatprep.subr.mxu0 0.0
      %583 = vmatpush1.msra.mxu0 0.0
      %584 = vmatprep.subr.mxu0 0.0
      %585 = vmatpush1.msra.mxu0 0.0
      %586 = vmatprep.subr.mxu0 0.0
      %587 = vmatpush1.msra.mxu0 0.0
      %588 = vmatprep.subr.mxu0 0.0
      %589 = vmatpush1.msra.mxu0 0.0
      %590 = vmatprep.subr.mxu0 0.0
      %591 = vmatpush1.msra.mxu0 0.0
      %592 = vmatprep.subr.mxu0 0.0
      %593 = vmatpush1.msra.mxu0 0.0
      %594 = vmatprep.subr.mxu0 0.0
      %595 = vmatpush1.msra.mxu0 0.0
      %596 = vmatprep.subr.mxu0 0.0
      %597 = vmatpush1.msra.mxu0 0.0
      %598 = vmatprep.subr.mxu0 0.0
      %599 = vmatpush1.msra.mxu0 0.0
      %600 = vmatprep.subr.mxu0 0.0
      %601 = vmatpush1.msra.mxu0 0.0
      %602 = vmatprep.subr.mxu0 0.0
      %603 = vmatpush1.msra.mxu0 0.0
      %604 = vmatprep.subr.mxu0 0.0
      %605 = vmatpush1.msra.mxu0 0.0
      %606 = vmatprep.subr.mxu0 0.0
      %607 = vmatpush1.msra.mxu0 0.0
      %608 = vmatprep.subr.mxu0 0.0
      %609 = vmatpush1.msra.mxu0 0.0
      %610 = vmatprep.subr.mxu0 0.0
      %611 = vmatpush1.msra.mxu0 0.0
      %612 = vmatprep.subr.mxu0 0.0
      %613 = vmatpush1.msra.mxu0 0.0
      %614 = vmatprep.subr.mxu0 0.0
      %615 = vmatpush1.msra.mxu0 0.0
      %616 = vmatprep.subr.mxu0 0.0
      %617 = vmatpush1.msra.mxu0 0.0
      %618 = vmatprep.subr.mxu0 0.0
      %619 = vmatpush1.msra.mxu0 0.0
      %620 = vmatprep.subr.mxu0 0.0
      %621 = vmatpush1.msra.mxu0 0.0
      %622 = vmatprep.subr.mxu0 0.0
      %623 = vmatpush1.msra.mxu0 0.0
      %624 = vmatprep.subr.mxu0 0.0
      %625 = vmatpush1.msra.mxu0 0.0
      %626 = vmatprep.subr.mxu0 0.0
      %627 = vmatpush1.msra.mxu0 0.0
      %628 = vmatprep.subr.mxu0 0.0
      %629 = vmatpush1.msra.mxu0 0.0
      %630 = vmatprep.subr.mxu0 0.0
      %631 = vmatpush1.msra.mxu0 0.0
      %632 = vmatprep.mubr.f32.mxu0 0.0
      %633 = vmatmul.mubr.f32.gmra.mrb[0].mxu0 %v517
      %v634 = vpop.f32.mrb[0].mxu0
      %v635 = vadd.f32 0.0, %v634
      %v636 = vpop.f32.mrb[0].mxu0
      %637 = vmatprep.mubr.f32.mxu0 0.0
      %638 = vmatmul.mubr.f32.gmra.mrb[0].mxu0 %v520
      %v639 = vpop.f32.mrb[0].mxu0
      %v640 = vadd.f32 0.0, %v639
      %v641 = vpop.f32.mrb[0].mxu0
      %642 = vmatprep.mubr.f32.mxu0 0.0
      %643 = vmatmul.mubr.f32.gmra.mrb[0].mxu0 %v523
      %v644 = vpop.f32.mrb[0].mxu0
      %v645 = vadd.f32 0.0, %v644
      %v646 = vpop.f32.mrb[0].mxu0
      %647 = vmatprep.mubr.f32.mxu0 0.0
      %648 = vmatmul.mubr.f32.gmra.mrb[0].mxu0 %v526
      %v649 = vpop.f32.mrb[0].mxu0
      %v650 = vadd.f32 0.0, %v649
      %v651 = vpop.f32.mrb[0].mxu0
      %652 = vmatprep.mubr.f32.mxu0 0.0
      %653 = vmatmul.mubr.f32.gmra.mrb[0].mxu0 %v529
      %v654 = vpop.f32.mrb[0].mxu0
      %v655 = vadd.f32 0.0, %v654
      %v656 = vpop.f32.mrb[0].mxu0
      %657 = vmatprep.mubr.f32.mxu0 0.0
      %658 = vmatmul.mubr.f32.gmra.mrb[0].mxu0 %v532
      %v659 = vpop.f32.mrb[0].mxu0
      %v660 = vadd.f32 0.0, %v659
      %v661 = vpop.f32.mrb[0].mxu0
      %662 = vmatprep.mubr.f32.mxu0 0.0
      %663 = vmatmul.mubr.f32.gmra.mrb[0].mxu0 %v535
      %v664 = vpop.f32.mrb[0].mxu0
      %v665 = vadd.f32 0.0, %v664
      %v666 = vpop.f32.mrb[0].mxu0
      %667 = vmatprep.mubr.f32.mxu0 0.0
      %668 = vmatmul.mubr.f32.gmra.mrb[0].mxu0 %v538
      %v669 = vpop.f32.mrb[0].mxu0
      %v670 = vadd.f32 0.0, %v669
      %v671 = vpop.f32.mrb[0].mxu0
      %672 = vmatprep.mubr.f32.mxu0 0.0
      %673 = vmatmul.mubr.f32.gmra.mrb[0].mxu0 %v541
      %v674 = vpop.f32.mrb[0].mxu0
      %v675 = vadd.f32 0.0, %v674
      %v676 = vpop.f32.mrb[0].mxu0
      %677 = vmatprep.mubr.f32.mxu0 0.0
      %678 = vmatmul.mubr.f32.gmra.mrb[0].mxu0 %v544
      %v679 = vpop.f32.mrb[0].mxu0
      %v680 = vadd.f32 0.0, %v679
      %v681 = vpop.f32.mrb[0].mxu0
      %682 = vmatprep.mubr.f32.mxu0 0.0
      %683 = vmatmul.mubr.f32.gmra.mrb[0].mxu0 %v547
      %v684 = vpop.f32.mrb[0].mxu0
      %v685 = vadd.f32 0.0, %v684
      %v686 = vpop.f32.mrb[0].mxu0
      %687 = vmatprep.mubr.f32.mxu0 0.0
      %688 = vmatmul.mubr.f32.gmra.mrb[0].mxu0 %v550
      %v689 = vpop.f32.mrb[0].mxu0
      %v690 = vadd.f32 0.0, %v689
      %v691 = vpop.f32.mrb[0].mxu0
      %692 = vmatprep.mubr.f32.mxu0 0.0
      %693 = vmatmul.mubr.f32.gmra.mrb[0].mxu0 %v553
      %v694 = vpop.f32.mrb[0].mxu0
      %v695 = vadd.f32 0.0, %v694
      %v696 = vpop.f32.mrb[0].mxu0
      %697 = vmatprep.mubr.f32.mxu0 0.0
      %698 = vmatmul.mubr.f32.gmra.mrb[0].mxu0 %v556
      %v699 = vpop.f32.mrb[0].mxu0
      %v700 = vadd.f32 0.0, %v699
      %v701 = vpop.f32.mrb[0].mxu0
      %702 = vmatprep.mubr.f32.mxu0 0.0
      %703 = vmatmul.mubr.f32.gmra.mrb[0].mxu0 %v559
      %v704 = vpop.f32.mrb[0].mxu0
      %v705 = vadd.f32 0.0, %v704
      %v706 = vpop.f32.mrb[0].mxu0
      %707 = vmatprep.mubr.f32.mxu0 0.0
      %708 = vmatmul.mubr.f32.gmra.mrb[0].mxu0 %v562
      %v709 = vpop.f32.mrb[0].mxu0
      %v710 = vadd.f32 0.0, %v709
      %v711 = vpop.f32.mrb[0].mxu0
      %712 = vdwg.mxu0
      %v714 = vsel %vm515, %v363, 0
      %v717 = vsel %vm515, %v364, 0
      %v720 = vsel %vm515, %v365, 0
      %v723 = vsel %vm515, %v366, 0
      %v726 = vsel %vm515, %v367, 0
      %v729 = vsel %vm515, %v368, 0
      %v732 = vsel %vm515, %v369, 0
      %v735 = vsel %vm515, %v370, 0
      %v738 = vsel %vm515, %v371, 0
      %v741 = vsel %vm515, %v372, 0
      %v744 = vsel %vm515, %v373, 0
      %v747 = vsel %vm515, %v374, 0
      %v750 = vsel %vm515, %v375, 0
      %v753 = vsel %vm515, %v376, 0
      %v756 = vsel %vm515, %v377, 0
      %v759 = vsel %vm515, %v378, 0
      %v762 = vsel %vm564, %v513, 0
      %764 = vmatprep.subr.mxu0 0.0
      %765 = vmatpush1.msra.mxu0 %v762
      %766 = vmatprep.subr.mxu0 0.0
      %767 = vmatpush1.msra.mxu0 0.0
      %768 = vmatprep.subr.mxu0 0.0
      %769 = vmatpush1.msra.mxu0 0.0
      %770 = vmatprep.subr.mxu0 0.0
      %771 = vmatpush1.msra.mxu0 0.0
      %772 = vmatprep.subr.mxu0 0.0
      %773 = vmatpush1.msra.mxu0 0.0
      %774 = vmatprep.subr.mxu0 0.0
      %775 = vmatpush1.msra.mxu0 0.0
      %776 = vmatprep.subr.mxu0 0.0
      %777 = vmatpush1.msra.mxu0 0.0
      %778 = vmatprep.subr.mxu0 0.0
      %779 = vmatpush1.msra.mxu0 0.0
      %780 = vmatprep.subr.mxu0 0.0
      %781 = vmatpush1.msra.mxu0 0.0
      %782 = vmatprep.subr.mxu0 0.0
      %783 = vmatpush1.msra.mxu0 0.0
      %784 = vmatprep.subr.mxu0 0.0
      %785 = vmatpush1.msra.mxu0 0.0
      %786 = vmatprep.subr.mxu0 0.0
      %787 = vmatpush1.msra.mxu0 0.0
      %788 = vmatprep.subr.mxu0 0.0
      %789 = vmatpush1.msra.mxu0 0.0
      %790 = vmatprep.subr.mxu0 0.0
      %791 = vmatpush1.msra.mxu0 0.0
      %792 = vmatprep.subr.mxu0 0.0
      %793 = vmatpush1.msra.mxu0 0.0
      %794 = vmatprep.subr.mxu0 0.0
      %795 = vmatpush1.msra.mxu0 0.0
      %796 = vmatprep.subr.mxu0 0.0
      %797 = vmatpush1.msra.mxu0 0.0
      %798 = vmatprep.subr.mxu0 0.0
      %799 = vmatpush1.msra.mxu0 0.0
      %800 = vmatprep.subr.mxu0 0.0
      %801 = vmatpush1.msra.mxu0 0.0
      %802 = vmatprep.subr.mxu0 0.0
      %803 = vmatpush1.msra.mxu0 0.0
      %804 = vmatprep.subr.mxu0 0.0
      %805 = vmatpush1.msra.mxu0 0.0
      %806 = vmatprep.subr.mxu0 0.0
      %807 = vmatpush1.msra.mxu0 0.0
      %808 = vmatprep.subr.mxu0 0.0
      %809 = vmatpush1.msra.mxu0 0.0
      %810 = vmatprep.subr.mxu0 0.0
      %811 = vmatpush1.msra.mxu0 0.0
      %812 = vmatprep.subr.mxu0 0.0
      %813 = vmatpush1.msra.mxu0 0.0
      %814 = vmatprep.subr.mxu0 0.0
      %815 = vmatpush1.msra.mxu0 0.0
      %816 = vmatprep.subr.mxu0 0.0
      %817 = vmatpush1.msra.mxu0 0.0
      %818 = vmatprep.subr.mxu0 0.0
      %819 = vmatpush1.msra.mxu0 0.0
      %820 = vmatprep.subr.mxu0 0.0
      %821 = vmatpush1.msra.mxu0 0.0
      %822 = vmatprep.subr.mxu0 0.0
      %823 = vmatpush1.msra.mxu0 0.0
      %824 = vmatprep.subr.mxu0 0.0
      %825 = vmatpush1.msra.mxu0 0.0
      %826 = vmatprep.subr.mxu0 0.0
      %827 = vmatpush1.msra.mxu0 0.0
      %828 = vmatprep.mubr.f32.mxu0 0.0
      %829 = vmatmul.mubr.f32.gmra.mrb[0].mxu0 %v714
      %v830 = vpop.f32.mrb[0].mxu0
      %v831 = vadd.f32 %v635, %v830
      %v832 = vpop.f32.mrb[0].mxu0
      %833 = vmatprep.mubr.f32.mxu0 0.0
      %834 = vmatmul.mubr.f32.gmra.mrb[0].mxu0 %v717
      %v835 = vpop.f32.mrb[0].mxu0
      %v836 = vadd.f32 %v640, %v835
      %v837 = vpop.f32.mrb[0].mxu0
      %838 = vmatprep.mubr.f32.mxu0 0.0
      %839 = vmatmul.mubr.f32.gmra.mrb[0].mxu0 %v720
      %v840 = vpop.f32.mrb[0].mxu0
      %v841 = vadd.f32 %v645, %v840
      %v842 = vpop.f32.mrb[0].mxu0
      %843 = vmatprep.mubr.f32.mxu0 0.0
      %844 = vmatmul.mubr.f32.gmra.mrb[0].mxu0 %v723
      %v845 = vpop.f32.mrb[0].mxu0
      %v846 = vadd.f32 %v650, %v845
      %v847 = vpop.f32.mrb[0].mxu0
      %848 = vmatprep.mubr.f32.mxu0 0.0
      %849 = vmatmul.mubr.f32.gmra.mrb[0].mxu0 %v726
      %v850 = vpop.f32.mrb[0].mxu0
      %v851 = vadd.f32 %v655, %v850
      %v852 = vpop.f32.mrb[0].mxu0
      %853 = vmatprep.mubr.f32.mxu0 0.0
      %854 = vmatmul.mubr.f32.gmra.mrb[0].mxu0 %v729
      %v855 = vpop.f32.mrb[0].mxu0
      %v856 = vadd.f32 %v660, %v855
      %v857 = vpop.f32.mrb[0].mxu0
      %858 = vmatprep.mubr.f32.mxu0 0.0
      %859 = vmatmul.mubr.f32.gmra.mrb[0].mxu0 %v732
      %v860 = vpop.f32.mrb[0].mxu0
      %v861 = vadd.f32 %v665, %v860
      %v862 = vpop.f32.mrb[0].mxu0
      %863 = vmatprep.mubr.f32.mxu0 0.0
      %864 = vmatmul.mubr.f32.gmra.mrb[0].mxu0 %v735
      %v865 = vpop.f32.mrb[0].mxu0
      %v866 = vadd.f32 %v670, %v865
      %v867 = vpop.f32.mrb[0].mxu0
      %868 = vmatprep.mubr.f32.mxu0 0.0
      %869 = vmatmul.mubr.f32.gmra.mrb[0].mxu0 %v738
      %v870 = vpop.f32.mrb[0].mxu0
      %v871 = vadd.f32 %v675, %v870
      %v872 = vpop.f32.mrb[0].mxu0
      %873 = vmatprep.mubr.f32.mxu0 0.0
      %874 = vmatmul.mubr.f32.gmra.mrb[0].mxu0 %v741
      %v875 = vpop.f32.mrb[0].mxu0
      %v876 = vadd.f32 %v680, %v875
      %v877 = vpop.f32.mrb[0].mxu0
      %878 = vmatprep.mubr.f32.mxu0 0.0
      %879 = vmatmul.mubr.f32.gmra.mrb[0].mxu0 %v744
      %v880 = vpop.f32.mrb[0].mxu0
      %v881 = vadd.f32 %v685, %v880
      %v882 = vpop.f32.mrb[0].mxu0
      %883 = vmatprep.mubr.f32.mxu0 0.0
      %884 = vmatmul.mubr.f32.gmra.mrb[0].mxu0 %v747
      %v885 = vpop.f32.mrb[0].mxu0
      %v886 = vadd.f32 %v690, %v885
      %v887 = vpop.f32.mrb[0].mxu0
      %888 = vmatprep.mubr.f32.mxu0 0.0
      %889 = vmatmul.mubr.f32.gmra.mrb[0].mxu0 %v750
      %v890 = vpop.f32.mrb[0].mxu0
      %v891 = vadd.f32 %v695, %v890
      %v892 = vpop.f32.mrb[0].mxu0
      %893 = vmatprep.mubr.f32.mxu0 0.0
      %894 = vmatmul.mubr.f32.gmra.mrb[0].mxu0 %v753
      %v895 = vpop.f32.mrb[0].mxu0
      %v896 = vadd.f32 %v700, %v895
      %v897 = vpop.f32.mrb[0].mxu0
      %898 = vmatprep.mubr.f32.mxu0 0.0
      %899 = vmatmul.mubr.f32.gmra.mrb[0].mxu0 %v756
      %v900 = vpop.f32.mrb[0].mxu0
      %v901 = vadd.f32 %v705, %v900
      %v902 = vpop.f32.mrb[0].mxu0
      %903 = vmatprep.mubr.f32.mxu0 0.0
      %904 = vmatmul.mubr.f32.gmra.mrb[0].mxu0 %v759
      %v905 = vpop.f32.mrb[0].mxu0
      %v906 = vadd.f32 %v710, %v905
      %v907 = vpop.f32.mrb[0].mxu0
      %908 = vdwg.mxu0
      %v909 = vld [vmem:[%s1 + $0x8] sm:$0xf]
      %v911 = vsel %vm515, %v395, 0
      %v914 = vsel %vm515, %v396, 0
      %v917 = vsel %vm515, %v397, 0
      %v920 = vsel %vm515, %v398, 0
      %v923 = vsel %vm515, %v399, 0
      %v926 = vsel %vm515, %v400, 0
      %v929 = vsel %vm515, %v401, 0
      %v932 = vsel %vm515, %v402, 0
      %v935 = vsel %vm515, %v403, 0
      %v938 = vsel %vm515, %v404, 0
      %v941 = vsel %vm515, %v405, 0
      %v944 = vsel %vm515, %v406, 0
      %v947 = vsel %vm515, %v407, 0
      %v950 = vsel %vm515, %v408, 0
      %v953 = vsel %vm515, %v409, 0
      %v956 = vsel %vm515, %v410, 0
      %v959 = vsel %vm564, %v909, 0
      %961 = vmatprep.subr.mxu0 0.0
      %962 = vmatpush1.msra.mxu0 %v959
      %963 = vmatprep.subr.mxu0 0.0
      %964 = vmatpush1.msra.mxu0 0.0
      %965 = vmatprep.subr.mxu0 0.0
      %966 = vmatpush1.msra.mxu0 0.0
      %967 = vmatprep.subr.mxu0 0.0
      %968 = vmatpush1.msra.mxu0 0.0
      %969 = vmatprep.subr.mxu0 0.0
      %970 = vmatpush1.msra.mxu0 0.0
      %971 = vmatprep.subr.mxu0 0.0
      %972 = vmatpush1.msra.mxu0 0.0
      %973 = vmatprep.subr.mxu0 0.0
      %974 = vmatpush1.msra.mxu0 0.0
      %975 = vmatprep.subr.mxu0 0.0
      %976 = vmatpush1.msra.mxu0 0.0
      %977 = vmatprep.subr.mxu0 0.0
      %978 = vmatpush1.msra.mxu0 0.0
      %979 = vmatprep.subr.mxu0 0.0
      %980 = vmatpush1.msra.mxu0 0.0
      %981 = vmatprep.subr.mxu0 0.0
      %982 = vmatpush1.msra.mxu0 0.0
      %983 = vmatprep.subr.mxu0 0.0
      %984 = vmatpush1.msra.mxu0 0.0
      %985 = vmatprep.subr.mxu0 0.0
      %986 = vmatpush1.msra.mxu0 0.0
      %987 = vmatprep.subr.mxu0 0.0
      %988 = vmatpush1.msra.mxu0 0.0
      %989 = vmatprep.subr.mxu0 0.0
      %990 = vmatpush1.msra.mxu0 0.0
      %991 = vmatprep.subr.mxu0 0.0
      %992 = vmatpush1.msra.mxu0 0.0
      %993 = vmatprep.subr.mxu0 0.0
      %994 = vmatpush1.msra.mxu0 0.0
      %995 = vmatprep.subr.mxu0 0.0
      %996 = vmatpush1.msra.mxu0 0.0
      %997 = vmatprep.subr.mxu0 0.0
      %998 = vmatpush1.msra.mxu0 0.0
      %999 = vmatprep.subr.mxu0 0.0
      %1000 = vmatpush1.msra.mxu0 0.0
      %1001 = vmatprep.subr.mxu0 0.0
      %1002 = vmatpush1.msra.mxu0 0.0
      %1003 = vmatprep.subr.mxu0 0.0
      %1004 = vmatpush1.msra.mxu0 0.0
      %1005 = vmatprep.subr.mxu0 0.0
      %1006 = vmatpush1.msra.mxu0 0.0
      %1007 = vmatprep.subr.mxu0 0.0
      %1008 = vmatpush1.msra.mxu0 0.0
      %1009 = vmatprep.subr.mxu0 0.0
      %1010 = vmatpush1.msra.mxu0 0.0
      %1011 = vmatprep.subr.mxu0 0.0
      %1012 = vmatpush1.msra.mxu0 0.0
      %1013 = vmatprep.subr.mxu0 0.0
      %1014 = vmatpush1.msra.mxu0 0.0
      %1015 = vmatprep.subr.mxu0 0.0
      %1016 = vmatpush1.msra.mxu0 0.0
      %1017 = vmatprep.subr.mxu0 0.0
      %1018 = vmatpush1.msra.mxu0 0.0
      %1019 = vmatprep.subr.mxu0 0.0
      %1020 = vmatpush1.msra.mxu0 0.0
      %1021 = vmatprep.subr.mxu0 0.0
      %1022 = vmatpush1.msra.mxu0 0.0
      %1023 = vmatprep.subr.mxu0 0.0
      %1024 = vmatpush1.msra.mxu0 0.0
      %1025 = vmatprep.mubr.f32.mxu0 0.0
      %1026 = vmatmul.mubr.f32.gmra.mrb[0].mxu0 %v911
      %v1027 = vpop.f32.mrb[0].mxu0
      %v1028 = vadd.f32 0.0, %v1027
      %v1029 = vpop.f32.mrb[0].mxu0
      %1030 = vmatprep.mubr.f32.mxu0 0.0
      %1031 = vmatmul.mubr.f32.gmra.mrb[0].mxu0 %v914
      %v1032 = vpop.f32.mrb[0].mxu0
      %v1033 = vadd.f32 0.0, %v1032
      %v1034 = vpop.f32.mrb[0].mxu0
      %1035 = vmatprep.mubr.f32.mxu0 0.0
      %1036 = vmatmul.mubr.f32.gmra.mrb[0].mxu0 %v917
      %v1037 = vpop.f32.mrb[0].mxu0
      %v1038 = vadd.f32 0.0, %v1037
      %v1039 = vpop.f32.mrb[0].mxu0
      %1040 = vmatprep.mubr.f32.mxu0 0.0
      %1041 = vmatmul.mubr.f32.gmra.mrb[0].mxu0 %v920
      %v1042 = vpop.f32.mrb[0].mxu0
      %v1043 = vadd.f32 0.0, %v1042
      %v1044 = vpop.f32.mrb[0].mxu0
      %1045 = vmatprep.mubr.f32.mxu0 0.0
      %1046 = vmatmul.mubr.f32.gmra.mrb[0].mxu0 %v923
      %v1047 = vpop.f32.mrb[0].mxu0
      %v1048 = vadd.f32 0.0, %v1047
      %v1049 = vpop.f32.mrb[0].mxu0
      %1050 = vmatprep.mubr.f32.mxu0 0.0
      %1051 = vmatmul.mubr.f32.gmra.mrb[0].mxu0 %v926
      %v1052 = vpop.f32.mrb[0].mxu0
      %v1053 = vadd.f32 0.0, %v1052
      %v1054 = vpop.f32.mrb[0].mxu0
      %1055 = vmatprep.mubr.f32.mxu0 0.0
      %1056 = vmatmul.mubr.f32.gmra.mrb[0].mxu0 %v929
      %v1057 = vpop.f32.mrb[0].mxu0
      %v1058 = vadd.f32 0.0, %v1057
      %v1059 = vpop.f32.mrb[0].mxu0
      %1060 = vmatprep.mubr.f32.mxu0 0.0
      %1061 = vmatmul.mubr.f32.gmra.mrb[0].mxu0 %v932
      %v1062 = vpop.f32.mrb[0].mxu0
      %v1063 = vadd.f32 0.0, %v1062
      %v1064 = vpop.f32.mrb[0].mxu0
      %1065 = vmatprep.mubr.f32.mxu0 0.0
      %1066 = vmatmul.mubr.f32.gmra.mrb[0].mxu0 %v935
      %v1067 = vpop.f32.mrb[0].mxu0
      %v1068 = vadd.f32 0.0, %v1067
      %v1069 = vpop.f32.mrb[0].mxu0
      %1070 = vmatprep.mubr.f32.mxu0 0.0
      %1071 = vmatmul.mubr.f32.gmra.mrb[0].mxu0 %v938
      %v1072 = vpop.f32.mrb[0].mxu0
      %v1073 = vadd.f32 0.0, %v1072
      %v1074 = vpop.f32.mrb[0].mxu0
      %1075 = vmatprep.mubr.f32.mxu0 0.0
      %1076 = vmatmul.mubr.f32.gmra.mrb[0].mxu0 %v941
      %v1077 = vpop.f32.mrb[0].mxu0
      %v1078 = vadd.f32 0.0, %v1077
      %v1079 = vpop.f32.mrb[0].mxu0
      %1080 = vmatprep.mubr.f32.mxu0 0.0
      %1081 = vmatmul.mubr.f32.gmra.mrb[0].mxu0 %v944
      %v1082 = vpop.f32.mrb[0].mxu0
      %v1083 = vadd.f32 0.0, %v1082
      %v1084 = vpop.f32.mrb[0].mxu0
      %1085 = vmatprep.mubr.f32.mxu0 0.0
      %1086 = vmatmul.mubr.f32.gmra.mrb[0].mxu0 %v947
      %v1087 = vpop.f32.mrb[0].mxu0
      %v1088 = vadd.f32 0.0, %v1087
      %v1089 = vpop.f32.mrb[0].mxu0
      %1090 = vmatprep.mubr.f32.mxu0 0.0
      %1091 = vmatmul.mubr.f32.gmra.mrb[0].mxu0 %v950
      %v1092 = vpop.f32.mrb[0].mxu0
      %v1093 = vadd.f32 0.0, %v1092
      %v1094 = vpop.f32.mrb[0].mxu0
      %1095 = vmatprep.mubr.f32.mxu0 0.0
      %1096 = vmatmul.mubr.f32.gmra.mrb[0].mxu0 %v953
      %v1097 = vpop.f32.mrb[0].mxu0
      %v1098 = vadd.f32 0.0, %v1097
      %v1099 = vpop.f32.mrb[0].mxu0
      %1100 = vmatprep.mubr.f32.mxu0 0.0
      %1101 = vmatmul.mubr.f32.gmra.mrb[0].mxu0 %v956
      %v1102 = vpop.f32.mrb[0].mxu0
      %v1103 = vadd.f32 0.0, %v1102
      %v1104 = vpop.f32.mrb[0].mxu0
      %1105 = vdwg.mxu0
      %v1106 = vadd.f32 %v831, %v1028
      %v1107 = vadd.f32 %v836, %v1033
      %v1108 = vadd.f32 %v841, %v1038
      %v1109 = vadd.f32 %v846, %v1043
      %v1110 = vadd.f32 %v851, %v1048
      %v1111 = vadd.f32 %v856, %v1053
      %v1112 = vadd.f32 %v861, %v1058
      %v1113 = vadd.f32 %v866, %v1063
      %v1114 = vadd.f32 %v871, %v1068
      %v1115 = vadd.f32 %v876, %v1073
      %v1116 = vadd.f32 %v881, %v1078
      %v1117 = vadd.f32 %v886, %v1083
      %v1118 = vadd.f32 %v891, %v1088
      %v1119 = vadd.f32 %v896, %v1093
      %v1120 = vadd.f32 %v901, %v1098
      %v1121 = vadd.f32 %v906, %v1103
      %v1122 = vld [vmem:[%s1 + $0xc] sm:$0xf]
      %v1124 = vsel %vm515, %v414, 0
      %v1127 = vsel %vm515, %v415, 0
      %v1130 = vsel %vm515, %v416, 0
      %v1133 = vsel %vm515, %v417, 0
      %v1136 = vsel %vm515, %v418, 0
      %v1139 = vsel %vm515, %v419, 0
      %v1142 = vsel %vm515, %v420, 0
      %v1145 = vsel %vm515, %v421, 0
      %v1148 = vsel %vm515, %v422, 0
      %v1151 = vsel %vm515, %v423, 0
      %v1154 = vsel %vm515, %v424, 0
      %v1157 = vsel %vm515, %v425, 0
      %v1160 = vsel %vm515, %v426, 0
      %v1163 = vsel %vm515, %v427, 0
      %v1166 = vsel %vm515, %v428, 0
      %v1169 = vsel %vm515, %v429, 0
      %v1172 = vsel %vm564, %v1122, 0
      %1174 = vmatprep.subr.mxu0 0.0
      %1175 = vmatpush1.msra.mxu0 %v1172
      %1176 = vmatprep.subr.mxu0 0.0
      %1177 = vmatpush1.msra.mxu0 0.0
      %1178 = vmatprep.subr.mxu0 0.0
      %1179 = vmatpush1.msra.mxu0 0.0
      %1180 = vmatprep.subr.mxu0 0.0
      %1181 = vmatpush1.msra.mxu0 0.0
      %1182 = vmatprep.subr.mxu0 0.0
      %1183 = vmatpush1.msra.mxu0 0.0
      %1184 = vmatprep.subr.mxu0 0.0
      %1185 = vmatpush1.msra.mxu0 0.0
      %1186 = vmatprep.subr.mxu0 0.0
      %1187 = vmatpush1.msra.mxu0 0.0
      %1188 = vmatprep.subr.mxu0 0.0
      %1189 = vmatpush1.msra.mxu0 0.0
      %1190 = vmatprep.subr.mxu0 0.0
      %1191 = vmatpush1.msra.mxu0 0.0
      %1192 = vmatprep.subr.mxu0 0.0
      %1193 = vmatpush1.msra.mxu0 0.0
      %1194 = vmatprep.subr.mxu0 0.0
      %1195 = vmatpush1.msra.mxu0 0.0
      %1196 = vmatprep.subr.mxu0 0.0
      %1197 = vmatpush1.msra.mxu0 0.0
      %1198 = vmatprep.subr.mxu0 0.0
      %1199 = vmatpush1.msra.mxu0 0.0
      %1200 = vmatprep.subr.mxu0 0.0
      %1201 = vmatpush1.msra.mxu0 0.0
      %1202 = vmatprep.subr.mxu0 0.0
      %1203 = vmatpush1.msra.mxu0 0.0
      %1204 = vmatprep.subr.mxu0 0.0
      %1205 = vmatpush1.msra.mxu0 0.0
      %1206 = vmatprep.subr.mxu0 0.0
      %1207 = vmatpush1.msra.mxu0 0.0
      %1208 = vmatprep.subr.mxu0 0.0
      %1209 = vmatpush1.msra.mxu0 0.0
      %1210 = vmatprep.subr.mxu0 0.0
      %1211 = vmatpush1.msra.mxu0 0.0
      %1212 = vmatprep.subr.mxu0 0.0
      %1213 = vmatpush1.msra.mxu0 0.0
      %1214 = vmatprep.subr.mxu0 0.0
      %1215 = vmatpush1.msra.mxu0 0.0
      %1216 = vmatprep.subr.mxu0 0.0
      %1217 = vmatpush1.msra.mxu0 0.0
      %1218 = vmatprep.subr.mxu0 0.0
      %1219 = vmatpush1.msra.mxu0 0.0
      %1220 = vmatprep.subr.mxu0 0.0
      %1221 = vmatpush1.msra.mxu0 0.0
      %1222 = vmatprep.subr.mxu0 0.0
      %1223 = vmatpush1.msra.mxu0 0.0
      %1224 = vmatprep.subr.mxu0 0.0
      %1225 = vmatpush1.msra.mxu0 0.0
      %1226 = vmatprep.subr.mxu0 0.0
      %1227 = vmatpush1.msra.mxu0 0.0
      %1228 = vmatprep.subr.mxu0 0.0
      %1229 = vmatpush1.msra.mxu0 0.0
      %1230 = vmatprep.subr.mxu0 0.0
      %1231 = vmatpush1.msra.mxu0 0.0
      %1232 = vmatprep.subr.mxu0 0.0
      %1233 = vmatpush1.msra.mxu0 0.0
      %1234 = vmatprep.subr.mxu0 0.0
      %1235 = vmatpush1.msra.mxu0 0.0
      %1236 = vmatprep.subr.mxu0 0.0
      %1237 = vmatpush1.msra.mxu0 0.0
      %1238 = vmatprep.mubr.f32.mxu0 0.0
      %1239 = vmatmul.mubr.f32.gmra.mrb[0].mxu0 %v1124
      %v1240 = vpop.f32.mrb[0].mxu0
      %v1241 = vadd.f32 0.0, %v1240
      %v1242 = vpop.f32.mrb[0].mxu0
      %1243 = vmatprep.mubr.f32.mxu0 0.0
      %1244 = vmatmul.mubr.f32.gmra.mrb[0].mxu0 %v1127
      %v1245 = vpop.f32.mrb[0].mxu0
      %v1246 = vadd.f32 0.0, %v1245
      %v1247 = vpop.f32.mrb[0].mxu0
      %1248 = vmatprep.mubr.f32.mxu0 0.0
      %1249 = vmatmul.mubr.f32.gmra.mrb[0].mxu0 %v1130
      %v1250 = vpop.f32.mrb[0].mxu0
      %v1251 = vadd.f32 0.0, %v1250
      %v1252 = vpop.f32.mrb[0].mxu0
      %1253 = vmatprep.mubr.f32.mxu0 0.0
      %1254 = vmatmul.mubr.f32.gmra.mrb[0].mxu0 %v1133
      %v1255 = vpop.f32.mrb[0].mxu0
      %v1256 = vadd.f32 0.0, %v1255
      %v1257 = vpop.f32.mrb[0].mxu0
      %1258 = vmatprep.mubr.f32.mxu0 0.0
      %1259 = vmatmul.mubr.f32.gmra.mrb[0].mxu0 %v1136
      %v1260 = vpop.f32.mrb[0].mxu0
      %v1261 = vadd.f32 0.0, %v1260
      %v1262 = vpop.f32.mrb[0].mxu0
      %1263 = vmatprep.mubr.f32.mxu0 0.0
      %1264 = vmatmul.mubr.f32.gmra.mrb[0].mxu0 %v1139
      %v1265 = vpop.f32.mrb[0].mxu0
      %v1266 = vadd.f32 0.0, %v1265
      %v1267 = vpop.f32.mrb[0].mxu0
      %1268 = vmatprep.mubr.f32.mxu0 0.0
      %1269 = vmatmul.mubr.f32.gmra.mrb[0].mxu0 %v1142
      %v1270 = vpop.f32.mrb[0].mxu0
      %v1271 = vadd.f32 0.0, %v1270
      %v1272 = vpop.f32.mrb[0].mxu0
      %1273 = vmatprep.mubr.f32.mxu0 0.0
      %1274 = vmatmul.mubr.f32.gmra.mrb[0].mxu0 %v1145
      %v1275 = vpop.f32.mrb[0].mxu0
      %v1276 = vadd.f32 0.0, %v1275
      %v1277 = vpop.f32.mrb[0].mxu0
      %1278 = vmatprep.mubr.f32.mxu0 0.0
      %1279 = vmatmul.mubr.f32.gmra.mrb[0].mxu0 %v1148
      %v1280 = vpop.f32.mrb[0].mxu0
      %v1281 = vadd.f32 0.0, %v1280
      %v1282 = vpop.f32.mrb[0].mxu0
      %1283 = vmatprep.mubr.f32.mxu0 0.0
      %1284 = vmatmul.mubr.f32.gmra.mrb[0].mxu0 %v1151
      %v1285 = vpop.f32.mrb[0].mxu0
      %v1286 = vadd.f32 0.0, %v1285
      %v1287 = vpop.f32.mrb[0].mxu0
      %1288 = vmatprep.mubr.f32.mxu0 0.0
      %1289 = vmatmul.mubr.f32.gmra.mrb[0].mxu0 %v1154
      %v1290 = vpop.f32.mrb[0].mxu0
      %v1291 = vadd.f32 0.0, %v1290
      %v1292 = vpop.f32.mrb[0].mxu0
      %1293 = vmatprep.mubr.f32.mxu0 0.0
      %1294 = vmatmul.mubr.f32.gmra.mrb[0].mxu0 %v1157
      %v1295 = vpop.f32.mrb[0].mxu0
      %v1296 = vadd.f32 0.0, %v1295
      %v1297 = vpop.f32.mrb[0].mxu0
      %1298 = vmatprep.mubr.f32.mxu0 0.0
      %1299 = vmatmul.mubr.f32.gmra.mrb[0].mxu0 %v1160
      %v1300 = vpop.f32.mrb[0].mxu0
      %v1301 = vadd.f32 0.0, %v1300
      %v1302 = vpop.f32.mrb[0].mxu0
      %1303 = vmatprep.mubr.f32.mxu0 0.0
      %1304 = vmatmul.mubr.f32.gmra.mrb[0].mxu0 %v1163
      %v1305 = vpop.f32.mrb[0].mxu0
      %v1306 = vadd.f32 0.0, %v1305
      %v1307 = vpop.f32.mrb[0].mxu0
      %1308 = vmatprep.mubr.f32.mxu0 0.0
      %1309 = vmatmul.mubr.f32.gmra.mrb[0].mxu0 %v1166
      %v1310 = vpop.f32.mrb[0].mxu0
      %v1311 = vadd.f32 0.0, %v1310
      %v1312 = vpop.f32.mrb[0].mxu0
      %1313 = vmatprep.mubr.f32.mxu0 0.0
      %1314 = vmatmul.mubr.f32.gmra.mrb[0].mxu0 %v1169
      %v1315 = vpop.f32.mrb[0].mxu0
      %v1316 = vadd.f32 0.0, %v1315
      %v1317 = vpop.f32.mrb[0].mxu0
      %1318 = vdwg.mxu0
      %v1319 = vadd.f32 %v1106, %v1241
      %v1320 = vadd.f32 %v1107, %v1246
      %v1321 = vadd.f32 %v1108, %v1251
      %v1322 = vadd.f32 %v1109, %v1256
      %v1323 = vadd.f32 %v1110, %v1261
      %v1324 = vadd.f32 %v1111, %v1266
      %v1325 = vadd.f32 %v1112, %v1271
      %v1326 = vadd.f32 %v1113, %v1276
      %v1327 = vadd.f32 %v1114, %v1281
      %v1328 = vadd.f32 %v1115, %v1286
      %v1329 = vadd.f32 %v1116, %v1291
      %v1330 = vadd.f32 %v1117, %v1296
      %v1331 = vadd.f32 %v1118, %v1301
      %v1332 = vadd.f32 %v1119, %v1306
      %v1333 = vadd.f32 %v1120, %v1311
      %v1334 = vadd.f32 %v1121, %v1316
      %v1335 = vld [vmem:[%s1 + $0x10] sm:$0xf]
      %v1337 = vsel %vm515, %v430, 0
      %v1340 = vsel %vm515, %v431, 0
      %v1343 = vsel %vm515, %v432, 0
      %v1346 = vsel %vm515, %v433, 0
      %v1349 = vsel %vm515, %v434, 0
      %v1352 = vsel %vm515, %v435, 0
      %v1355 = vsel %vm515, %v436, 0
      %v1358 = vsel %vm515, %v437, 0
      %v1361 = vsel %vm515, %v438, 0
      %v1364 = vsel %vm515, %v439, 0
      %v1367 = vsel %vm515, %v440, 0
      %v1370 = vsel %vm515, %v441, 0
      %v1373 = vsel %vm515, %v442, 0
      %v1376 = vsel %vm515, %v443, 0
      %v1379 = vsel %vm515, %v444, 0
      %v1382 = vsel %vm515, %v445, 0
      %v1385 = vsel %vm564, %v1335, 0
      %1387 = vmatprep.subr.mxu0 0.0
      %1388 = vmatpush1.msra.mxu0 %v1385
      %1389 = vmatprep.subr.mxu0 0.0
      %1390 = vmatpush1.msra.mxu0 0.0
      %1391 = vmatprep.subr.mxu0 0.0
      %1392 = vmatpush1.msra.mxu0 0.0
      %1393 = vmatprep.subr.mxu0 0.0
      %1394 = vmatpush1.msra.mxu0 0.0
      %1395 = vmatprep.subr.mxu0 0.0
      %1396 = vmatpush1.msra.mxu0 0.0
      %1397 = vmatprep.subr.mxu0 0.0
      %1398 = vmatpush1.msra.mxu0 0.0
      %1399 = vmatprep.subr.mxu0 0.0
      %1400 = vmatpush1.msra.mxu0 0.0
      %1401 = vmatprep.subr.mxu0 0.0
      %1402 = vmatpush1.msra.mxu0 0.0
      %1403 = vmatprep.subr.mxu0 0.0
      %1404 = vmatpush1.msra.mxu0 0.0
      %1405 = vmatprep.subr.mxu0 0.0
      %1406 = vmatpush1.msra.mxu0 0.0
      %1407 = vmatprep.subr.mxu0 0.0
      %1408 = vmatpush1.msra.mxu0 0.0
      %1409 = vmatprep.subr.mxu0 0.0
      %1410 = vmatpush1.msra.mxu0 0.0
      %1411 = vmatprep.subr.mxu0 0.0
      %1412 = vmatpush1.msra.mxu0 0.0
      %1413 = vmatprep.subr.mxu0 0.0
      %1414 = vmatpush1.msra.mxu0 0.0
      %1415 = vmatprep.subr.mxu0 0.0
      %1416 = vmatpush1.msra.mxu0 0.0
      %1417 = vmatprep.subr.mxu0 0.0
      %1418 = vmatpush1.msra.mxu0 0.0
      %1419 = vmatprep.subr.mxu0 0.0
      %1420 = vmatpush1.msra.mxu0 0.0
      %1421 = vmatprep.subr.mxu0 0.0
      %1422 = vmatpush1.msra.mxu0 0.0
      %1423 = vmatprep.subr.mxu0 0.0
      %1424 = vmatpush1.msra.mxu0 0.0
      %1425 = vmatprep.subr.mxu0 0.0
      %1426 = vmatpush1.msra.mxu0 0.0
      %1427 = vmatprep.subr.mxu0 0.0
      %1428 = vmatpush1.msra.mxu0 0.0
      %1429 = vmatprep.subr.mxu0 0.0
      %1430 = vmatpush1.msra.mxu0 0.0
      %1431 = vmatprep.subr.mxu0 0.0
      %1432 = vmatpush1.msra.mxu0 0.0
      %1433 = vmatprep.subr.mxu0 0.0
      %1434 = vmatpush1.msra.mxu0 0.0
      %1435 = vmatprep.subr.mxu0 0.0
      %1436 = vmatpush1.msra.mxu0 0.0
      %1437 = vmatprep.subr.mxu0 0.0
      %1438 = vmatpush1.msra.mxu0 0.0
      %1439 = vmatprep.subr.mxu0 0.0
      %1440 = vmatpush1.msra.mxu0 0.0
      %1441 = vmatprep.subr.mxu0 0.0
      %1442 = vmatpush1.msra.mxu0 0.0
      %1443 = vmatprep.subr.mxu0 0.0
      %1444 = vmatpush1.msra.mxu0 0.0
      %1445 = vmatprep.subr.mxu0 0.0
      %1446 = vmatpush1.msra.mxu0 0.0
      %1447 = vmatprep.subr.mxu0 0.0
      %1448 = vmatpush1.msra.mxu0 0.0
      %1449 = vmatprep.subr.mxu0 0.0
      %1450 = vmatpush1.msra.mxu0 0.0
      %1451 = vmatprep.mubr.f32.mxu0 0.0
      %1452 = vmatmul.mubr.f32.gmra.mrb[0].mxu0 %v1337
      %v1453 = vpop.f32.mrb[0].mxu0
      %v1454 = vadd.f32 0.0, %v1453
      %v1455 = vpop.f32.mrb[0].mxu0
      %1456 = vmatprep.mubr.f32.mxu0 0.0
      %1457 = vmatmul.mubr.f32.gmra.mrb[0].mxu0 %v1340
      %v1458 = vpop.f32.mrb[0].mxu0
      %v1459 = vadd.f32 0.0, %v1458
      %v1460 = vpop.f32.mrb[0].mxu0
      %1461 = vmatprep.mubr.f32.mxu0 0.0
      %1462 = vmatmul.mubr.f32.gmra.mrb[0].mxu0 %v1343
      %v1463 = vpop.f32.mrb[0].mxu0
      %v1464 = vadd.f32 0.0, %v1463
      %v1465 = vpop.f32.mrb[0].mxu0
      %1466 = vmatprep.mubr.f32.mxu0 0.0
      %1467 = vmatmul.mubr.f32.gmra.mrb[0].mxu0 %v1346
      %v1468 = vpop.f32.mrb[0].mxu0
      %v1469 = vadd.f32 0.0, %v1468
      %v1470 = vpop.f32.mrb[0].mxu0
      %1471 = vmatprep.mubr.f32.mxu0 0.0
      %1472 = vmatmul.mubr.f32.gmra.mrb[0].mxu0 %v1349
      %v1473 = vpop.f32.mrb[0].mxu0
      %v1474 = vadd.f32 0.0, %v1473
      %v1475 = vpop.f32.mrb[0].mxu0
      %1476 = vmatprep.mubr.f32.mxu0 0.0
      %1477 = vmatmul.mubr.f32.gmra.mrb[0].mxu0 %v1352
      %v1478 = vpop.f32.mrb[0].mxu0
      %v1479 = vadd.f32 0.0, %v1478
      %v1480 = vpop.f32.mrb[0].mxu0
      %1481 = vmatprep.mubr.f32.mxu0 0.0
      %1482 = vmatmul.mubr.f32.gmra.mrb[0].mxu0 %v1355
      %v1483 = vpop.f32.mrb[0].mxu0
      %v1484 = vadd.f32 0.0, %v1483
      %v1485 = vpop.f32.mrb[0].mxu0
      %1486 = vmatprep.mubr.f32.mxu0 0.0
      %1487 = vmatmul.mubr.f32.gmra.mrb[0].mxu0 %v1358
      %v1488 = vpop.f32.mrb[0].mxu0
      %v1489 = vadd.f32 0.0, %v1488
      %v1490 = vpop.f32.mrb[0].mxu0
      %1491 = vmatprep.mubr.f32.mxu0 0.0
      %1492 = vmatmul.mubr.f32.gmra.mrb[0].mxu0 %v1361
      %v1493 = vpop.f32.mrb[0].mxu0
      %v1494 = vadd.f32 0.0, %v1493
      %v1495 = vpop.f32.mrb[0].mxu0
      %1496 = vmatprep.mubr.f32.mxu0 0.0
      %1497 = vmatmul.mubr.f32.gmra.mrb[0].mxu0 %v1364
      %v1498 = vpop.f32.mrb[0].mxu0
      %v1499 = vadd.f32 0.0, %v1498
      %v1500 = vpop.f32.mrb[0].mxu0
      %1501 = vmatprep.mubr.f32.mxu0 0.0
      %1502 = vmatmul.mubr.f32.gmra.mrb[0].mxu0 %v1367
      %v1503 = vpop.f32.mrb[0].mxu0
      %v1504 = vadd.f32 0.0, %v1503
      %v1505 = vpop.f32.mrb[0].mxu0
      %1506 = vmatprep.mubr.f32.mxu0 0.0
      %1507 = vmatmul.mubr.f32.gmra.mrb[0].mxu0 %v1370
      %v1508 = vpop.f32.mrb[0].mxu0
      %v1509 = vadd.f32 0.0, %v1508
      %v1510 = vpop.f32.mrb[0].mxu0
      %1511 = vmatprep.mubr.f32.mxu0 0.0
      %1512 = vmatmul.mubr.f32.gmra.mrb[0].mxu0 %v1373
      %v1513 = vpop.f32.mrb[0].mxu0
      %v1514 = vadd.f32 0.0, %v1513
      %v1515 = vpop.f32.mrb[0].mxu0
      %1516 = vmatprep.mubr.f32.mxu0 0.0
      %1517 = vmatmul.mubr.f32.gmra.mrb[0].mxu0 %v1376
      %v1518 = vpop.f32.mrb[0].mxu0
      %v1519 = vadd.f32 0.0, %v1518
      %v1520 = vpop.f32.mrb[0].mxu0
      %1521 = vmatprep.mubr.f32.mxu0 0.0
      %1522 = vmatmul.mubr.f32.gmra.mrb[0].mxu0 %v1379
      %v1523 = vpop.f32.mrb[0].mxu0
      %v1524 = vadd.f32 0.0, %v1523
      %v1525 = vpop.f32.mrb[0].mxu0
      %1526 = vmatprep.mubr.f32.mxu0 0.0
      %1527 = vmatmul.mubr.f32.gmra.mrb[0].mxu0 %v1382
      %v1528 = vpop.f32.mrb[0].mxu0
      %v1529 = vadd.f32 0.0, %v1528
      %v1530 = vpop.f32.mrb[0].mxu0
      %1531 = vdwg.mxu0
      %v1532 = vadd.f32 %v1319, %v1454
      %v1533 = vadd.f32 %v1320, %v1459
      %v1534 = vadd.f32 %v1321, %v1464
      %v1535 = vadd.f32 %v1322, %v1469
      %v1536 = vadd.f32 %v1323, %v1474
      %v1537 = vadd.f32 %v1324, %v1479
      %v1538 = vadd.f32 %v1325, %v1484
      %v1539 = vadd.f32 %v1326, %v1489
      %v1540 = vadd.f32 %v1327, %v1494
      %v1541 = vadd.f32 %v1328, %v1499
      %v1542 = vadd.f32 %v1329, %v1504
      %v1543 = vadd.f32 %v1330, %v1509
      %v1544 = vadd.f32 %v1331, %v1514
      %v1545 = vadd.f32 %v1332, %v1519
      %v1546 = vadd.f32 %v1333, %v1524
      %v1547 = vadd.f32 %v1334, %v1529
      %v1548 = vld [vmem:[%s1 + $0x14] sm:$0xf]
      %v1550 = vsel %vm515, %v446, 0
      %v1553 = vsel %vm515, %v447, 0
      %v1556 = vsel %vm515, %v448, 0
      %v1559 = vsel %vm515, %v449, 0
      %v1562 = vsel %vm515, %v450, 0
      %v1565 = vsel %vm515, %v451, 0
      %v1568 = vsel %vm515, %v452, 0
      %v1571 = vsel %vm515, %v453, 0
      %v1574 = vsel %vm515, %v454, 0
      %v1577 = vsel %vm515, %v455, 0
      %v1580 = vsel %vm515, %v456, 0
      %v1583 = vsel %vm515, %v457, 0
      %v1586 = vsel %vm515, %v458, 0
      %v1589 = vsel %vm515, %v459, 0
      %v1592 = vsel %vm515, %v460, 0
      %v1595 = vsel %vm515, %v461, 0
      %v1598 = vsel %vm564, %v1548, 0
      %1600 = vmatprep.subr.mxu0 0.0
      %1601 = vmatpush1.msra.mxu0 %v1598
      %1602 = vmatprep.subr.mxu0 0.0
      %1603 = vmatpush1.msra.mxu0 0.0
      %1604 = vmatprep.subr.mxu0 0.0
      %1605 = vmatpush1.msra.mxu0 0.0
      %1606 = vmatprep.subr.mxu0 0.0
      %1607 = vmatpush1.msra.mxu0 0.0
      %1608 = vmatprep.subr.mxu0 0.0
      %1609 = vmatpush1.msra.mxu0 0.0
      %1610 = vmatprep.subr.mxu0 0.0
      %1611 = vmatpush1.msra.mxu0 0.0
      %1612 = vmatprep.subr.mxu0 0.0
      %1613 = vmatpush1.msra.mxu0 0.0
      %1614 = vmatprep.subr.mxu0 0.0
      %1615 = vmatpush1.msra.mxu0 0.0
      %1616 = vmatprep.subr.mxu0 0.0
      %1617 = vmatpush1.msra.mxu0 0.0
      %1618 = vmatprep.subr.mxu0 0.0
      %1619 = vmatpush1.msra.mxu0 0.0
      %1620 = vmatprep.subr.mxu0 0.0
      %1621 = vmatpush1.msra.mxu0 0.0
      %1622 = vmatprep.subr.mxu0 0.0
      %1623 = vmatpush1.msra.mxu0 0.0
      %1624 = vmatprep.subr.mxu0 0.0
      %1625 = vmatpush1.msra.mxu0 0.0
      %1626 = vmatprep.subr.mxu0 0.0
      %1627 = vmatpush1.msra.mxu0 0.0
      %1628 = vmatprep.subr.mxu0 0.0
      %1629 = vmatpush1.msra.mxu0 0.0
      %1630 = vmatprep.subr.mxu0 0.0
      %1631 = vmatpush1.msra.mxu0 0.0
      %1632 = vmatprep.subr.mxu0 0.0
      %1633 = vmatpush1.msra.mxu0 0.0
      %1634 = vmatprep.subr.mxu0 0.0
      %1635 = vmatpush1.msra.mxu0 0.0
      %1636 = vmatprep.subr.mxu0 0.0
      %1637 = vmatpush1.msra.mxu0 0.0
      %1638 = vmatprep.subr.mxu0 0.0
      %1639 = vmatpush1.msra.mxu0 0.0
      %1640 = vmatprep.subr.mxu0 0.0
      %1641 = vmatpush1.msra.mxu0 0.0
      %1642 = vmatprep.subr.mxu0 0.0
      %1643 = vmatpush1.msra.mxu0 0.0
      %1644 = vmatprep.subr.mxu0 0.0
      %1645 = vmatpush1.msra.mxu0 0.0
      %1646 = vmatprep.subr.mxu0 0.0
      %1647 = vmatpush1.msra.mxu0 0.0
      %1648 = vmatprep.subr.mxu0 0.0
      %1649 = vmatpush1.msra.mxu0 0.0
      %1650 = vmatprep.subr.mxu0 0.0
      %1651 = vmatpush1.msra.mxu0 0.0
      %1652 = vmatprep.subr.mxu0 0.0
      %1653 = vmatpush1.msra.mxu0 0.0
      %1654 = vmatprep.subr.mxu0 0.0
      %1655 = vmatpush1.msra.mxu0 0.0
      %1656 = vmatprep.subr.mxu0 0.0
      %1657 = vmatpush1.msra.mxu0 0.0
      %1658 = vmatprep.subr.mxu0 0.0
      %1659 = vmatpush1.msra.mxu0 0.0
      %1660 = vmatprep.subr.mxu0 0.0
      %1661 = vmatpush1.msra.mxu0 0.0
      %1662 = vmatprep.subr.mxu0 0.0
      %1663 = vmatpush1.msra.mxu0 0.0
      %1664 = vmatprep.mubr.f32.mxu0 0.0
      %1665 = vmatmul.mubr.f32.gmra.mrb[0].mxu0 %v1550
      %v1666 = vpop.f32.mrb[0].mxu0
      %v1667 = vadd.f32 0.0, %v1666
      %v1668 = vpop.f32.mrb[0].mxu0
      %1669 = vmatprep.mubr.f32.mxu0 0.0
      %1670 = vmatmul.mubr.f32.gmra.mrb[0].mxu0 %v1553
      %v1671 = vpop.f32.mrb[0].mxu0
      %v1672 = vadd.f32 0.0, %v1671
      %v1673 = vpop.f32.mrb[0].mxu0
      %1674 = vmatprep.mubr.f32.mxu0 0.0
      %1675 = vmatmul.mubr.f32.gmra.mrb[0].mxu0 %v1556
      %v1676 = vpop.f32.mrb[0].mxu0
      %v1677 = vadd.f32 0.0, %v1676
      %v1678 = vpop.f32.mrb[0].mxu0
      %1679 = vmatprep.mubr.f32.mxu0 0.0
      %1680 = vmatmul.mubr.f32.gmra.mrb[0].mxu0 %v1559
      %v1681 = vpop.f32.mrb[0].mxu0
      %v1682 = vadd.f32 0.0, %v1681
      %v1683 = vpop.f32.mrb[0].mxu0
      %1684 = vmatprep.mubr.f32.mxu0 0.0
      %1685 = vmatmul.mubr.f32.gmra.mrb[0].mxu0 %v1562
      %v1686 = vpop.f32.mrb[0].mxu0
      %v1687 = vadd.f32 0.0, %v1686
      %v1688 = vpop.f32.mrb[0].mxu0
      %1689 = vmatprep.mubr.f32.mxu0 0.0
      %1690 = vmatmul.mubr.f32.gmra.mrb[0].mxu0 %v1565
      %v1691 = vpop.f32.mrb[0].mxu0
      %v1692 = vadd.f32 0.0, %v1691
      %v1693 = vpop.f32.mrb[0].mxu0
      %1694 = vmatprep.mubr.f32.mxu0 0.0
      %1695 = vmatmul.mubr.f32.gmra.mrb[0].mxu0 %v1568
      %v1696 = vpop.f32.mrb[0].mxu0
      %v1697 = vadd.f32 0.0, %v1696
      %v1698 = vpop.f32.mrb[0].mxu0
      %1699 = vmatprep.mubr.f32.mxu0 0.0
      %1700 = vmatmul.mubr.f32.gmra.mrb[0].mxu0 %v1571
      %v1701 = vpop.f32.mrb[0].mxu0
      %v1702 = vadd.f32 0.0, %v1701
      %v1703 = vpop.f32.mrb[0].mxu0
      %1704 = vmatprep.mubr.f32.mxu0 0.0
      %1705 = vmatmul.mubr.f32.gmra.mrb[0].mxu0 %v1574
      %v1706 = vpop.f32.mrb[0].mxu0
      %v1707 = vadd.f32 0.0, %v1706
      %v1708 = vpop.f32.mrb[0].mxu0
      %1709 = vmatprep.mubr.f32.mxu0 0.0
      %1710 = vmatmul.mubr.f32.gmra.mrb[0].mxu0 %v1577
      %v1711 = vpop.f32.mrb[0].mxu0
      %v1712 = vadd.f32 0.0, %v1711
      %v1713 = vpop.f32.mrb[0].mxu0
      %1714 = vmatprep.mubr.f32.mxu0 0.0
      %1715 = vmatmul.mubr.f32.gmra.mrb[0].mxu0 %v1580
      %v1716 = vpop.f32.mrb[0].mxu0
      %v1717 = vadd.f32 0.0, %v1716
      %v1718 = vpop.f32.mrb[0].mxu0
      %1719 = vmatprep.mubr.f32.mxu0 0.0
      %1720 = vmatmul.mubr.f32.gmra.mrb[0].mxu0 %v1583
      %v1721 = vpop.f32.mrb[0].mxu0
      %v1722 = vadd.f32 0.0, %v1721
      %v1723 = vpop.f32.mrb[0].mxu0
      %1724 = vmatprep.mubr.f32.mxu0 0.0
      %1725 = vmatmul.mubr.f32.gmra.mrb[0].mxu0 %v1586
      %v1726 = vpop.f32.mrb[0].mxu0
      %v1727 = vadd.f32 0.0, %v1726
      %v1728 = vpop.f32.mrb[0].mxu0
      %1729 = vmatprep.mubr.f32.mxu0 0.0
      %1730 = vmatmul.mubr.f32.gmra.mrb[0].mxu0 %v1589
      %v1731 = vpop.f32.mrb[0].mxu0
      %v1732 = vadd.f32 0.0, %v1731
      %v1733 = vpop.f32.mrb[0].mxu0
      %1734 = vmatprep.mubr.f32.mxu0 0.0
      %1735 = vmatmul.mubr.f32.gmra.mrb[0].mxu0 %v1592
      %v1736 = vpop.f32.mrb[0].mxu0
      %v1737 = vadd.f32 0.0, %v1736
      %v1738 = vpop.f32.mrb[0].mxu0
      %1739 = vmatprep.mubr.f32.mxu0 0.0
      %1740 = vmatmul.mubr.f32.gmra.mrb[0].mxu0 %v1595
      %v1741 = vpop.f32.mrb[0].mxu0
      %v1742 = vadd.f32 0.0, %v1741
      %v1743 = vpop.f32.mrb[0].mxu0
      %1744 = vdwg.mxu0
      %v1745 = vadd.f32 %v1532, %v1667
      %v1746 = vadd.f32 %v1533, %v1672
      %v1747 = vadd.f32 %v1534, %v1677
      %v1748 = vadd.f32 %v1535, %v1682
      %v1749 = vadd.f32 %v1536, %v1687
      %v1750 = vadd.f32 %v1537, %v1692
      %v1751 = vadd.f32 %v1538, %v1697
      %v1752 = vadd.f32 %v1539, %v1702
      %v1753 = vadd.f32 %v1540, %v1707
      %v1754 = vadd.f32 %v1541, %v1712
      %v1755 = vadd.f32 %v1542, %v1717
      %v1756 = vadd.f32 %v1543, %v1722
      %v1757 = vadd.f32 %v1544, %v1727
      %v1758 = vadd.f32 %v1545, %v1732
      %v1759 = vadd.f32 %v1546, %v1737
      %v1760 = vadd.f32 %v1547, %v1742
      %v1761 = vld [vmem:[%s1 + $0x18] sm:$0xf]
      %v1763 = vsel %vm515, %v465, 0
      %v1766 = vsel %vm515, %v466, 0
      %v1769 = vsel %vm515, %v467, 0
      %v1772 = vsel %vm515, %v468, 0
      %v1775 = vsel %vm515, %v469, 0
      %v1778 = vsel %vm515, %v470, 0
      %v1781 = vsel %vm515, %v471, 0
      %v1784 = vsel %vm515, %v472, 0
      %v1787 = vsel %vm515, %v473, 0
      %v1790 = vsel %vm515, %v474, 0
      %v1793 = vsel %vm515, %v475, 0
      %v1796 = vsel %vm515, %v476, 0
      %v1799 = vsel %vm515, %v477, 0
      %v1802 = vsel %vm515, %v478, 0
      %v1805 = vsel %vm515, %v479, 0
      %v1808 = vsel %vm515, %v480, 0
      %v1811 = vsel %vm564, %v1761, 0
      %1813 = vmatprep.subr.mxu0 0.0
      %1814 = vmatpush1.msra.mxu0 %v1811
      %1815 = vmatprep.subr.mxu0 0.0
      %1816 = vmatpush1.msra.mxu0 0.0
      %1817 = vmatprep.subr.mxu0 0.0
      %1818 = vmatpush1.msra.mxu0 0.0
      %1819 = vmatprep.subr.mxu0 0.0
      %1820 = vmatpush1.msra.mxu0 0.0
      %1821 = vmatprep.subr.mxu0 0.0
      %1822 = vmatpush1.msra.mxu0 0.0
      %1823 = vmatprep.subr.mxu0 0.0
      %1824 = vmatpush1.msra.mxu0 0.0
      %1825 = vmatprep.subr.mxu0 0.0
      %1826 = vmatpush1.msra.mxu0 0.0
      %1827 = vmatprep.subr.mxu0 0.0
      %1828 = vmatpush1.msra.mxu0 0.0
      %1829 = vmatprep.subr.mxu0 0.0
      %1830 = vmatpush1.msra.mxu0 0.0
      %1831 = vmatprep.subr.mxu0 0.0
      %1832 = vmatpush1.msra.mxu0 0.0
      %1833 = vmatprep.subr.mxu0 0.0
      %1834 = vmatpush1.msra.mxu0 0.0
      %1835 = vmatprep.subr.mxu0 0.0
      %1836 = vmatpush1.msra.mxu0 0.0
      %1837 = vmatprep.subr.mxu0 0.0
      %1838 = vmatpush1.msra.mxu0 0.0
      %1839 = vmatprep.subr.mxu0 0.0
      %1840 = vmatpush1.msra.mxu0 0.0
      %1841 = vmatprep.subr.mxu0 0.0
      %1842 = vmatpush1.msra.mxu0 0.0
      %1843 = vmatprep.subr.mxu0 0.0
      %1844 = vmatpush1.msra.mxu0 0.0
      %1845 = vmatprep.subr.mxu0 0.0
      %1846 = vmatpush1.msra.mxu0 0.0
      %1847 = vmatprep.subr.mxu0 0.0
      %1848 = vmatpush1.msra.mxu0 0.0
      %1849 = vmatprep.subr.mxu0 0.0
      %1850 = vmatpush1.msra.mxu0 0.0
      %1851 = vmatprep.subr.mxu0 0.0
      %1852 = vmatpush1.msra.mxu0 0.0
      %1853 = vmatprep.subr.mxu0 0.0
      %1854 = vmatpush1.msra.mxu0 0.0
      %1855 = vmatprep.subr.mxu0 0.0
      %1856 = vmatpush1.msra.mxu0 0.0
      %1857 = vmatprep.subr.mxu0 0.0
      %1858 = vmatpush1.msra.mxu0 0.0
      %1859 = vmatprep.subr.mxu0 0.0
      %1860 = vmatpush1.msra.mxu0 0.0
      %1861 = vmatprep.subr.mxu0 0.0
      %1862 = vmatpush1.msra.mxu0 0.0
      %1863 = vmatprep.subr.mxu0 0.0
      %1864 = vmatpush1.msra.mxu0 0.0
      %1865 = vmatprep.subr.mxu0 0.0
      %1866 = vmatpush1.msra.mxu0 0.0
      %1867 = vmatprep.subr.mxu0 0.0
      %1868 = vmatpush1.msra.mxu0 0.0
      %1869 = vmatprep.subr.mxu0 0.0
      %1870 = vmatpush1.msra.mxu0 0.0
      %1871 = vmatprep.subr.mxu0 0.0
      %1872 = vmatpush1.msra.mxu0 0.0
      %1873 = vmatprep.subr.mxu0 0.0
      %1874 = vmatpush1.msra.mxu0 0.0
      %1875 = vmatprep.subr.mxu0 0.0
      %1876 = vmatpush1.msra.mxu0 0.0
      %1877 = vmatprep.mubr.f32.mxu0 0.0
      %1878 = vmatmul.mubr.f32.gmra.mrb[0].mxu0 %v1763
      %v1879 = vpop.f32.mrb[0].mxu0
      %v1880 = vadd.f32 0.0, %v1879
      %v1881 = vpop.f32.mrb[0].mxu0
      %1882 = vmatprep.mubr.f32.mxu0 0.0
      %1883 = vmatmul.mubr.f32.gmra.mrb[0].mxu0 %v1766
      %v1884 = vpop.f32.mrb[0].mxu0
      %v1885 = vadd.f32 0.0, %v1884
      %v1886 = vpop.f32.mrb[0].mxu0
      %1887 = vmatprep.mubr.f32.mxu0 0.0
      %1888 = vmatmul.mubr.f32.gmra.mrb[0].mxu0 %v1769
      %v1889 = vpop.f32.mrb[0].mxu0
      %v1890 = vadd.f32 0.0, %v1889
      %v1891 = vpop.f32.mrb[0].mxu0
      %1892 = vmatprep.mubr.f32.mxu0 0.0
      %1893 = vmatmul.mubr.f32.gmra.mrb[0].mxu0 %v1772
      %v1894 = vpop.f32.mrb[0].mxu0
      %v1895 = vadd.f32 0.0, %v1894
      %v1896 = vpop.f32.mrb[0].mxu0
      %1897 = vmatprep.mubr.f32.mxu0 0.0
      %1898 = vmatmul.mubr.f32.gmra.mrb[0].mxu0 %v1775
      %v1899 = vpop.f32.mrb[0].mxu0
      %v1900 = vadd.f32 0.0, %v1899
      %v1901 = vpop.f32.mrb[0].mxu0
      %1902 = vmatprep.mubr.f32.mxu0 0.0
      %1903 = vmatmul.mubr.f32.gmra.mrb[0].mxu0 %v1778
      %v1904 = vpop.f32.mrb[0].mxu0
      %v1905 = vadd.f32 0.0, %v1904
      %v1906 = vpop.f32.mrb[0].mxu0
      %1907 = vmatprep.mubr.f32.mxu0 0.0
      %1908 = vmatmul.mubr.f32.gmra.mrb[0].mxu0 %v1781
      %v1909 = vpop.f32.mrb[0].mxu0
      %v1910 = vadd.f32 0.0, %v1909
      %v1911 = vpop.f32.mrb[0].mxu0
      %1912 = vmatprep.mubr.f32.mxu0 0.0
      %1913 = vmatmul.mubr.f32.gmra.mrb[0].mxu0 %v1784
      %v1914 = vpop.f32.mrb[0].mxu0
      %v1915 = vadd.f32 0.0, %v1914
      %v1916 = vpop.f32.mrb[0].mxu0
      %1917 = vmatprep.mubr.f32.mxu0 0.0
      %1918 = vmatmul.mubr.f32.gmra.mrb[0].mxu0 %v1787
      %v1919 = vpop.f32.mrb[0].mxu0
      %v1920 = vadd.f32 0.0, %v1919
      %v1921 = vpop.f32.mrb[0].mxu0
      %1922 = vmatprep.mubr.f32.mxu0 0.0
      %1923 = vmatmul.mubr.f32.gmra.mrb[0].mxu0 %v1790
      %v1924 = vpop.f32.mrb[0].mxu0
      %v1925 = vadd.f32 0.0, %v1924
      %v1926 = vpop.f32.mrb[0].mxu0
      %1927 = vmatprep.mubr.f32.mxu0 0.0
      %1928 = vmatmul.mubr.f32.gmra.mrb[0].mxu0 %v1793
      %v1929 = vpop.f32.mrb[0].mxu0
      %v1930 = vadd.f32 0.0, %v1929
      %v1931 = vpop.f32.mrb[0].mxu0
      %1932 = vmatprep.mubr.f32.mxu0 0.0
      %1933 = vmatmul.mubr.f32.gmra.mrb[0].mxu0 %v1796
      %v1934 = vpop.f32.mrb[0].mxu0
      %v1935 = vadd.f32 0.0, %v1934
      %v1936 = vpop.f32.mrb[0].mxu0
      %1937 = vmatprep.mubr.f32.mxu0 0.0
      %1938 = vmatmul.mubr.f32.gmra.mrb[0].mxu0 %v1799
      %v1939 = vpop.f32.mrb[0].mxu0
      %v1940 = vadd.f32 0.0, %v1939
      %v1941 = vpop.f32.mrb[0].mxu0
      %1942 = vmatprep.mubr.f32.mxu0 0.0
      %1943 = vmatmul.mubr.f32.gmra.mrb[0].mxu0 %v1802
      %v1944 = vpop.f32.mrb[0].mxu0
      %v1945 = vadd.f32 0.0, %v1944
      %v1946 = vpop.f32.mrb[0].mxu0
      %1947 = vmatprep.mubr.f32.mxu0 0.0
      %1948 = vmatmul.mubr.f32.gmra.mrb[0].mxu0 %v1805
      %v1949 = vpop.f32.mrb[0].mxu0
      %v1950 = vadd.f32 0.0, %v1949
      %v1951 = vpop.f32.mrb[0].mxu0
      %1952 = vmatprep.mubr.f32.mxu0 0.0
      %1953 = vmatmul.mubr.f32.gmra.mrb[0].mxu0 %v1808
      %v1954 = vpop.f32.mrb[0].mxu0
      %v1955 = vadd.f32 0.0, %v1954
      %v1956 = vpop.f32.mrb[0].mxu0
      %1957 = vdwg.mxu0
      %v1958 = vadd.f32 %v1745, %v1880
      %v1959 = vadd.f32 %v1746, %v1885
      %v1960 = vadd.f32 %v1747, %v1890
      %v1961 = vadd.f32 %v1748, %v1895
      %v1962 = vadd.f32 %v1749, %v1900
      %v1963 = vadd.f32 %v1750, %v1905
      %v1964 = vadd.f32 %v1751, %v1910
      %v1965 = vadd.f32 %v1752, %v1915
      %v1966 = vadd.f32 %v1753, %v1920
      %v1967 = vadd.f32 %v1754, %v1925
      %v1968 = vadd.f32 %v1755, %v1930
      %v1969 = vadd.f32 %v1756, %v1935
      %v1970 = vadd.f32 %v1757, %v1940
      %v1971 = vadd.f32 %v1758, %v1945
      %v1972 = vadd.f32 %v1759, %v1950
      %v1973 = vadd.f32 %v1760, %v1955
      %v1974 = vld [vmem:[%s1 + $0x1c] sm:$0xf]
      %v1976 = vsel %vm515, %v481, 0
      %v1979 = vsel %vm515, %v482, 0
      %v1982 = vsel %vm515, %v483, 0
      %v1985 = vsel %vm515, %v484, 0
      %v1988 = vsel %vm515, %v485, 0
      %v1991 = vsel %vm515, %v486, 0
      %v1994 = vsel %vm515, %v487, 0
      %v1997 = vsel %vm515, %v488, 0
      %v2000 = vsel %vm515, %v489, 0
      %v2003 = vsel %vm515, %v490, 0
      %v2006 = vsel %vm515, %v491, 0
      %v2009 = vsel %vm515, %v492, 0
      %v2012 = vsel %vm515, %v493, 0
      %v2015 = vsel %vm515, %v494, 0
      %v2018 = vsel %vm515, %v495, 0
      %v2021 = vsel %vm515, %v496, 0
      %v2024 = vsel %vm564, %v1974, 0
      %2026 = vmatprep.subr.mxu0 0.0
      %2027 = vmatpush1.msra.mxu0 %v2024
      %2028 = vmatprep.subr.mxu0 0.0
      %2029 = vmatpush1.msra.mxu0 0.0
      %2030 = vmatprep.subr.mxu0 0.0
      %2031 = vmatpush1.msra.mxu0 0.0
      %2032 = vmatprep.subr.mxu0 0.0
      %2033 = vmatpush1.msra.mxu0 0.0
      %2034 = vmatprep.subr.mxu0 0.0
      %2035 = vmatpush1.msra.mxu0 0.0
      %2036 = vmatprep.subr.mxu0 0.0
      %2037 = vmatpush1.msra.mxu0 0.0
      %2038 = vmatprep.subr.mxu0 0.0
      %2039 = vmatpush1.msra.mxu0 0.0
      %2040 = vmatprep.subr.mxu0 0.0
      %2041 = vmatpush1.msra.mxu0 0.0
      %2042 = vmatprep.subr.mxu0 0.0
      %2043 = vmatpush1.msra.mxu0 0.0
      %2044 = vmatprep.subr.mxu0 0.0
      %2045 = vmatpush1.msra.mxu0 0.0
      %2046 = vmatprep.subr.mxu0 0.0
      %2047 = vmatpush1.msra.mxu0 0.0
      %2048 = vmatprep.subr.mxu0 0.0
      %2049 = vmatpush1.msra.mxu0 0.0
      %2050 = vmatprep.subr.mxu0 0.0
      %2051 = vmatpush1.msra.mxu0 0.0
      %2052 = vmatprep.subr.mxu0 0.0
      %2053 = vmatpush1.msra.mxu0 0.0
      %2054 = vmatprep.subr.mxu0 0.0
      %2055 = vmatpush1.msra.mxu0 0.0
      %2056 = vmatprep.subr.mxu0 0.0
      %2057 = vmatpush1.msra.mxu0 0.0
      %2058 = vmatprep.subr.mxu0 0.0
      %2059 = vmatpush1.msra.mxu0 0.0
      %2060 = vmatprep.subr.mxu0 0.0
      %2061 = vmatpush1.msra.mxu0 0.0
      %2062 = vmatprep.subr.mxu0 0.0
      %2063 = vmatpush1.msra.mxu0 0.0
      %2064 = vmatprep.subr.mxu0 0.0
      %2065 = vmatpush1.msra.mxu0 0.0
      %2066 = vmatprep.subr.mxu0 0.0
      %2067 = vmatpush1.msra.mxu0 0.0
      %2068 = vmatprep.subr.mxu0 0.0
      %2069 = vmatpush1.msra.mxu0 0.0
      %2070 = vmatprep.subr.mxu0 0.0
      %2071 = vmatpush1.msra.mxu0 0.0
      %2072 = vmatprep.subr.mxu0 0.0
      %2073 = vmatpush1.msra.mxu0 0.0
      %2074 = vmatprep.subr.mxu0 0.0
      %2075 = vmatpush1.msra.mxu0 0.0
      %2076 = vmatprep.subr.mxu0 0.0
      %2077 = vmatpush1.msra.mxu0 0.0
      %2078 = vmatprep.subr.mxu0 0.0
      %2079 = vmatpush1.msra.mxu0 0.0
      %2080 = vmatprep.subr.mxu0 0.0
      %2081 = vmatpush1.msra.mxu0 0.0
      %2082 = vmatprep.subr.mxu0 0.0
      %2083 = vmatpush1.msra.mxu0 0.0
      %2084 = vmatprep.subr.mxu0 0.0
      %2085 = vmatpush1.msra.mxu0 0.0
      %2086 = vmatprep.subr.mxu0 0.0
      %2087 = vmatpush1.msra.mxu0 0.0
      %2088 = vmatprep.subr.mxu0 0.0
      %2089 = vmatpush1.msra.mxu0 0.0
      %2090 = vmatprep.mubr.f32.mxu0 0.0
      %2091 = vmatmul.mubr.f32.gmra.mrb[0].mxu0 %v1976
      %v2092 = vpop.f32.mrb[0].mxu0
      %v2093 = vadd.f32 0.0, %v2092
      %v2094 = vpop.f32.mrb[0].mxu0
      %2095 = vmatprep.mubr.f32.mxu0 0.0
      %2096 = vmatmul.mubr.f32.gmra.mrb[0].mxu0 %v1979
      %v2097 = vpop.f32.mrb[0].mxu0
      %v2098 = vadd.f32 0.0, %v2097
      %v2099 = vpop.f32.mrb[0].mxu0
      %2100 = vmatprep.mubr.f32.mxu0 0.0
      %2101 = vmatmul.mubr.f32.gmra.mrb[0].mxu0 %v1982
      %v2102 = vpop.f32.mrb[0].mxu0
      %v2103 = vadd.f32 0.0, %v2102
      %v2104 = vpop.f32.mrb[0].mxu0
      %2105 = vmatprep.mubr.f32.mxu0 0.0
      %2106 = vmatmul.mubr.f32.gmra.mrb[0].mxu0 %v1985
      %v2107 = vpop.f32.mrb[0].mxu0
      %v2108 = vadd.f32 0.0, %v2107
      %v2109 = vpop.f32.mrb[0].mxu0
      %2110 = vmatprep.mubr.f32.mxu0 0.0
      %2111 = vmatmul.mubr.f32.gmra.mrb[0].mxu0 %v1988
      %v2112 = vpop.f32.mrb[0].mxu0
      %v2113 = vadd.f32 0.0, %v2112
      %v2114 = vpop.f32.mrb[0].mxu0
      %2115 = vmatprep.mubr.f32.mxu0 0.0
      %2116 = vmatmul.mubr.f32.gmra.mrb[0].mxu0 %v1991
      %v2117 = vpop.f32.mrb[0].mxu0
      %v2118 = vadd.f32 0.0, %v2117
      %v2119 = vpop.f32.mrb[0].mxu0
      %2120 = vmatprep.mubr.f32.mxu0 0.0
      %2121 = vmatmul.mubr.f32.gmra.mrb[0].mxu0 %v1994
      %v2122 = vpop.f32.mrb[0].mxu0
      %v2123 = vadd.f32 0.0, %v2122
      %v2124 = vpop.f32.mrb[0].mxu0
      %2125 = vmatprep.mubr.f32.mxu0 0.0
      %2126 = vmatmul.mubr.f32.gmra.mrb[0].mxu0 %v1997
      %v2127 = vpop.f32.mrb[0].mxu0
      %v2128 = vadd.f32 0.0, %v2127
      %v2129 = vpop.f32.mrb[0].mxu0
      %2130 = vmatprep.mubr.f32.mxu0 0.0
      %2131 = vmatmul.mubr.f32.gmra.mrb[0].mxu0 %v2000
      %v2132 = vpop.f32.mrb[0].mxu0
      %v2133 = vadd.f32 0.0, %v2132
      %v2134 = vpop.f32.mrb[0].mxu0
      %2135 = vmatprep.mubr.f32.mxu0 0.0
      %2136 = vmatmul.mubr.f32.gmra.mrb[0].mxu0 %v2003
      %v2137 = vpop.f32.mrb[0].mxu0
      %v2138 = vadd.f32 0.0, %v2137
      %v2139 = vpop.f32.mrb[0].mxu0
      %2140 = vmatprep.mubr.f32.mxu0 0.0
      %2141 = vmatmul.mubr.f32.gmra.mrb[0].mxu0 %v2006
      %v2142 = vpop.f32.mrb[0].mxu0
      %v2143 = vadd.f32 0.0, %v2142
      %v2144 = vpop.f32.mrb[0].mxu0
      %2145 = vmatprep.mubr.f32.mxu0 0.0
      %2146 = vmatmul.mubr.f32.gmra.mrb[0].mxu0 %v2009
      %v2147 = vpop.f32.mrb[0].mxu0
      %v2148 = vadd.f32 0.0, %v2147
      %v2149 = vpop.f32.mrb[0].mxu0
      %2150 = vmatprep.mubr.f32.mxu0 0.0
      %2151 = vmatmul.mubr.f32.gmra.mrb[0].mxu0 %v2012
      %v2152 = vpop.f32.mrb[0].mxu0
      %v2153 = vadd.f32 0.0, %v2152
      %v2154 = vpop.f32.mrb[0].mxu0
      %2155 = vmatprep.mubr.f32.mxu0 0.0
      %2156 = vmatmul.mubr.f32.gmra.mrb[0].mxu0 %v2015
      %v2157 = vpop.f32.mrb[0].mxu0
      %v2158 = vadd.f32 0.0, %v2157
      %v2159 = vpop.f32.mrb[0].mxu0
      %2160 = vmatprep.mubr.f32.mxu0 0.0
      %2161 = vmatmul.mubr.f32.gmra.mrb[0].mxu0 %v2018
      %v2162 = vpop.f32.mrb[0].mxu0
      %v2163 = vadd.f32 0.0, %v2162
      %v2164 = vpop.f32.mrb[0].mxu0
      %2165 = vmatprep.mubr.f32.mxu0 0.0
      %2166 = vmatmul.mubr.f32.gmra.mrb[0].mxu0 %v2021
      %v2167 = vpop.f32.mrb[0].mxu0
      %v2168 = vadd.f32 0.0, %v2167
      %v2169 = vpop.f32.mrb[0].mxu0
      %2170 = vdwg.mxu0
      %v2171 = vadd.f32 %v1958, %v2093
      %v2172 = vadd.f32 %v1959, %v2098
      %v2173 = vadd.f32 %v1960, %v2103
      %v2174 = vadd.f32 %v1961, %v2108
      %v2175 = vadd.f32 %v1962, %v2113
      %v2176 = vadd.f32 %v1963, %v2118
      %v2177 = vadd.f32 %v1964, %v2123
      %v2178 = vadd.f32 %v1965, %v2128
      %v2179 = vadd.f32 %v1966, %v2133
      %v2180 = vadd.f32 %v1967, %v2138
      %v2181 = vadd.f32 %v1968, %v2143
      %v2182 = vadd.f32 %v1969, %v2148
      %v2183 = vadd.f32 %v1970, %v2153
      %v2184 = vadd.f32 %v1971, %v2158
      %v2185 = vadd.f32 %v1972, %v2163
      %v2186 = vadd.f32 %v1973, %v2168
      %v2187 = vld [vmem:[%s1 + $0x20] sm:$0xf]
      %v2189 = vsel %vm515, %v497, 0
      %v2192 = vsel %vm515, %v498, 0
      %v2195 = vsel %vm515, %v499, 0
      %v2198 = vsel %vm515, %v500, 0
      %v2201 = vsel %vm515, %v501, 0
      %v2204 = vsel %vm515, %v502, 0
      %v2207 = vsel %vm515, %v503, 0
      %v2210 = vsel %vm515, %v504, 0
      %v2213 = vsel %vm515, %v505, 0
      %v2216 = vsel %vm515, %v506, 0
      %v2219 = vsel %vm515, %v507, 0
      %v2222 = vsel %vm515, %v508, 0
      %v2225 = vsel %vm515, %v509, 0
      %v2228 = vsel %vm515, %v510, 0
      %v2231 = vsel %vm515, %v511, 0
      %v2234 = vsel %vm515, %v512, 0
      %v2237 = vsel %vm564, %v2187, 0
      %2239 = vmatprep.subr.mxu0 0.0
      %2240 = vmatpush1.msra.mxu0 %v2237
      %2241 = vmatprep.subr.mxu0 0.0
      %2242 = vmatpush1.msra.mxu0 0.0
      %2243 = vmatprep.subr.mxu0 0.0
      %2244 = vmatpush1.msra.mxu0 0.0
      %2245 = vmatprep.subr.mxu0 0.0
      %2246 = vmatpush1.msra.mxu0 0.0
      %2247 = vmatprep.subr.mxu0 0.0
      %2248 = vmatpush1.msra.mxu0 0.0
      %2249 = vmatprep.subr.mxu0 0.0
      %2250 = vmatpush1.msra.mxu0 0.0
      %2251 = vmatprep.subr.mxu0 0.0
      %2252 = vmatpush1.msra.mxu0 0.0
      %2253 = vmatprep.subr.mxu0 0.0
      %2254 = vmatpush1.msra.mxu0 0.0
      %2255 = vmatprep.subr.mxu0 0.0
      %2256 = vmatpush1.msra.mxu0 0.0
      %2257 = vmatprep.subr.mxu0 0.0
      %2258 = vmatpush1.msra.mxu0 0.0
      %2259 = vmatprep.subr.mxu0 0.0
      %2260 = vmatpush1.msra.mxu0 0.0
      %2261 = vmatprep.subr.mxu0 0.0
      %2262 = vmatpush1.msra.mxu0 0.0
      %2263 = vmatprep.subr.mxu0 0.0
      %2264 = vmatpush1.msra.mxu0 0.0
      %2265 = vmatprep.subr.mxu0 0.0
      %2266 = vmatpush1.msra.mxu0 0.0
      %2267 = vmatprep.subr.mxu0 0.0
      %2268 = vmatpush1.msra.mxu0 0.0
      %2269 = vmatprep.subr.mxu0 0.0
      %2270 = vmatpush1.msra.mxu0 0.0
      %2271 = vmatprep.subr.mxu0 0.0
      %2272 = vmatpush1.msra.mxu0 0.0
      %2273 = vmatprep.subr.mxu0 0.0
      %2274 = vmatpush1.msra.mxu0 0.0
      %2275 = vmatprep.subr.mxu0 0.0
      %2276 = vmatpush1.msra.mxu0 0.0
      %2277 = vmatprep.subr.mxu0 0.0
      %2278 = vmatpush1.msra.mxu0 0.0
      %2279 = vmatprep.subr.mxu0 0.0
      %2280 = vmatpush1.msra.mxu0 0.0
      %2281 = vmatprep.subr.mxu0 0.0
      %2282 = vmatpush1.msra.mxu0 0.0
      %2283 = vmatprep.subr.mxu0 0.0
      %2284 = vmatpush1.msra.mxu0 0.0
      %2285 = vmatprep.subr.mxu0 0.0
      %2286 = vmatpush1.msra.mxu0 0.0
      %2287 = vmatprep.subr.mxu0 0.0
      %2288 = vmatpush1.msra.mxu0 0.0
      %2289 = vmatprep.subr.mxu0 0.0
      %2290 = vmatpush1.msra.mxu0 0.0
      %2291 = vmatprep.subr.mxu0 0.0
      %2292 = vmatpush1.msra.mxu0 0.0
      %2293 = vmatprep.subr.mxu0 0.0
      %2294 = vmatpush1.msra.mxu0 0.0
      %2295 = vmatprep.subr.mxu0 0.0
      %2296 = vmatpush1.msra.mxu0 0.0
      %2297 = vmatprep.subr.mxu0 0.0
      %2298 = vmatpush1.msra.mxu0 0.0
      %2299 = vmatprep.subr.mxu0 0.0
      %2300 = vmatpush1.msra.mxu0 0.0
      %2301 = vmatprep.subr.mxu0 0.0
      %2302 = vmatpush1.msra.mxu0 0.0
      %2303 = vmatprep.mubr.f32.mxu0 0.0
      %2304 = vmatmul.mubr.f32.gmra.mrb[0].mxu0 %v2189
      %v2305 = vpop.f32.mrb[0].mxu0
      %v2306 = vadd.f32 0.0, %v2305
      %v2307 = vpop.f32.mrb[0].mxu0
      %2308 = vmatprep.mubr.f32.mxu0 0.0
      %2309 = vmatmul.mubr.f32.gmra.mrb[0].mxu0 %v2192
      %v2310 = vpop.f32.mrb[0].mxu0
      %v2311 = vadd.f32 0.0, %v2310
      %v2312 = vpop.f32.mrb[0].mxu0
      %2313 = vmatprep.mubr.f32.mxu0 0.0
      %2314 = vmatmul.mubr.f32.gmra.mrb[0].mxu0 %v2195
      %v2315 = vpop.f32.mrb[0].mxu0
      %v2316 = vadd.f32 0.0, %v2315
      %v2317 = vpop.f32.mrb[0].mxu0
      %2318 = vmatprep.mubr.f32.mxu0 0.0
      %2319 = vmatmul.mubr.f32.gmra.mrb[0].mxu0 %v2198
      %v2320 = vpop.f32.mrb[0].mxu0
      %v2321 = vadd.f32 0.0, %v2320
      %v2322 = vpop.f32.mrb[0].mxu0
      %2323 = vmatprep.mubr.f32.mxu0 0.0
      %2324 = vmatmul.mubr.f32.gmra.mrb[0].mxu0 %v2201
      %v2325 = vpop.f32.mrb[0].mxu0
      %v2326 = vadd.f32 0.0, %v2325
      %v2327 = vpop.f32.mrb[0].mxu0
      %2328 = vmatprep.mubr.f32.mxu0 0.0
      %2329 = vmatmul.mubr.f32.gmra.mrb[0].mxu0 %v2204
      %v2330 = vpop.f32.mrb[0].mxu0
      %v2331 = vadd.f32 0.0, %v2330
      %v2332 = vpop.f32.mrb[0].mxu0
      %2333 = vmatprep.mubr.f32.mxu0 0.0
      %2334 = vmatmul.mubr.f32.gmra.mrb[0].mxu0 %v2207
      %v2335 = vpop.f32.mrb[0].mxu0
      %v2336 = vadd.f32 0.0, %v2335
      %v2337 = vpop.f32.mrb[0].mxu0
      %2338 = vmatprep.mubr.f32.mxu0 0.0
      %2339 = vmatmul.mubr.f32.gmra.mrb[0].mxu0 %v2210
      %v2340 = vpop.f32.mrb[0].mxu0
      %v2341 = vadd.f32 0.0, %v2340
      %v2342 = vpop.f32.mrb[0].mxu0
      %2343 = vmatprep.mubr.f32.mxu0 0.0
      %2344 = vmatmul.mubr.f32.gmra.mrb[0].mxu0 %v2213
      %v2345 = vpop.f32.mrb[0].mxu0
      %v2346 = vadd.f32 0.0, %v2345
      %v2347 = vpop.f32.mrb[0].mxu0
      %2348 = vmatprep.mubr.f32.mxu0 0.0
      %2349 = vmatmul.mubr.f32.gmra.mrb[0].mxu0 %v2216
      %v2350 = vpop.f32.mrb[0].mxu0
      %v2351 = vadd.f32 0.0, %v2350
      %v2352 = vpop.f32.mrb[0].mxu0
      %2353 = vmatprep.mubr.f32.mxu0 0.0
      %2354 = vmatmul.mubr.f32.gmra.mrb[0].mxu0 %v2219
      %v2355 = vpop.f32.mrb[0].mxu0
      %v2356 = vadd.f32 0.0, %v2355
      %v2357 = vpop.f32.mrb[0].mxu0
      %2358 = vmatprep.mubr.f32.mxu0 0.0
      %2359 = vmatmul.mubr.f32.gmra.mrb[0].mxu0 %v2222
      %v2360 = vpop.f32.mrb[0].mxu0
      %v2361 = vadd.f32 0.0, %v2360
      %v2362 = vpop.f32.mrb[0].mxu0
      %2363 = vmatprep.mubr.f32.mxu0 0.0
      %2364 = vmatmul.mubr.f32.gmra.mrb[0].mxu0 %v2225
      %v2365 = vpop.f32.mrb[0].mxu0
      %v2366 = vadd.f32 0.0, %v2365
      %v2367 = vpop.f32.mrb[0].mxu0
      %2368 = vmatprep.mubr.f32.mxu0 0.0
      %2369 = vmatmul.mubr.f32.gmra.mrb[0].mxu0 %v2228
      %v2370 = vpop.f32.mrb[0].mxu0
      %v2371 = vadd.f32 0.0, %v2370
      %v2372 = vpop.f32.mrb[0].mxu0
      %2373 = vmatprep.mubr.f32.mxu0 0.0
      %2374 = vmatmul.mubr.f32.gmra.mrb[0].mxu0 %v2231
      %v2375 = vpop.f32.mrb[0].mxu0
      %v2376 = vadd.f32 0.0, %v2375
      %v2377 = vpop.f32.mrb[0].mxu0
      %2378 = vmatprep.mubr.f32.mxu0 0.0
      %2379 = vmatmul.mubr.f32.gmra.mrb[0].mxu0 %v2234
      %v2380 = vpop.f32.mrb[0].mxu0
      %v2381 = vadd.f32 0.0, %v2380
      %v2382 = vpop.f32.mrb[0].mxu0
      %2383 = vdwg.mxu0
      %v2384 = vadd.f32 %v2171, %v2306
      %v2385 = vadd.f32 %v2172, %v2311
      %v2386 = vadd.f32 %v2173, %v2316
      %v2387 = vadd.f32 %v2174, %v2321
      %v2388 = vadd.f32 %v2175, %v2326
      %v2389 = vadd.f32 %v2176, %v2331
      %v2390 = vadd.f32 %v2177, %v2336
      %v2391 = vadd.f32 %v2178, %v2341
      %v2392 = vadd.f32 %v2179, %v2346
      %v2393 = vadd.f32 %v2180, %v2351
      %v2394 = vadd.f32 %v2181, %v2356
      %v2395 = vadd.f32 %v2182, %v2361
      %v2396 = vadd.f32 %v2183, %v2366
      %v2397 = vadd.f32 %v2184, %v2371
      %v2398 = vadd.f32 %v2185, %v2376
      %v2399 = vadd.f32 %v2186, %v2381
      %vm2400 = vcmask 64512
      %2401 = vst.msk [vmem:[%s208] sm:$0xff] %vm2400, %v2384
      %2402 = vst.msk [vmem:[%s208 + $0x8] sm:$0xff] %vm2400, %v2385
      %2403 = vst.msk [vmem:[%s208 + $0x10] sm:$0xff] %vm2400, %v2386
      %2404 = vst.msk [vmem:[%s208 + $0x18] sm:$0xff] %vm2400, %v2387
      %2405 = vst.msk [vmem:[%s208 + $0x20] sm:$0xff] %vm2400, %v2388
      %2406 = vst.msk [vmem:[%s208 + $0x28] sm:$0xff] %vm2400, %v2389
      %2407 = vst.msk [vmem:[%s208 + $0x30] sm:$0xff] %vm2400, %v2390
      %2408 = vst.msk [vmem:[%s208 + $0x38] sm:$0xff] %vm2400, %v2391
      %2409 = vst.msk [vmem:[%s208 + $0x40] sm:$0xff] %vm2400, %v2392
      %2410 = vst.msk [vmem:[%s208 + $0x48] sm:$0xff] %vm2400, %v2393
      %2411 = vst.msk [vmem:[%s208 + $0x50] sm:$0xff] %vm2400, %v2394
      %2412 = vst.msk [vmem:[%s208 + $0x58] sm:$0xff] %vm2400, %v2395
      %2413 = vst.msk [vmem:[%s208 + $0x60] sm:$0xff] %vm2400, %v2396
      %2414 = vst.msk [vmem:[%s208 + $0x68] sm:$0xff] %vm2400, %v2397
      %2415 = vst.msk [vmem:[%s208 + $0x70] sm:$0xff] %vm2400, %v2398
      %2416 = vst.msk [vmem:[%s208 + $0x78] sm:$0xff] %vm2400, %v2399
      %s2417 = smul.u32 8, %s19
      %p2418 = scmp.lt.s32.totalorder %s18, 1
      %s2419 = scalar_select %p2418, %s18, 1
      %p2420 = scmp.lt.s32.totalorder %s2417, 15
      %s2421 = scalar_select %p2420, %s2417, 15
      %s2422 = smul.addr %s2421, 2
      %s2423 = smul.addr %s2419, 32
      %s2424 = sadd.s32 %s2422, %s2423
      %s2425 = smul.addr %s2424, 8
      %s2426 = scalar_lea.vmem %s3, %s2425
      // Predicated region
      $region37: #{tpu_custom_call.1} parent=31 // pred_check
        %p2427 = pneg %p119
      $region38: #{tpu_custom_call.1} parent=31 // pred_check_branch
        %2429 = sbr.rel (%p2427) target = $region40
      $region39: #{tpu_custom_call.1} parent=31 // pred_region
        %s2430 = smul.u32 8, %s19
      $region40: #{tpu_custom_call.1} parent=31 // pred_fallthru
        _
    $region32: #{tpu_custom_call.1} parent=5 // pred_fallthru
      _
    %p2431 = scmp.le.s32.totalorder 2, %s9
    // Predicated region
    $region41: #{tpu_custom_call.1} parent=5 // pred_check
      %p2432 = pneg %p2431
    $region42: #{tpu_custom_call.1} parent=5 // pred_check_branch
      %2434 = sbr.rel (%p2432) target = $region44
    $region43: #{tpu_custom_call.1} parent=5 // pred_region
      %s2435 = ssub.s32 %s9, 2
      // Predicated region
      $region45: #{tpu_custom_call.1} parent=43 // pred_check
        %p2436 = pneg %p125
      $region46: #{tpu_custom_call.1} parent=43 // pred_check_branch
        %2438 = sbr.rel (%p2436) target = $region48
      $region47: #{tpu_custom_call.1} parent=43 // pred_region
        %s2439 = smul.u32 8, %s21
        %p2440 = scmp.lt.s32.totalorder %s20, 1
        %s2441 = scalar_select %p2440, %s20, 1
        %p2442 = scmp.lt.s32.totalorder %s2439, 15
        %s2443 = scalar_select %p2442, %s2439, 15
        %s2444 = smul.addr %s2443, 2
        %s2445 = smul.addr %s2441, 32
        %s2446 = sadd.s32 %s2444, %s2445
        %s2447 = smul.addr %s2446, 8
        %s2448 = scalar_lea.vmem %s3, %s2447
      $region48: #{tpu_custom_call.1} parent=43 // pred_fallthru
        _
    $region44: #{tpu_custom_call.1} parent=5 // pred_fallthru
      _
  $region6: #{tpu_custom_call.1} parent=0 // loop_footer
    %s13 = sadd.s32 1, %s9
  $region7: #{tpu_custom_call.1} parent=0 // loop_footer_branch
    %8 = sbr.rel target = $region3
  $region8: #{tpu_custom_call.1} parent=0 // loop_exit
    _

</llo_original>
